<compile_context>
chip_gen: v7x
topology: tpu7x:2x2x1
jax: 0.10.0
libtpu: 0.0.40
codegen_flags: <defaults>
</compile_context>

<pallas_src>
import functools
import random

import jax
import jax.numpy as jnp
from jax import lax
from jax.experimental import pallas as pl
from jax.experimental.pallas import tpu as pltpu


def _is_pow2(n: int) -> bool:
    return n > 0 and (n & (n - 1)) == 0


def _xor_permute(x, mask: int, axis: int):
    """Return y with y[..., i, ...] = x[..., i ^ mask, ...] along `axis`.

    The axis length must be a power of two and every set bit of `mask` must lie
    below it.  Implemented as one stage per set bit: two XLU rolls + a VPU
    select (native dtype, no MXU).  The top-bit stage degenerates to a single
    rotation by half the axis.  The selection predicate is derived by rolling
    the position iota the same way as the data, so it is independent of the
    roll direction convention.
    """
    size = x.shape[axis]
    if mask == 0:
        return x
    assert 0 < mask < size and _is_pow2(size)
    dim = axis % x.ndim
    pos = None
    if mask & ~(size // 2):  # any non-top bit set -> need the position iota
        pos = lax.broadcasted_iota(jnp.int32, x.shape, dim)
    bit = 1
    while bit < size:
        if mask & bit:
            if 2 * bit == size:
                # Flipping the top index bit == rotating by half the axis.
                x = pltpu.roll(x, bit, axis=dim)
            else:
                cand_a = pltpu.roll(x, bit, axis=dim)
                cand_b = pltpu.roll(x, size - bit, axis=dim)
                src_a = pltpu.roll(pos, bit, axis=dim)
                x = jnp.where(src_a == (pos ^ bit), cand_a, cand_b)
        bit <<= 1
    return x


def _mirror_kernel(flags_ref, *refs, masks):
    """Process one (tb, lane_block) tile of every fused array.

    flags_ref: SMEM int32[2] = (flip_h, flip_w).
    refs: n input refs followed by n output refs, n == len(masks).
    masks[k] = (h_mask, w_mask): static XOR masks on the flattened
    (h_in_chunk*W + w)*C + c lane index.
    """
    n = len(masks)
    fh = flags_ref[0]
    fw = flags_ref[1]
    for k in range(n):
        x_ref = refs[k]
        o_ref = refs[n + k]
        h_mask, w_mask = masks[k]
        # Four runtime-disjoint branches; each pays only the work it needs and
        # the no-flip path is a straight VMEM copy.
        for hv in (0, 1):
            for wv in (0, 1):
                branch_mask = (h_mask if hv else 0) | (w_mask if wv else 0)

                @pl.when(jnp.logical_and(fh == hv, fw == wv))
                def _branch(x_ref=x_ref, o_ref=o_ref, branch_mask=branch_mask):
                    y = x_ref[...]
                    if branch_mask:
                        y = _xor_permute(y, branch_mask, axis=1)
                    o_ref[...] = y


def _supported_by_kernel(arrays) -> bool:
    _, H, W = arrays[0].shape[:3]
    if not (_is_pow2(H) and _is_pow2(W)):
        return False
    for a in arrays:
        C = a.shape[3]
        if not _is_pow2(C) or (H * W * C) % 128 != 0:
            return False
    return True


def _xla_flip_fallback(arrays, flags):
    # TODO(synk): non-power-of-two H/W/C (or flattened lane dims that are not a
    # multiple of 128) use a plain XLA flip instead of the Pallas kernel.
    fh = flags[0] != 0
    fw = flags[1] != 0
    out = []
    for a in arrays:
        y = jnp.where(fh, jnp.flip(a, axis=1), a)
        y = jnp.where(fw, jnp.flip(y, axis=2), y)
        out.append(y)
    return out


def mirror_flip(arrays, flags):
    """Flip every (B, H, W, C_k) array along H if flags[0] and along W if
    flags[1], using a single fused Pallas call."""
    arrays = list(arrays)
    assert arrays, "need at least one array"
    B, H, W = arrays[0].shape[:3]
    for a in arrays:
        assert a.ndim == 4 and a.shape[:3] == (B, H, W), a.shape

    flags = (jnp.asarray(flags) != 0).astype(jnp.int32)

    if not _supported_by_kernel(arrays):
        return _xla_flip_fallback(arrays, flags)

    # ---- tiling -------------------------------------------------------------
    tb = B if B < 8 else 8                       # sublane tile: full B or 8 rows
    budget = 6 * 1024 * 1024                     # ~24 MiB w/ double-buffered in+out (v7x-safe)

    def block_bytes(n_hb_):
        hc_ = H // n_hb_
        return sum(tb * hc_ * W * a.shape[3] * a.dtype.itemsize for a in arrays)

    def can_split(n_hb_):
        if 2 * n_hb_ > H:
            return False
        hc_ = H // (2 * n_hb_)
        return all((hc_ * W * a.shape[3]) % 128 == 0 for a in arrays)

    n_hb = 1
    while block_bytes(n_hb) > budget and can_split(n_hb):
        n_hb *= 2
    hc = H // n_hb

    # Free (contiguous) reshape to a lane-dense (B, H*W*C) view per array.
    flat = [a.reshape(B, H * W * a.shape[3]) for a in arrays]
    lane_blocks = [hc * W * a.shape[3] for a in arrays]
    masks = tuple(((hc - 1) * W * a.shape[3], (W - 1) * a.shape[3]) for a in arrays)

    def in_index_map(bb, hb, flags_ref):
        fh = flags_ref[0]  # mirror the H-chunk block index when flipping H
        return (bb, fh * (n_hb - 1 - hb) + (1 - fh) * hb)

    def out_index_map(bb, hb, flags_ref):
        return (bb, hb)

    in_specs = [pl.BlockSpec((tb, lb), in_index_map) for lb in lane_blocks]
    out_specs = [pl.BlockSpec((tb, lb), out_index_map) for lb in lane_blocks]
    out_shape = tuple(jax.ShapeDtypeStruct(f.shape, f.dtype) for f in flat)

    vmem_limit = int(min(100 * 1024 * 1024,
                         max(32 * 1024 * 1024, 6 * block_bytes(n_hb))))

    outs = pl.pallas_call(
        functools.partial(_mirror_kernel, masks=masks),
        out_shape=out_shape,
        grid_spec=pltpu.PrefetchScalarGridSpec(
            num_scalar_prefetch=1,
            grid=(pl.cdiv(B, tb), n_hb),
            in_specs=in_specs,
            out_specs=out_specs,
        ),
        compiler_params=pltpu.CompilerParams(
            dimension_semantics=("parallel", "parallel"),
            vmem_limit_bytes=vmem_limit,
        ),
    )(flags, *flat)

    return [o.reshape(a.shape) for o, a in zip(outs, arrays)]


_FLIPPABLE_KEYS = ("X", "Y", "coordinates", "coordinates_fine")


def mirror_transform(data: dict, flags, training: bool = True) -> dict:
    """JAX/Pallas equivalent of MirrorTransform.forward.

    `flags` = int32[2] (flip_h, flip_w); in the torch module these come from
    Python `random.random() < 0.5` draws at forward time.
    """
    if not training:
        return data
    keys = [k for k in _FLIPPABLE_KEYS if k in data]
    if not keys:
        return data
    flipped = mirror_flip([data[k] for k in keys], flags)
    out = dict(data)
    out.update(zip(keys, flipped))
    return out


def _reference_flip(x, flip_h, flip_w):
    axes = []
    if flip_h:
        axes.append(1)   # H  (dim -3)
    if flip_w:
        axes.append(2)   # W  (dim -2)
    return jnp.flip(x, axis=tuple(axes)) if axes else x


if __name__ == "__main__":
    key = jax.random.PRNGKey(0)
    kx, ky, kc = jax.random.split(key, 3)

    B, H, W = 2, 16, 16
    data = {
        "X": jax.random.normal(kx, (B, H, W, 4), dtype=jnp.float32),
        "Y": jax.random.normal(ky, (B, H, W, 4), dtype=jnp.float32),
        "coordinates": jax.random.normal(kc, (B, H, W, 2), dtype=jnp.float32),
    }

    # Exhaustively check every flip combination against the jnp.flip reference
    # (the kernel only moves data, so the comparison is bit-exact).
    for fh in (0, 1):
        for fw in (0, 1):
            flags = jnp.array([fh, fw], dtype=jnp.int32)
            out = jax.block_until_ready(mirror_transform(data, flags, training=True))
            for k in data:
                ref = _reference_flip(data[k], fh, fw)
                assert jnp.array_equal(out[k], ref), (k, fh, fw)

    # Mimic the torch module's training-time random draws (deterministic seed).
    rng = random.Random(0)
    flip_w = int(rng.random() < 0.5)   # torch draws axis -2 (W) first
    flip_h = int(rng.random() < 0.5)   # then axis -3 (H)
    flags = jnp.array([flip_h, flip_w], dtype=jnp.int32)
    _ = jax.block_until_ready(mirror_transform(data, flags, training=True))

    # Eval mode is the identity (same objects returned).
    eval_out = mirror_transform(data, flags, training=False)
    for k in data:
        assert eval_out[k] is data[k]

    print("KERNEL_OK")
</pallas_src>

<mosaic_0001>
module attributes {stable_mosaic.version = 11 : i64} {
  func.func @_mirror_kernel(%arg0: i32, %arg1: i32, %arg2: memref<2xi32, #tpu.memory_space<smem>>, %arg3: memref<2x1024xf32, #tpu.memory_space<vmem>>, %arg4: memref<2x1024xf32, #tpu.memory_space<vmem>>, %arg5: memref<2x512xf32, #tpu.memory_space<vmem>>, %arg6: memref<2x1024xf32, #tpu.memory_space<vmem>>, %arg7: memref<2x1024xf32, #tpu.memory_space<vmem>>, %arg8: memref<2x512xf32, #tpu.memory_space<vmem>>) attributes {dimension_semantics = [#tpu.dimension_semantics<parallel>, #tpu.dimension_semantics<parallel>], iteration_bounds = array<i64: 1, 1>, scalar_prefetch = 1 : i64, scratch_operands = 0 : i64, tpu.core_type = #tpu.core_type<tc>, window_params = [{transform_indices = @transform_0, window_bounds = array<i64: 2, 1024>}, {transform_indices = @transform_1, window_bounds = array<i64: 2, 1024>}, {transform_indices = @transform_2, window_bounds = array<i64: 2, 512>}, {transform_indices = @transform_3, window_bounds = array<i64: 2, 1024>}, {transform_indices = @transform_4, window_bounds = array<i64: 2, 1024>}, {transform_indices = @transform_5, window_bounds = array<i64: 2, 512>}]} {
    %c0 = arith.constant 0 : index
    %0 = memref.load %arg2[%c0] : memref<2xi32, #tpu.memory_space<smem>>
    %c1 = arith.constant 1 : index
    %1 = memref.load %arg2[%c1] : memref<2xi32, #tpu.memory_space<smem>>
    %c0_i32 = arith.constant 0 : i32
    %2 = arith.cmpi eq, %0, %c0_i32 : i32
    %c0_i32_0 = arith.constant 0 : i32
    %3 = arith.cmpi eq, %1, %c0_i32_0 : i32
    %4 = arith.andi %2, %3 : i1
    %5 = arith.extui %4 : i1 to i32
    %c0_i32_1 = arith.constant 0 : i32
    %6 = arith.cmpi ne, %5, %c0_i32_1 : i32
    scf.if %6 {
      %c0_34 = arith.constant 0 : index
      %c0_35 = arith.constant 0 : index
      %62 = vector.load %arg3[%c0_34, %c0_35] : memref<2x1024xf32, #tpu.memory_space<vmem>>, vector<2x1024xf32>
      %c0_36 = arith.constant 0 : index
      %c0_37 = arith.constant 0 : index
      %63 = vector.load %arg6[%c0_36, %c0_37] : memref<2x1024xf32, #tpu.memory_space<vmem>>, vector<2x1024xf32>
      tpu.vector_store %arg6[%c0_36, %c0_37], %62 {strides = array<i32>} : memref<2x1024xf32, #tpu.memory_space<vmem>>, vector<2x1024xf32>,
    } else {
    }
    %c0_i32_2 = arith.constant 0 : i32
    %7 = arith.cmpi eq, %0, %c0_i32_2 : i32
    %c1_i32 = arith.constant 1 : i32
    %8 = arith.cmpi eq, %1, %c1_i32 : i32
    %9 = arith.andi %7, %8 : i1
    %10 = arith.extui %9 : i1 to i32
    %c0_i32_3 = arith.constant 0 : i32
    %11 = arith.cmpi ne, %10, %c0_i32_3 : i32
    scf.if %11 {
      %c0_34 = arith.constant 0 : index
      %c0_35 = arith.constant 0 : index
      %62 = vector.load %arg3[%c0_34, %c0_35] : memref<2x1024xf32, #tpu.memory_space<vmem>>, vector<2x1024xf32>
      %63 = tpu.iota {dimensions = array<i32: 1>} : vector<2x1024xi32>
      %c4_i32 = arith.constant 4 : i32
      %64 = tpu.dynamic_rotate %62 by %c4_i32 dim 1 : vector<2x1024xf32>, i32 -> vector<2x1024xf32>
      %c1020_i32 = arith.constant 1020 : i32
      %65 = tpu.dynamic_rotate %62 by %c1020_i32 dim 1 : vector<2x1024xf32>, i32 -> vector<2x1024xf32>
      %c4_i32_36 = arith.constant 4 : i32
      %66 = tpu.dynamic_rotate %63 by %c4_i32_36 dim 1 : vector<2x1024xi32>, i32 -> vector<2x1024xi32>
      %c4_i32_37 = arith.constant 4 : i32
      %67 = vector.broadcast %c4_i32_37 : i32 to vector<2x1024xi32>
      %68 = arith.xori %63, %67 : vector<2x1024xi32>
      %69 = arith.cmpi eq, %66, %68 : vector<2x1024xi32>
      %70 = arith.select %69, %64, %65 : vector<2x1024xi1>, vector<2x1024xf32>
      %c8_i32 = arith.constant 8 : i32
      %71 = tpu.dynamic_rotate %70 by %c8_i32 dim 1 : vector<2x1024xf32>, i32 -> vector<2x1024xf32>
      %c1016_i32 = arith.constant 1016 : i32
      %72 = tpu.dynamic_rotate %70 by %c1016_i32 dim 1 : vector<2x1024xf32>, i32 -> vector<2x1024xf32>
      %c8_i32_38 = arith.constant 8 : i32
      %73 = tpu.dynamic_rotate %63 by %c8_i32_38 dim 1 : vector<2x1024xi32>, i32 -> vector<2x1024xi32>
      %c8_i32_39 = arith.constant 8 : i32
      %74 = vector.broadcast %c8_i32_39 : i32 to vector<2x1024xi32>
      %75 = arith.xori %63, %74 : vector<2x1024xi32>
      %76 = arith.cmpi eq, %73, %75 : vector<2x1024xi32>
      %77 = arith.select %76, %71, %72 : vector<2x1024xi1>, vector<2x1024xf32>
      %c16_i32 = arith.constant 16 : i32
      %78 = tpu.dynamic_rotate %77 by %c16_i32 dim 1 : vector<2x1024xf32>, i32 -> vector<2x1024xf32>
      %c1008_i32 = arith.constant 1008 : i32
      %79 = tpu.dynamic_rotate %77 by %c1008_i32 dim 1 : vector<2x1024xf32>, i32 -> vector<2x1024xf32>
      %c16_i32_40 = arith.constant 16 : i32
      %80 = tpu.dynamic_rotate %63 by %c16_i32_40 dim 1 : vector<2x1024xi32>, i32 -> vector<2x1024xi32>
      %c16_i32_41 = arith.constant 16 : i32
      %81 = vector.broadcast %c16_i32_41 : i32 to vector<2x1024xi32>
      %82 = arith.xori %63, %81 : vector<2x1024xi32>
      %83 = arith.cmpi eq, %80, %82 : vector<2x1024xi32>
      %84 = arith.select %83, %78, %79 : vector<2x1024xi1>, vector<2x1024xf32>
      %c32_i32 = arith.constant 32 : i32
      %85 = tpu.dynamic_rotate %84 by %c32_i32 dim 1 : vector<2x1024xf32>, i32 -> vector<2x1024xf32>
      %c992_i32 = arith.constant 992 : i32
      %86 = tpu.dynamic_rotate %84 by %c992_i32 dim 1 : vector<2x1024xf32>, i32 -> vector<2x1024xf32>
      %c32_i32_42 = arith.constant 32 : i32
      %87 = tpu.dynamic_rotate %63 by %c32_i32_42 dim 1 : vector<2x1024xi32>, i32 -> vector<2x1024xi32>
      %c32_i32_43 = arith.constant 32 : i32
      %88 = vector.broadcast %c32_i32_43 : i32 to vector<2x1024xi32>
      %89 = arith.xori %63, %88 : vector<2x1024xi32>
      %90 = arith.cmpi eq, %87, %89 : vector<2x1024xi32>
      %91 = arith.select %90, %85, %86 : vector<2x1024xi1>, vector<2x1024xf32>
      %c0_44 = arith.constant 0 : index
      %c0_45 = arith.constant 0 : index
      %92 = vector.load %arg6[%c0_44, %c0_45] : memref<2x1024xf32, #tpu.memory_space<vmem>>, vector<2x1024xf32>
      tpu.vector_store %arg6[%c0_44, %c0_45], %91 {strides = array<i32>} : memref<2x1024xf32, #tpu.memory_space<vmem>>, vector<2x1024xf32>,
    } else {
    }
    %c1_i32_4 = arith.constant 1 : i32
    %12 = arith.cmpi eq, %0, %c1_i32_4 : i32
    %c0_i32_5 = arith.constant 0 : i32
    %13 = arith.cmpi eq, %1, %c0_i32_5 : i32
    %14 = arith.andi %12, %13 : i1
    %15 = arith.extui %14 : i1 to i32
    %c0_i32_6 = arith.constant 0 : i32
    %16 = arith.cmpi ne, %15, %c0_i32_6 : i32
    scf.if %16 {
      %c0_34 = arith.constant 0 : index
      %c0_35 = arith.constant 0 : index
      %62 = vector.load %arg3[%c0_34, %c0_35] : memref<2x1024xf32, #tpu.memory_space<vmem>>, vector<2x1024xf32>
      %63 = tpu.iota {dimensions = array<i32: 1>} : vector<2x1024xi32>
      %c64_i32 = arith.constant 64 : i32
      %64 = tpu.dynamic_rotate %62 by %c64_i32 dim 1 : vector<2x1024xf32>, i32 -> vector<2x1024xf32>
      %c960_i32 = arith.constant 960 : i32
      %65 = tpu.dynamic_rotate %62 by %c960_i32 dim 1 : vector<2x1024xf32>, i32 -> vector<2x1024xf32>
      %c64_i32_36 = arith.constant 64 : i32
      %66 = tpu.dynamic_rotate %63 by %c64_i32_36 dim 1 : vector<2x1024xi32>, i32 -> vector<2x1024xi32>
      %c64_i32_37 = arith.constant 64 : i32
      %67 = vector.broadcast %c64_i32_37 : i32 to vector<2x1024xi32>
      %68 = arith.xori %63, %67 : vector<2x1024xi32>
      %69 = arith.cmpi eq, %66, %68 : vector<2x1024xi32>
      %70 = arith.select %69, %64, %65 : vector<2x1024xi1>, vector<2x1024xf32>
      %c128_i32 = arith.constant 128 : i32
      %71 = tpu.dynamic_rotate %70 by %c128_i32 dim 1 : vector<2x1024xf32>, i32 -> vector<2x1024xf32>
      %c896_i32 = arith.constant 896 : i32
      %72 = tpu.dynamic_rotate %70 by %c896_i32 dim 1 : vector<2x1024xf32>, i32 -> vector<2x1024xf32>
      %c128_i32_38 = arith.constant 128 : i32
      %73 = tpu.dynamic_rotate %63 by %c128_i32_38 dim 1 : vector<2x1024xi32>, i32 -> vector<2x1024xi32>
      %c128_i32_39 = arith.constant 128 : i32
      %74 = vector.broadcast %c128_i32_39 : i32 to vector<2x1024xi32>
      %75 = arith.xori %63, %74 : vector<2x1024xi32>
      %76 = arith.cmpi eq, %73, %75 : vector<2x1024xi32>
      %77 = arith.select %76, %71, %72 : vector<2x1024xi1>, vector<2x1024xf32>
      %c256_i32 = arith.constant 256 : i32
      %78 = tpu.dynamic_rotate %77 by %c256_i32 dim 1 : vector<2x1024xf32>, i32 -> vector<2x1024xf32>
      %c768_i32 = arith.constant 768 : i32
      %79 = tpu.dynamic_rotate %77 by %c768_i32 dim 1 : vector<2x1024xf32>, i32 -> vector<2x1024xf32>
      %c256_i32_40 = arith.constant 256 : i32
      %80 = tpu.dynamic_rotate %63 by %c256_i32_40 dim 1 : vector<2x1024xi32>, i32 -> vector<2x1024xi32>
      %c256_i32_41 = arith.constant 256 : i32
      %81 = vector.broadcast %c256_i32_41 : i32 to vector<2x1024xi32>
      %82 = arith.xori %63, %81 : vector<2x1024xi32>
      %83 = arith.cmpi eq, %80, %82 : vector<2x1024xi32>
      %84 = arith.select %83, %78, %79 : vector<2x1024xi1>, vector<2x1024xf32>
      %c512_i32 = arith.constant 512 : i32
      %85 = tpu.dynamic_rotate %84 by %c512_i32 dim 1 : vector<2x1024xf32>, i32 -> vector<2x1024xf32>
      %c0_42 = arith.constant 0 : index
      %c0_43 = arith.constant 0 : index
      %86 = vector.load %arg6[%c0_42, %c0_43] : memref<2x1024xf32, #tpu.memory_space<vmem>>, vector<2x1024xf32>
      tpu.vector_store %arg6[%c0_42, %c0_43], %85 {strides = array<i32>} : memref<2x1024xf32, #tpu.memory_space<vmem>>, vector<2x1024xf32>,
    } else {
    }
    %c1_i32_7 = arith.constant 1 : i32
    %17 = arith.cmpi eq, %0, %c1_i32_7 : i32
    %c1_i32_8 = arith.constant 1 : i32
    %18 = arith.cmpi eq, %1, %c1_i32_8 : i32
    %19 = arith.andi %17, %18 : i1
    %20 = arith.extui %19 : i1 to i32
    %c0_i32_9 = arith.constant 0 : i32
    %21 = arith.cmpi ne, %20, %c0_i32_9 : i32
    scf.if %21 {
      %c0_34 = arith.constant 0 : index
      %c0_35 = arith.constant 0 : index
      %62 = vector.load %arg3[%c0_34, %c0_35] : memref<2x1024xf32, #tpu.memory_space<vmem>>, vector<2x1024xf32>
      %63 = tpu.iota {dimensions = array<i32: 1>} : vector<2x1024xi32>
      %c4_i32 = arith.constant 4 : i32
      %64 = tpu.dynamic_rotate %62 by %c4_i32 dim 1 : vector<2x1024xf32>, i32 -> vector<2x1024xf32>
      %c1020_i32 = arith.constant 1020 : i32
      %65 = tpu.dynamic_rotate %62 by %c1020_i32 dim 1 : vector<2x1024xf32>, i32 -> vector<2x1024xf32>
      %c4_i32_36 = arith.constant 4 : i32
      %66 = tpu.dynamic_rotate %63 by %c4_i32_36 dim 1 : vector<2x1024xi32>, i32 -> vector<2x1024xi32>
      %c4_i32_37 = arith.constant 4 : i32
      %67 = vector.broadcast %c4_i32_37 : i32 to vector<2x1024xi32>
      %68 = arith.xori %63, %67 : vector<2x1024xi32>
      %69 = arith.cmpi eq, %66, %68 : vector<2x1024xi32>
      %70 = arith.select %69, %64, %65 : vector<2x1024xi1>, vector<2x1024xf32>
      %c8_i32 = arith.constant 8 : i32
      %71 = tpu.dynamic_rotate %70 by %c8_i32 dim 1 : vector<2x1024xf32>, i32 -> vector<2x1024xf32>
      %c1016_i32 = arith.constant 1016 : i32
      %72 = tpu.dynamic_rotate %70 by %c1016_i32 dim 1 : vector<2x1024xf32>, i32 -> vector<2x1024xf32>
      %c8_i32_38 = arith.constant 8 : i32
      %73 = tpu.dynamic_rotate %63 by %c8_i32_38 dim 1 : vector<2x1024xi32>, i32 -> vector<2x1024xi32>
      %c8_i32_39 = arith.constant 8 : i32
      %74 = vector.broadcast %c8_i32_39 : i32 to vector<2x1024xi32>
      %75 = arith.xori %63, %74 : vector<2x1024xi32>
      %76 = arith.cmpi eq, %73, %75 : vector<2x1024xi32>
      %77 = arith.select %76, %71, %72 : vector<2x1024xi1>, vector<2x1024xf32>
      %c16_i32 = arith.constant 16 : i32
      %78 = tpu.dynamic_rotate %77 by %c16_i32 dim 1 : vector<2x1024xf32>, i32 -> vector<2x1024xf32>
      %c1008_i32 = arith.constant 1008 : i32
      %79 = tpu.dynamic_rotate %77 by %c1008_i32 dim 1 : vector<2x1024xf32>, i32 -> vector<2x1024xf32>
      %c16_i32_40 = arith.constant 16 : i32
      %80 = tpu.dynamic_rotate %63 by %c16_i32_40 dim 1 : vector<2x1024xi32>, i32 -> vector<2x1024xi32>
      %c16_i32_41 = arith.constant 16 : i32
      %81 = vector.broadcast %c16_i32_41 : i32 to vector<2x1024xi32>
      %82 = arith.xori %63, %81 : vector<2x1024xi32>
      %83 = arith.cmpi eq, %80, %82 : vector<2x1024xi32>
      %84 = arith.select %83, %78, %79 : vector<2x1024xi1>, vector<2x1024xf32>
      %c32_i32 = arith.constant 32 : i32
      %85 = tpu.dynamic_rotate %84 by %c32_i32 dim 1 : vector<2x1024xf32>, i32 -> vector<2x1024xf32>
      %c992_i32 = arith.constant 992 : i32
      %86 = tpu.dynamic_rotate %84 by %c992_i32 dim 1 : vector<2x1024xf32>, i32 -> vector<2x1024xf32>
      %c32_i32_42 = arith.constant 32 : i32
      %87 = tpu.dynamic_rotate %63 by %c32_i32_42 dim 1 : vector<2x1024xi32>, i32 -> vector<2x1024xi32>
      %c32_i32_43 = arith.constant 32 : i32
      %88 = vector.broadcast %c32_i32_43 : i32 to vector<2x1024xi32>
      %89 = arith.xori %63, %88 : vector<2x1024xi32>
      %90 = arith.cmpi eq, %87, %89 : vector<2x1024xi32>
      %91 = arith.select %90, %85, %86 : vector<2x1024xi1>, vector<2x1024xf32>
      %c64_i32 = arith.constant 64 : i32
      %92 = tpu.dynamic_rotate %91 by %c64_i32 dim 1 : vector<2x1024xf32>, i32 -> vector<2x1024xf32>
      %c960_i32 = arith.constant 960 : i32
      %93 = tpu.dynamic_rotate %91 by %c960_i32 dim 1 : vector<2x1024xf32>, i32 -> vector<2x1024xf32>
      %c64_i32_44 = arith.constant 64 : i32
      %94 = tpu.dynamic_rotate %63 by %c64_i32_44 dim 1 : vector<2x1024xi32>, i32 -> vector<2x1024xi32>
      %c64_i32_45 = arith.constant 64 : i32
      %95 = vector.broadcast %c64_i32_45 : i32 to vector<2x1024xi32>
      %96 = arith.xori %63, %95 : vector<2x1024xi32>
      %97 = arith.cmpi eq, %94, %96 : vector<2x1024xi32>
      %98 = arith.select %97, %92, %93 : vector<2x1024xi1>, vector<2x1024xf32>
      %c128_i32 = arith.constant 128 : i32
      %99 = tpu.dynamic_rotate %98 by %c128_i32 dim 1 : vector<2x1024xf32>, i32 -> vector<2x1024xf32>
      %c896_i32 = arith.constant 896 : i32
      %100 = tpu.dynamic_rotate %98 by %c896_i32 dim 1 : vector<2x1024xf32>, i32 -> vector<2x1024xf32>
      %c128_i32_46 = arith.constant 128 : i32
      %101 = tpu.dynamic_rotate %63 by %c128_i32_46 dim 1 : vector<2x1024xi32>, i32 -> vector<2x1024xi32>
      %c128_i32_47 = arith.constant 128 : i32
      %102 = vector.broadcast %c128_i32_47 : i32 to vector<2x1024xi32>
      %103 = arith.xori %63, %102 : vector<2x1024xi32>
      %104 = arith.cmpi eq, %101, %103 : vector<2x1024xi32>
      %105 = arith.select %104, %99, %100 : vector<2x1024xi1>, vector<2x1024xf32>
      %c256_i32 = arith.constant 256 : i32
      %106 = tpu.dynamic_rotate %105 by %c256_i32 dim 1 : vector<2x1024xf32>, i32 -> vector<2x1024xf32>
      %c768_i32 = arith.constant 768 : i32
      %107 = tpu.dynamic_rotate %105 by %c768_i32 dim 1 : vector<2x1024xf32>, i32 -> vector<2x1024xf32>
      %c256_i32_48 = arith.constant 256 : i32
      %108 = tpu.dynamic_rotate %63 by %c256_i32_48 dim 1 : vector<2x1024xi32>, i32 -> vector<2x1024xi32>
      %c256_i32_49 = arith.constant 256 : i32
      %109 = vector.broadcast %c256_i32_49 : i32 to vector<2x1024xi32>
      %110 = arith.xori %63, %109 : vector<2x1024xi32>
      %111 = arith.cmpi eq, %108, %110 : vector<2x1024xi32>
      %112 = arith.select %111, %106, %107 : vector<2x1024xi1>, vector<2x1024xf32>
      %c512_i32 = arith.constant 512 : i32
      %113 = tpu.dynamic_rotate %112 by %c512_i32 dim 1 : vector<2x1024xf32>, i32 -> vector<2x1024xf32>
      %c0_50 = arith.constant 0 : index
      %c0_51 = arith.constant 0 : index
      %114 = vector.load %arg6[%c0_50, %c0_51] : memref<2x1024xf32, #tpu.memory_space<vmem>>, vector<2x1024xf32>
      tpu.vector_store %arg6[%c0_50, %c0_51], %113 {strides = array<i32>} : memref<2x1024xf32, #tpu.memory_space<vmem>>, vector<2x1024xf32>,
    } else {
    }
    %c0_i32_10 = arith.constant 0 : i32
    %22 = arith.cmpi eq, %0, %c0_i32_10 : i32
    %c0_i32_11 = arith.constant 0 : i32
    %23 = arith.cmpi eq, %1, %c0_i32_11 : i32
    %24 = arith.andi %22, %23 : i1
    %25 = arith.extui %24 : i1 to i32
    %c0_i32_12 = arith.constant 0 : i32
    %26 = arith.cmpi ne, %25, %c0_i32_12 : i32
    scf.if %26 {
      %c0_34 = arith.constant 0 : index
      %c0_35 = arith.constant 0 : index
      %62 = vector.load %arg4[%c0_34, %c0_35] : memref<2x1024xf32, #tpu.memory_space<vmem>>, vector<2x1024xf32>
      %c0_36 = arith.constant 0 : index
      %c0_37 = arith.constant 0 : index
      %63 = vector.load %arg7[%c0_36, %c0_37] : memref<2x1024xf32, #tpu.memory_space<vmem>>, vector<2x1024xf32>
      tpu.vector_store %arg7[%c0_36, %c0_37], %62 {strides = array<i32>} : memref<2x1024xf32, #tpu.memory_space<vmem>>, vector<2x1024xf32>,
    } else {
    }
    %c0_i32_13 = arith.constant 0 : i32
    %27 = arith.cmpi eq, %0, %c0_i32_13 : i32
    %c1_i32_14 = arith.constant 1 : i32
    %28 = arith.cmpi eq, %1, %c1_i32_14 : i32
    %29 = arith.andi %27, %28 : i1
    %30 = arith.extui %29 : i1 to i32
    %c0_i32_15 = arith.constant 0 : i32
    %31 = arith.cmpi ne, %30, %c0_i32_15 : i32
    scf.if %31 {
      %c0_34 = arith.constant 0 : index
      %c0_35 = arith.constant 0 : index
      %62 = vector.load %arg4[%c0_34, %c0_35] : memref<2x1024xf32, #tpu.memory_space<vmem>>, vector<2x1024xf32>
      %63 = tpu.iota {dimensions = array<i32: 1>} : vector<2x1024xi32>
      %c4_i32 = arith.constant 4 : i32
      %64 = tpu.dynamic_rotate %62 by %c4_i32 dim 1 : vector<2x1024xf32>, i32 -> vector<2x1024xf32>
      %c1020_i32 = arith.constant 1020 : i32
      %65 = tpu.dynamic_rotate %62 by %c1020_i32 dim 1 : vector<2x1024xf32>, i32 -> vector<2x1024xf32>
      %c4_i32_36 = arith.constant 4 : i32
      %66 = tpu.dynamic_rotate %63 by %c4_i32_36 dim 1 : vector<2x1024xi32>, i32 -> vector<2x1024xi32>
      %c4_i32_37 = arith.constant 4 : i32
      %67 = vector.broadcast %c4_i32_37 : i32 to vector<2x1024xi32>
      %68 = arith.xori %63, %67 : vector<2x1024xi32>
      %69 = arith.cmpi eq, %66, %68 : vector<2x1024xi32>
      %70 = arith.select %69, %64, %65 : vector<2x1024xi1>, vector<2x1024xf32>
      %c8_i32 = arith.constant 8 : i32
      %71 = tpu.dynamic_rotate %70 by %c8_i32 dim 1 : vector<2x1024xf32>, i32 -> vector<2x1024xf32>
      %c1016_i32 = arith.constant 1016 : i32
      %72 = tpu.dynamic_rotate %70 by %c1016_i32 dim 1 : vector<2x1024xf32>, i32 -> vector<2x1024xf32>
      %c8_i32_38 = arith.constant 8 : i32
      %73 = tpu.dynamic_rotate %63 by %c8_i32_38 dim 1 : vector<2x1024xi32>, i32 -> vector<2x1024xi32>
      %c8_i32_39 = arith.constant 8 : i32
      %74 = vector.broadcast %c8_i32_39 : i32 to vector<2x1024xi32>
      %75 = arith.xori %63, %74 : vector<2x1024xi32>
      %76 = arith.cmpi eq, %73, %75 : vector<2x1024xi32>
      %77 = arith.select %76, %71, %72 : vector<2x1024xi1>, vector<2x1024xf32>
      %c16_i32 = arith.constant 16 : i32
      %78 = tpu.dynamic_rotate %77 by %c16_i32 dim 1 : vector<2x1024xf32>, i32 -> vector<2x1024xf32>
      %c1008_i32 = arith.constant 1008 : i32
      %79 = tpu.dynamic_rotate %77 by %c1008_i32 dim 1 : vector<2x1024xf32>, i32 -> vector<2x1024xf32>
      %c16_i32_40 = arith.constant 16 : i32
      %80 = tpu.dynamic_rotate %63 by %c16_i32_40 dim 1 : vector<2x1024xi32>, i32 -> vector<2x1024xi32>
      %c16_i32_41 = arith.constant 16 : i32
      %81 = vector.broadcast %c16_i32_41 : i32 to vector<2x1024xi32>
      %82 = arith.xori %63, %81 : vector<2x1024xi32>
      %83 = arith.cmpi eq, %80, %82 : vector<2x1024xi32>
      %84 = arith.select %83, %78, %79 : vector<2x1024xi1>, vector<2x1024xf32>
      %c32_i32 = arith.constant 32 : i32
      %85 = tpu.dynamic_rotate %84 by %c32_i32 dim 1 : vector<2x1024xf32>, i32 -> vector<2x1024xf32>
      %c992_i32 = arith.constant 992 : i32
      %86 = tpu.dynamic_rotate %84 by %c992_i32 dim 1 : vector<2x1024xf32>, i32 -> vector<2x1024xf32>
      %c32_i32_42 = arith.constant 32 : i32
      %87 = tpu.dynamic_rotate %63 by %c32_i32_42 dim 1 : vector<2x1024xi32>, i32 -> vector<2x1024xi32>
      %c32_i32_43 = arith.constant 32 : i32
      %88 = vector.broadcast %c32_i32_43 : i32 to vector<2x1024xi32>
      %89 = arith.xori %63, %88 : vector<2x1024xi32>
      %90 = arith.cmpi eq, %87, %89 : vector<2x1024xi32>
      %91 = arith.select %90, %85, %86 : vector<2x1024xi1>, vector<2x1024xf32>
      %c0_44 = arith.constant 0 : index
      %c0_45 = arith.constant 0 : index
      %92 = vector.load %arg7[%c0_44, %c0_45] : memref<2x1024xf32, #tpu.memory_space<vmem>>, vector<2x1024xf32>
      tpu.vector_store %arg7[%c0_44, %c0_45], %91 {strides = array<i32>} : memref<2x1024xf32, #tpu.memory_space<vmem>>, vector<2x1024xf32>,
    } else {
    }
    %c1_i32_16 = arith.constant 1 : i32
    %32 = arith.cmpi eq, %0, %c1_i32_16 : i32
    %c0_i32_17 = arith.constant 0 : i32
    %33 = arith.cmpi eq, %1, %c0_i32_17 : i32
    %34 = arith.andi %32, %33 : i1
    %35 = arith.extui %34 : i1 to i32
    %c0_i32_18 = arith.constant 0 : i32
    %36 = arith.cmpi ne, %35, %c0_i32_18 : i32
    scf.if %36 {
      %c0_34 = arith.constant 0 : index
      %c0_35 = arith.constant 0 : index
      %62 = vector.load %arg4[%c0_34, %c0_35] : memref<2x1024xf32, #tpu.memory_space<vmem>>, vector<2x1024xf32>
      %63 = tpu.iota {dimensions = array<i32: 1>} : vector<2x1024xi32>
      %c64_i32 = arith.constant 64 : i32
      %64 = tpu.dynamic_rotate %62 by %c64_i32 dim 1 : vector<2x1024xf32>, i32 -> vector<2x1024xf32>
      %c960_i32 = arith.constant 960 : i32
      %65 = tpu.dynamic_rotate %62 by %c960_i32 dim 1 : vector<2x1024xf32>, i32 -> vector<2x1024xf32>
      %c64_i32_36 = arith.constant 64 : i32
      %66 = tpu.dynamic_rotate %63 by %c64_i32_36 dim 1 : vector<2x1024xi32>, i32 -> vector<2x1024xi32>
      %c64_i32_37 = arith.constant 64 : i32
      %67 = vector.broadcast %c64_i32_37 : i32 to vector<2x1024xi32>
      %68 = arith.xori %63, %67 : vector<2x1024xi32>
      %69 = arith.cmpi eq, %66, %68 : vector<2x1024xi32>
      %70 = arith.select %69, %64, %65 : vector<2x1024xi1>, vector<2x1024xf32>
      %c128_i32 = arith.constant 128 : i32
      %71 = tpu.dynamic_rotate %70 by %c128_i32 dim 1 : vector<2x1024xf32>, i32 -> vector<2x1024xf32>
      %c896_i32 = arith.constant 896 : i32
      %72 = tpu.dynamic_rotate %70 by %c896_i32 dim 1 : vector<2x1024xf32>, i32 -> vector<2x1024xf32>
      %c128_i32_38 = arith.constant 128 : i32
      %73 = tpu.dynamic_rotate %63 by %c128_i32_38 dim 1 : vector<2x1024xi32>, i32 -> vector<2x1024xi32>
      %c128_i32_39 = arith.constant 128 : i32
      %74 = vector.broadcast %c128_i32_39 : i32 to vector<2x1024xi32>
      %75 = arith.xori %63, %74 : vector<2x1024xi32>
      %76 = arith.cmpi eq, %73, %75 : vector<2x1024xi32>
      %77 = arith.select %76, %71, %72 : vector<2x1024xi1>, vector<2x1024xf32>
      %c256_i32 = arith.constant 256 : i32
      %78 = tpu.dynamic_rotate %77 by %c256_i32 dim 1 : vector<2x1024xf32>, i32 -> vector<2x1024xf32>
      %c768_i32 = arith.constant 768 : i32
      %79 = tpu.dynamic_rotate %77 by %c768_i32 dim 1 : vector<2x1024xf32>, i32 -> vector<2x1024xf32>
      %c256_i32_40 = arith.constant 256 : i32
      %80 = tpu.dynamic_rotate %63 by %c256_i32_40 dim 1 : vector<2x1024xi32>, i32 -> vector<2x1024xi32>
      %c256_i32_41 = arith.constant 256 : i32
      %81 = vector.broadcast %c256_i32_41 : i32 to vector<2x1024xi32>
      %82 = arith.xori %63, %81 : vector<2x1024xi32>
      %83 = arith.cmpi eq, %80, %82 : vector<2x1024xi32>
      %84 = arith.select %83, %78, %79 : vector<2x1024xi1>, vector<2x1024xf32>
      %c512_i32 = arith.constant 512 : i32
      %85 = tpu.dynamic_rotate %84 by %c512_i32 dim 1 : vector<2x1024xf32>, i32 -> vector<2x1024xf32>
      %c0_42 = arith.constant 0 : index
      %c0_43 = arith.constant 0 : index
      %86 = vector.load %arg7[%c0_42, %c0_43] : memref<2x1024xf32, #tpu.memory_space<vmem>>, vector<2x1024xf32>
      tpu.vector_store %arg7[%c0_42, %c0_43], %85 {strides = array<i32>} : memref<2x1024xf32, #tpu.memory_space<vmem>>, vector<2x1024xf32>,
    } else {
    }
    %c1_i32_19 = arith.constant 1 : i32
    %37 = arith.cmpi eq, %0, %c1_i32_19 : i32
    %c1_i32_20 = arith.constant 1 : i32
    %38 = arith.cmpi eq, %1, %c1_i32_20 : i32
    %39 = arith.andi %37, %38 : i1
    %40 = arith.extui %39 : i1 to i32
    %c0_i32_21 = arith.constant 0 : i32
    %41 = arith.cmpi ne, %40, %c0_i32_21 : i32
    scf.if %41 {
      %c0_34 = arith.constant 0 : index
      %c0_35 = arith.constant 0 : index
      %62 = vector.load %arg4[%c0_34, %c0_35] : memref<2x1024xf32, #tpu.memory_space<vmem>>, vector<2x1024xf32>
      %63 = tpu.iota {dimensions = array<i32: 1>} : vector<2x1024xi32>
      %c4_i32 = arith.constant 4 : i32
      %64 = tpu.dynamic_rotate %62 by %c4_i32 dim 1 : vector<2x1024xf32>, i32 -> vector<2x1024xf32>
      %c1020_i32 = arith.constant 1020 : i32
      %65 = tpu.dynamic_rotate %62 by %c1020_i32 dim 1 : vector<2x1024xf32>, i32 -> vector<2x1024xf32>
      %c4_i32_36 = arith.constant 4 : i32
      %66 = tpu.dynamic_rotate %63 by %c4_i32_36 dim 1 : vector<2x1024xi32>, i32 -> vector<2x1024xi32>
      %c4_i32_37 = arith.constant 4 : i32
      %67 = vector.broadcast %c4_i32_37 : i32 to vector<2x1024xi32>
      %68 = arith.xori %63, %67 : vector<2x1024xi32>
      %69 = arith.cmpi eq, %66, %68 : vector<2x1024xi32>
      %70 = arith.select %69, %64, %65 : vector<2x1024xi1>, vector<2x1024xf32>
      %c8_i32 = arith.constant 8 : i32
      %71 = tpu.dynamic_rotate %70 by %c8_i32 dim 1 : vector<2x1024xf32>, i32 -> vector<2x1024xf32>
      %c1016_i32 = arith.constant 1016 : i32
      %72 = tpu.dynamic_rotate %70 by %c1016_i32 dim 1 : vector<2x1024xf32>, i32 -> vector<2x1024xf32>
      %c8_i32_38 = arith.constant 8 : i32
      %73 = tpu.dynamic_rotate %63 by %c8_i32_38 dim 1 : vector<2x1024xi32>, i32 -> vector<2x1024xi32>
      %c8_i32_39 = arith.constant 8 : i32
      %74 = vector.broadcast %c8_i32_39 : i32 to vector<2x1024xi32>
      %75 = arith.xori %63, %74 : vector<2x1024xi32>
      %76 = arith.cmpi eq, %73, %75 : vector<2x1024xi32>
      %77 = arith.select %76, %71, %72 : vector<2x1024xi1>, vector<2x1024xf32>
      %c16_i32 = arith.constant 16 : i32
      %78 = tpu.dynamic_rotate %77 by %c16_i32 dim 1 : vector<2x1024xf32>, i32 -> vector<2x1024xf32>
      %c1008_i32 = arith.constant 1008 : i32
      %79 = tpu.dynamic_rotate %77 by %c1008_i32 dim 1 : vector<2x1024xf32>, i32 -> vector<2x1024xf32>
      %c16_i32_40 = arith.constant 16 : i32
      %80 = tpu.dynamic_rotate %63 by %c16_i32_40 dim 1 : vector<2x1024xi32>, i32 -> vector<2x1024xi32>
      %c16_i32_41 = arith.constant 16 : i32
      %81 = vector.broadcast %c16_i32_41 : i32 to vector<2x1024xi32>
      %82 = arith.xori %63, %81 : vector<2x1024xi32>
      %83 = arith.cmpi eq, %80, %82 : vector<2x1024xi32>
      %84 = arith.select %83, %78, %79 : vector<2x1024xi1>, vector<2x1024xf32>
      %c32_i32 = arith.constant 32 : i32
      %85 = tpu.dynamic_rotate %84 by %c32_i32 dim 1 : vector<2x1024xf32>, i32 -> vector<2x1024xf32>
      %c992_i32 = arith.constant 992 : i32
      %86 = tpu.dynamic_rotate %84 by %c992_i32 dim 1 : vector<2x1024xf32>, i32 -> vector<2x1024xf32>
      %c32_i32_42 = arith.constant 32 : i32
      %87 = tpu.dynamic_rotate %63 by %c32_i32_42 dim 1 : vector<2x1024xi32>, i32 -> vector<2x1024xi32>
      %c32_i32_43 = arith.constant 32 : i32
      %88 = vector.broadcast %c32_i32_43 : i32 to vector<2x1024xi32>
      %89 = arith.xori %63, %88 : vector<2x1024xi32>
      %90 = arith.cmpi eq, %87, %89 : vector<2x1024xi32>
      %91 = arith.select %90, %85, %86 : vector<2x1024xi1>, vector<2x1024xf32>
      %c64_i32 = arith.constant 64 : i32
      %92 = tpu.dynamic_rotate %91 by %c64_i32 dim 1 : vector<2x1024xf32>, i32 -> vector<2x1024xf32>
      %c960_i32 = arith.constant 960 : i32
      %93 = tpu.dynamic_rotate %91 by %c960_i32 dim 1 : vector<2x1024xf32>, i32 -> vector<2x1024xf32>
      %c64_i32_44 = arith.constant 64 : i32
      %94 = tpu.dynamic_rotate %63 by %c64_i32_44 dim 1 : vector<2x1024xi32>, i32 -> vector<2x1024xi32>
      %c64_i32_45 = arith.constant 64 : i32
      %95 = vector.broadcast %c64_i32_45 : i32 to vector<2x1024xi32>
      %96 = arith.xori %63, %95 : vector<2x1024xi32>
      %97 = arith.cmpi eq, %94, %96 : vector<2x1024xi32>
      %98 = arith.select %97, %92, %93 : vector<2x1024xi1>, vector<2x1024xf32>
      %c128_i32 = arith.constant 128 : i32
      %99 = tpu.dynamic_rotate %98 by %c128_i32 dim 1 : vector<2x1024xf32>, i32 -> vector<2x1024xf32>
      %c896_i32 = arith.constant 896 : i32
      %100 = tpu.dynamic_rotate %98 by %c896_i32 dim 1 : vector<2x1024xf32>, i32 -> vector<2x1024xf32>
      %c128_i32_46 = arith.constant 128 : i32
      %101 = tpu.dynamic_rotate %63 by %c128_i32_46 dim 1 : vector<2x1024xi32>, i32 -> vector<2x1024xi32>
      %c128_i32_47 = arith.constant 128 : i32
      %102 = vector.broadcast %c128_i32_47 : i32 to vector<2x1024xi32>
      %103 = arith.xori %63, %102 : vector<2x1024xi32>
      %104 = arith.cmpi eq, %101, %103 : vector<2x1024xi32>
      %105 = arith.select %104, %99, %100 : vector<2x1024xi1>, vector<2x1024xf32>
      %c256_i32 = arith.constant 256 : i32
      %106 = tpu.dynamic_rotate %105 by %c256_i32 dim 1 : vector<2x1024xf32>, i32 -> vector<2x1024xf32>
      %c768_i32 = arith.constant 768 : i32
      %107 = tpu.dynamic_rotate %105 by %c768_i32 dim 1 : vector<2x1024xf32>, i32 -> vector<2x1024xf32>
      %c256_i32_48 = arith.constant 256 : i32
      %108 = tpu.dynamic_rotate %63 by %c256_i32_48 dim 1 : vector<2x1024xi32>, i32 -> vector<2x1024xi32>
      %c256_i32_49 = arith.constant 256 : i32
      %109 = vector.broadcast %c256_i32_49 : i32 to vector<2x1024xi32>
      %110 = arith.xori %63, %109 : vector<2x1024xi32>
      %111 = arith.cmpi eq, %108, %110 : vector<2x1024xi32>
      %112 = arith.select %111, %106, %107 : vector<2x1024xi1>, vector<2x1024xf32>
      %c512_i32 = arith.constant 512 : i32
      %113 = tpu.dynamic_rotate %112 by %c512_i32 dim 1 : vector<2x1024xf32>, i32 -> vector<2x1024xf32>
      %c0_50 = arith.constant 0 : index
      %c0_51 = arith.constant 0 : index
      %114 = vector.load %arg7[%c0_50, %c0_51] : memref<2x1024xf32, #tpu.memory_space<vmem>>, vector<2x1024xf32>
      tpu.vector_store %arg7[%c0_50, %c0_51], %113 {strides = array<i32>} : memref<2x1024xf32, #tpu.memory_space<vmem>>, vector<2x1024xf32>,
    } else {
    }
    %c0_i32_22 = arith.constant 0 : i32
    %42 = arith.cmpi eq, %0, %c0_i32_22 : i32
    %c0_i32_23 = arith.constant 0 : i32
    %43 = arith.cmpi eq, %1, %c0_i32_23 : i32
    %44 = arith.andi %42, %43 : i1
    %45 = arith.extui %44 : i1 to i32
    %c0_i32_24 = arith.constant 0 : i32
    %46 = arith.cmpi ne, %45, %c0_i32_24 : i32
    scf.if %46 {
      %c0_34 = arith.constant 0 : index
      %c0_35 = arith.constant 0 : index
      %62 = vector.load %arg5[%c0_34, %c0_35] : memref<2x512xf32, #tpu.memory_space<vmem>>, vector<2x512xf32>
      %c0_36 = arith.constant 0 : index
      %c0_37 = arith.constant 0 : index
      %63 = vector.load %arg8[%c0_36, %c0_37] : memref<2x512xf32, #tpu.memory_space<vmem>>, vector<2x512xf32>
      tpu.vector_store %arg8[%c0_36, %c0_37], %62 {strides = array<i32>} : memref<2x512xf32, #tpu.memory_space<vmem>>, vector<2x512xf32>,
    } else {
    }
    %c0_i32_25 = arith.constant 0 : i32
    %47 = arith.cmpi eq, %0, %c0_i32_25 : i32
    %c1_i32_26 = arith.constant 1 : i32
    %48 = arith.cmpi eq, %1, %c1_i32_26 : i32
    %49 = arith.andi %47, %48 : i1
    %50 = arith.extui %49 : i1 to i32
    %c0_i32_27 = arith.constant 0 : i32
    %51 = arith.cmpi ne, %50, %c0_i32_27 : i32
    scf.if %51 {
      %c0_34 = arith.constant 0 : index
      %c0_35 = arith.constant 0 : index
      %62 = vector.load %arg5[%c0_34, %c0_35] : memref<2x512xf32, #tpu.memory_space<vmem>>, vector<2x512xf32>
      %63 = tpu.iota {dimensions = array<i32: 1>} : vector<2x512xi32>
      %c2_i32 = arith.constant 2 : i32
      %64 = tpu.dynamic_rotate %62 by %c2_i32 dim 1 : vector<2x512xf32>, i32 -> vector<2x512xf32>
      %c510_i32 = arith.constant 510 : i32
      %65 = tpu.dynamic_rotate %62 by %c510_i32 dim 1 : vector<2x512xf32>, i32 -> vector<2x512xf32>
      %c2_i32_36 = arith.constant 2 : i32
      %66 = tpu.dynamic_rotate %63 by %c2_i32_36 dim 1 : vector<2x512xi32>, i32 -> vector<2x512xi32>
      %c2_i32_37 = arith.constant 2 : i32
      %67 = vector.broadcast %c2_i32_37 : i32 to vector<2x512xi32>
      %68 = arith.xori %63, %67 : vector<2x512xi32>
      %69 = arith.cmpi eq, %66, %68 : vector<2x512xi32>
      %70 = arith.select %69, %64, %65 : vector<2x512xi1>, vector<2x512xf32>
      %c4_i32 = arith.constant 4 : i32
      %71 = tpu.dynamic_rotate %70 by %c4_i32 dim 1 : vector<2x512xf32>, i32 -> vector<2x512xf32>
      %c508_i32 = arith.constant 508 : i32
      %72 = tpu.dynamic_rotate %70 by %c508_i32 dim 1 : vector<2x512xf32>, i32 -> vector<2x512xf32>
      %c4_i32_38 = arith.constant 4 : i32
      %73 = tpu.dynamic_rotate %63 by %c4_i32_38 dim 1 : vector<2x512xi32>, i32 -> vector<2x512xi32>
      %c4_i32_39 = arith.constant 4 : i32
      %74 = vector.broadcast %c4_i32_39 : i32 to vector<2x512xi32>
      %75 = arith.xori %63, %74 : vector<2x512xi32>
      %76 = arith.cmpi eq, %73, %75 : vector<2x512xi32>
      %77 = arith.select %76, %71, %72 : vector<2x512xi1>, vector<2x512xf32>
      %c8_i32 = arith.constant 8 : i32
      %78 = tpu.dynamic_rotate %77 by %c8_i32 dim 1 : vector<2x512xf32>, i32 -> vector<2x512xf32>
      %c504_i32 = arith.constant 504 : i32
      %79 = tpu.dynamic_rotate %77 by %c504_i32 dim 1 : vector<2x512xf32>, i32 -> vector<2x512xf32>
      %c8_i32_40 = arith.constant 8 : i32
      %80 = tpu.dynamic_rotate %63 by %c8_i32_40 dim 1 : vector<2x512xi32>, i32 -> vector<2x512xi32>
      %c8_i32_41 = arith.constant 8 : i32
      %81 = vector.broadcast %c8_i32_41 : i32 to vector<2x512xi32>
      %82 = arith.xori %63, %81 : vector<2x512xi32>
      %83 = arith.cmpi eq, %80, %82 : vector<2x512xi32>
      %84 = arith.select %83, %78, %79 : vector<2x512xi1>, vector<2x512xf32>
      %c16_i32 = arith.constant 16 : i32
      %85 = tpu.dynamic_rotate %84 by %c16_i32 dim 1 : vector<2x512xf32>, i32 -> vector<2x512xf32>
      %c496_i32 = arith.constant 496 : i32
      %86 = tpu.dynamic_rotate %84 by %c496_i32 dim 1 : vector<2x512xf32>, i32 -> vector<2x512xf32>
      %c16_i32_42 = arith.constant 16 : i32
      %87 = tpu.dynamic_rotate %63 by %c16_i32_42 dim 1 : vector<2x512xi32>, i32 -> vector<2x512xi32>
      %c16_i32_43 = arith.constant 16 : i32
      %88 = vector.broadcast %c16_i32_43 : i32 to vector<2x512xi32>
      %89 = arith.xori %63, %88 : vector<2x512xi32>
      %90 = arith.cmpi eq, %87, %89 : vector<2x512xi32>
      %91 = arith.select %90, %85, %86 : vector<2x512xi1>, vector<2x512xf32>
      %c0_44 = arith.constant 0 : index
      %c0_45 = arith.constant 0 : index
      %92 = vector.load %arg8[%c0_44, %c0_45] : memref<2x512xf32, #tpu.memory_space<vmem>>, vector<2x512xf32>
      tpu.vector_store %arg8[%c0_44, %c0_45], %91 {strides = array<i32>} : memref<2x512xf32, #tpu.memory_space<vmem>>, vector<2x512xf32>,
    } else {
    }
    %c1_i32_28 = arith.constant 1 : i32
    %52 = arith.cmpi eq, %0, %c1_i32_28 : i32
    %c0_i32_29 = arith.constant 0 : i32
    %53 = arith.cmpi eq, %1, %c0_i32_29 : i32
    %54 = arith.andi %52, %53 : i1
    %55 = arith.extui %54 : i1 to i32
    %c0_i32_30 = arith.constant 0 : i32
    %56 = arith.cmpi ne, %55, %c0_i32_30 : i32
    scf.if %56 {
      %c0_34 = arith.constant 0 : index
      %c0_35 = arith.constant 0 : index
      %62 = vector.load %arg5[%c0_34, %c0_35] : memref<2x512xf32, #tpu.memory_space<vmem>>, vector<2x512xf32>
      %63 = tpu.iota {dimensions = array<i32: 1>} : vector<2x512xi32>
      %c32_i32 = arith.constant 32 : i32
      %64 = tpu.dynamic_rotate %62 by %c32_i32 dim 1 : vector<2x512xf32>, i32 -> vector<2x512xf32>
      %c480_i32 = arith.constant 480 : i32
      %65 = tpu.dynamic_rotate %62 by %c480_i32 dim 1 : vector<2x512xf32>, i32 -> vector<2x512xf32>
      %c32_i32_36 = arith.constant 32 : i32
      %66 = tpu.dynamic_rotate %63 by %c32_i32_36 dim 1 : vector<2x512xi32>, i32 -> vector<2x512xi32>
      %c32_i32_37 = arith.constant 32 : i32
      %67 = vector.broadcast %c32_i32_37 : i32 to vector<2x512xi32>
      %68 = arith.xori %63, %67 : vector<2x512xi32>
      %69 = arith.cmpi eq, %66, %68 : vector<2x512xi32>
      %70 = arith.select %69, %64, %65 : vector<2x512xi1>, vector<2x512xf32>
      %c64_i32 = arith.constant 64 : i32
      %71 = tpu.dynamic_rotate %70 by %c64_i32 dim 1 : vector<2x512xf32>, i32 -> vector<2x512xf32>
      %c448_i32 = arith.constant 448 : i32
      %72 = tpu.dynamic_rotate %70 by %c448_i32 dim 1 : vector<2x512xf32>, i32 -> vector<2x512xf32>
      %c64_i32_38 = arith.constant 64 : i32
      %73 = tpu.dynamic_rotate %63 by %c64_i32_38 dim 1 : vector<2x512xi32>, i32 -> vector<2x512xi32>
      %c64_i32_39 = arith.constant 64 : i32
      %74 = vector.broadcast %c64_i32_39 : i32 to vector<2x512xi32>
      %75 = arith.xori %63, %74 : vector<2x512xi32>
      %76 = arith.cmpi eq, %73, %75 : vector<2x512xi32>
      %77 = arith.select %76, %71, %72 : vector<2x512xi1>, vector<2x512xf32>
      %c128_i32 = arith.constant 128 : i32
      %78 = tpu.dynamic_rotate %77 by %c128_i32 dim 1 : vector<2x512xf32>, i32 -> vector<2x512xf32>
      %c384_i32 = arith.constant 384 : i32
      %79 = tpu.dynamic_rotate %77 by %c384_i32 dim 1 : vector<2x512xf32>, i32 -> vector<2x512xf32>
      %c128_i32_40 = arith.constant 128 : i32
      %80 = tpu.dynamic_rotate %63 by %c128_i32_40 dim 1 : vector<2x512xi32>, i32 -> vector<2x512xi32>
      %c128_i32_41 = arith.constant 128 : i32
      %81 = vector.broadcast %c128_i32_41 : i32 to vector<2x512xi32>
      %82 = arith.xori %63, %81 : vector<2x512xi32>
      %83 = arith.cmpi eq, %80, %82 : vector<2x512xi32>
      %84 = arith.select %83, %78, %79 : vector<2x512xi1>, vector<2x512xf32>
      %c256_i32 = arith.constant 256 : i32
      %85 = tpu.dynamic_rotate %84 by %c256_i32 dim 1 : vector<2x512xf32>, i32 -> vector<2x512xf32>
      %c0_42 = arith.constant 0 : index
      %c0_43 = arith.constant 0 : index
      %86 = vector.load %arg8[%c0_42, %c0_43] : memref<2x512xf32, #tpu.memory_space<vmem>>, vector<2x512xf32>
      tpu.vector_store %arg8[%c0_42, %c0_43], %85 {strides = array<i32>} : memref<2x512xf32, #tpu.memory_space<vmem>>, vector<2x512xf32>,
    } else {
    }
    %c1_i32_31 = arith.constant 1 : i32
    %57 = arith.cmpi eq, %0, %c1_i32_31 : i32
    %c1_i32_32 = arith.constant 1 : i32
    %58 = arith.cmpi eq, %1, %c1_i32_32 : i32
    %59 = arith.andi %57, %58 : i1
    %60 = arith.extui %59 : i1 to i32
    %c0_i32_33 = arith.constant 0 : i32
    %61 = arith.cmpi ne, %60, %c0_i32_33 : i32
    scf.if %61 {
      %c0_34 = arith.constant 0 : index
      %c0_35 = arith.constant 0 : index
      %62 = vector.load %arg5[%c0_34, %c0_35] : memref<2x512xf32, #tpu.memory_space<vmem>>, vector<2x512xf32>
      %63 = tpu.iota {dimensions = array<i32: 1>} : vector<2x512xi32>
      %c2_i32 = arith.constant 2 : i32
      %64 = tpu.dynamic_rotate %62 by %c2_i32 dim 1 : vector<2x512xf32>, i32 -> vector<2x512xf32>
      %c510_i32 = arith.constant 510 : i32
      %65 = tpu.dynamic_rotate %62 by %c510_i32 dim 1 : vector<2x512xf32>, i32 -> vector<2x512xf32>
      %c2_i32_36 = arith.constant 2 : i32
      %66 = tpu.dynamic_rotate %63 by %c2_i32_36 dim 1 : vector<2x512xi32>, i32 -> vector<2x512xi32>
      %c2_i32_37 = arith.constant 2 : i32
      %67 = vector.broadcast %c2_i32_37 : i32 to vector<2x512xi32>
      %68 = arith.xori %63, %67 : vector<2x512xi32>
      %69 = arith.cmpi eq, %66, %68 : vector<2x512xi32>
      %70 = arith.select %69, %64, %65 : vector<2x512xi1>, vector<2x512xf32>
      %c4_i32 = arith.constant 4 : i32
      %71 = tpu.dynamic_rotate %70 by %c4_i32 dim 1 : vector<2x512xf32>, i32 -> vector<2x512xf32>
      %c508_i32 = arith.constant 508 : i32
      %72 = tpu.dynamic_rotate %70 by %c508_i32 dim 1 : vector<2x512xf32>, i32 -> vector<2x512xf32>
      %c4_i32_38 = arith.constant 4 : i32
      %73 = tpu.dynamic_rotate %63 by %c4_i32_38 dim 1 : vector<2x512xi32>, i32 -> vector<2x512xi32>
      %c4_i32_39 = arith.constant 4 : i32
      %74 = vector.broadcast %c4_i32_39 : i32 to vector<2x512xi32>
      %75 = arith.xori %63, %74 : vector<2x512xi32>
      %76 = arith.cmpi eq, %73, %75 : vector<2x512xi32>
      %77 = arith.select %76, %71, %72 : vector<2x512xi1>, vector<2x512xf32>
      %c8_i32 = arith.constant 8 : i32
      %78 = tpu.dynamic_rotate %77 by %c8_i32 dim 1 : vector<2x512xf32>, i32 -> vector<2x512xf32>
      %c504_i32 = arith.constant 504 : i32
      %79 = tpu.dynamic_rotate %77 by %c504_i32 dim 1 : vector<2x512xf32>, i32 -> vector<2x512xf32>
      %c8_i32_40 = arith.constant 8 : i32
      %80 = tpu.dynamic_rotate %63 by %c8_i32_40 dim 1 : vector<2x512xi32>, i32 -> vector<2x512xi32>
      %c8_i32_41 = arith.constant 8 : i32
      %81 = vector.broadcast %c8_i32_41 : i32 to vector<2x512xi32>
      %82 = arith.xori %63, %81 : vector<2x512xi32>
      %83 = arith.cmpi eq, %80, %82 : vector<2x512xi32>
      %84 = arith.select %83, %78, %79 : vector<2x512xi1>, vector<2x512xf32>
      %c16_i32 = arith.constant 16 : i32
      %85 = tpu.dynamic_rotate %84 by %c16_i32 dim 1 : vector<2x512xf32>, i32 -> vector<2x512xf32>
      %c496_i32 = arith.constant 496 : i32
      %86 = tpu.dynamic_rotate %84 by %c496_i32 dim 1 : vector<2x512xf32>, i32 -> vector<2x512xf32>
      %c16_i32_42 = arith.constant 16 : i32
      %87 = tpu.dynamic_rotate %63 by %c16_i32_42 dim 1 : vector<2x512xi32>, i32 -> vector<2x512xi32>
      %c16_i32_43 = arith.constant 16 : i32
      %88 = vector.broadcast %c16_i32_43 : i32 to vector<2x512xi32>
      %89 = arith.xori %63, %88 : vector<2x512xi32>
      %90 = arith.cmpi eq, %87, %89 : vector<2x512xi32>
      %91 = arith.select %90, %85, %86 : vector<2x512xi1>, vector<2x512xf32>
      %c32_i32 = arith.constant 32 : i32
      %92 = tpu.dynamic_rotate %91 by %c32_i32 dim 1 : vector<2x512xf32>, i32 -> vector<2x512xf32>
      %c480_i32 = arith.constant 480 : i32
      %93 = tpu.dynamic_rotate %91 by %c480_i32 dim 1 : vector<2x512xf32>, i32 -> vector<2x512xf32>
      %c32_i32_44 = arith.constant 32 : i32
      %94 = tpu.dynamic_rotate %63 by %c32_i32_44 dim 1 : vector<2x512xi32>, i32 -> vector<2x512xi32>
      %c32_i32_45 = arith.constant 32 : i32
      %95 = vector.broadcast %c32_i32_45 : i32 to vector<2x512xi32>
      %96 = arith.xori %63, %95 : vector<2x512xi32>
      %97 = arith.cmpi eq, %94, %96 : vector<2x512xi32>
      %98 = arith.select %97, %92, %93 : vector<2x512xi1>, vector<2x512xf32>
      %c64_i32 = arith.constant 64 : i32
      %99 = tpu.dynamic_rotate %98 by %c64_i32 dim 1 : vector<2x512xf32>, i32 -> vector<2x512xf32>
      %c448_i32 = arith.constant 448 : i32
      %100 = tpu.dynamic_rotate %98 by %c448_i32 dim 1 : vector<2x512xf32>, i32 -> vector<2x512xf32>
      %c64_i32_46 = arith.constant 64 : i32
      %101 = tpu.dynamic_rotate %63 by %c64_i32_46 dim 1 : vector<2x512xi32>, i32 -> vector<2x512xi32>
      %c64_i32_47 = arith.constant 64 : i32
      %102 = vector.broadcast %c64_i32_47 : i32 to vector<2x512xi32>
      %103 = arith.xori %63, %102 : vector<2x512xi32>
      %104 = arith.cmpi eq, %101, %103 : vector<2x512xi32>
      %105 = arith.select %104, %99, %100 : vector<2x512xi1>, vector<2x512xf32>
      %c128_i32 = arith.constant 128 : i32
      %106 = tpu.dynamic_rotate %105 by %c128_i32 dim 1 : vector<2x512xf32>, i32 -> vector<2x512xf32>
      %c384_i32 = arith.constant 384 : i32
      %107 = tpu.dynamic_rotate %105 by %c384_i32 dim 1 : vector<2x512xf32>, i32 -> vector<2x512xf32>
      %c128_i32_48 = arith.constant 128 : i32
      %108 = tpu.dynamic_rotate %63 by %c128_i32_48 dim 1 : vector<2x512xi32>, i32 -> vector<2x512xi32>
      %c128_i32_49 = arith.constant 128 : i32
      %109 = vector.broadcast %c128_i32_49 : i32 to vector<2x512xi32>
      %110 = arith.xori %63, %109 : vector<2x512xi32>
      %111 = arith.cmpi eq, %108, %110 : vector<2x512xi32>
      %112 = arith.select %111, %106, %107 : vector<2x512xi1>, vector<2x512xf32>
      %c256_i32 = arith.constant 256 : i32
      %113 = tpu.dynamic_rotate %112 by %c256_i32 dim 1 : vector<2x512xf32>, i32 -> vector<2x512xf32>
      %c0_50 = arith.constant 0 : index
      %c0_51 = arith.constant 0 : index
      %114 = vector.load %arg8[%c0_50, %c0_51] : memref<2x512xf32, #tpu.memory_space<vmem>>, vector<2x512xf32>
      tpu.vector_store %arg8[%c0_50, %c0_51], %113 {strides = array<i32>} : memref<2x512xf32, #tpu.memory_space<vmem>>, vector<2x512xf32>,
    } else {
    }
    return
  }
  func.func @transform_0(%arg0: i32, %arg1: i32, %arg2: memref<2xi32, #tpu.memory_space<smem>>) -> (i32, i32) {
    %c0 = arith.constant 0 : index
    %0 = memref.load %arg2[%c0] : memref<2xi32, #tpu.memory_space<smem>>
    %c0_i32 = arith.constant 0 : i32
    %1 = arith.subi %c0_i32, %arg1 : i32
    %2 = arith.muli %0, %1 : i32
    %c1_i32 = arith.constant 1 : i32
    %3 = arith.subi %c1_i32, %0 : i32
    %4 = arith.muli %3, %arg1 : i32
    %5 = arith.addi %2, %4 : i32
    %c0_i32_0 = arith.constant 0 : i32
    return %arg0, %5 : i32, i32
  }
  func.func @transform_1(%arg0: i32, %arg1: i32, %arg2: memref<2xi32, #tpu.memory_space<smem>>) -> (i32, i32) {
    %c0 = arith.constant 0 : index
    %0 = memref.load %arg2[%c0] : memref<2xi32, #tpu.memory_space<smem>>
    %c0_i32 = arith.constant 0 : i32
    %1 = arith.subi %c0_i32, %arg1 : i32
    %2 = arith.muli %0, %1 : i32
    %c1_i32 = arith.constant 1 : i32
    %3 = arith.subi %c1_i32, %0 : i32
    %4 = arith.muli %3, %arg1 : i32
    %5 = arith.addi %2, %4 : i32
    %c0_i32_0 = arith.constant 0 : i32
    return %arg0, %5 : i32, i32
  }
  func.func @transform_2(%arg0: i32, %arg1: i32, %arg2: memref<2xi32, #tpu.memory_space<smem>>) -> (i32, i32) {
    %c0 = arith.constant 0 : index
    %0 = memref.load %arg2[%c0] : memref<2xi32, #tpu.memory_space<smem>>
    %c0_i32 = arith.constant 0 : i32
    %1 = arith.subi %c0_i32, %arg1 : i32
    %2 = arith.muli %0, %1 : i32
    %c1_i32 = arith.constant 1 : i32
    %3 = arith.subi %c1_i32, %0 : i32
    %4 = arith.muli %3, %arg1 : i32
    %5 = arith.addi %2, %4 : i32
    %c0_i32_0 = arith.constant 0 : i32
    return %arg0, %5 : i32, i32
  }
  func.func @transform_3(%arg0: i32, %arg1: i32, %arg2: memref<2xi32, #tpu.memory_space<smem>>) -> (i32, i32) {
    %c0_i32 = arith.constant 0 : i32
    return %arg0, %arg1 : i32, i32
  }
  func.func @transform_4(%arg0: i32, %arg1: i32, %arg2: memref<2xi32, #tpu.memory_space<smem>>) -> (i32, i32) {
    %c0_i32 = arith.constant 0 : i32
    return %arg0, %arg1 : i32, i32
  }
  func.func @transform_5(%arg0: i32, %arg1: i32, %arg2: memref<2xi32, #tpu.memory_space<smem>>) -> (i32, i32) {
    %c0_i32 = arith.constant 0 : i32
    return %arg0, %arg1 : i32, i32
  }
}

</mosaic_0001>

<llo_original>
// kernel: tpu_custom_call.1
$region0: #{tpu_custom_call.1}
  #allocation0 [shape = 'u32[]', space=smem, size = 0x4, offset = 0x4, fixed_abs, tag = 'smem constant byte address 0x4 - core index']
  #allocation1 [shape = 'u32[144,128]{1,0:T(1,128)}', space=vmem, size = 0x12000, scoped, tag = 'internal scratch']
  #allocation2 [shape = 's32[1]{0}', space=sflag, size = 0x4, scoped, tag = 'scoped memory for tpu_custom_call.1']
  #allocation3 [shape = 'u8[512]{0}', space=smem, size = 0x200, scoped, tag = 'prefetched SMEM operand 0']
  %s0 = inlined_call_operand.hbm [shape: s32[2], index: 0, kind: input, shape index: {}]
  %s1 = inlined_call_operand.hbm [shape: f32[2,1024], index: 1, kind: input, shape index: {}]
  %s2 = inlined_call_operand.hbm [shape: f32[2,1024], index: 2, kind: input, shape index: {}]
  %s3 = inlined_call_operand.vmem [shape: f32[2,512], index: 3, kind: input, shape index: {}]
  %s4 = inlined_call_operand.hbm [shape: f32[2,1024], index: 4, kind: output, shape index: {0}]
  %s5 = inlined_call_operand.hbm [shape: f32[2,1024], index: 5, kind: output, shape index: {1}]
  %s6 = inlined_call_operand.hbm [shape: f32[2,512], index: 6, kind: output, shape index: {2}]
  %7 = xla_tuple %s4, %s5, %s6
  %s8 = sld [smem:[#allocation0]]
  $region94: #{tpu_custom_call.1} parent=0
    _
  %s10 = ssub.s32 1, %s8
  %s11 = scalar_select 0, %s10, %s8
  %13 = dma.hbm_to_smem %s0, 16, [#allocation3], [#allocation2]
  %14 = dma.done [#allocation2], 16
  %15 = sfence
  $region1: #{tpu_custom_call.1} parent=0
    #allocation4 [shape = 'u8[8192]{0}', space=vmem, size = 0x2000, scoped, tag = 'input window, operand 1, single buffered']
    #allocation5 [shape = 's32[1]{0}', space=sflag, size = 0x4, scoped, tag = 'scoped memory for tpu_custom_call.1']
    #allocation6 [shape = 's32[1]{0}', space=sflag, size = 0x4, scoped, tag = 'scoped memory for tpu_custom_call.1']
    #allocation7 [shape = 'u8[8192]{0}', space=vmem, size = 0x2000, scoped, tag = 'input window, operand 2, single buffered']
    #allocation8 [shape = 's32[1]{0}', space=sflag, size = 0x4, scoped, tag = 'scoped memory for tpu_custom_call.1']
    #allocation9 [shape = 'u8[8192]{0}', space=vmem, size = 0x2000, scoped, tag = 'output window, operand 0, single buffered']
    #allocation10 [shape = 'u8[8192]{0}', space=vmem, size = 0x2000, scoped, tag = 'output window, operand 1, single buffered']
    #allocation11 [shape = 's32[1]{0}', space=sflag, size = 0x4, scoped, tag = 'scoped memory for tpu_custom_call.1']
    #allocation12 [shape = 'u8[4096]{0}', space=vmem, size = 0x1000, scoped, tag = 'output window, operand 2, single buffered']
    %16 = vsyncpa [#allocation5], 0
    %17 = vsyncpa [#allocation8], 0
    %18 = vsyncpa [#allocation6], 0
    %19 = vsyncpa [#allocation11], 0
    // Predicated region
    $region2: #{tpu_custom_call.1} parent=1 // pred_check
      _
    $region3: #{tpu_custom_call.1} parent=1 // pred_check_branch
      %21 = sbr.rel (0) target = $region5
    $region4: #{tpu_custom_call.1} parent=1 // pred_region
      %s22 = sld [smem:[#allocation3]]
      %s23 = ssub.s32 0, 0
      %s24 = smul.u32 %s22, %s23
      %s25 = ssub.s32 1, %s22
      %s26 = smul.u32 %s25, 0
      %s27 = sadd.s32 %s24, %s26
      %s28 = smul.u32 8, %s27
      %s30 = ssub.s32 256, 256
      %31 = vsyncadd [#allocation5], %s30
      %s32 = smul.addr %s28, 32
      %s33 = scalar_lea.hbm %s1, %s32
      %s35 = sshll.u32 [#allocation4], 4
      %s36 = int_to_ptr.vmem [resolvable:$true] %s35
      %38 = dma.hbm_to_vmem [thread:$0]  %s33, 256, %s36, [#allocation5]
    $region5: #{tpu_custom_call.1} parent=1 // pred_fallthru
      _
    // Predicated region
    $region6: #{tpu_custom_call.1} parent=1 // pred_check
      _
    $region7: #{tpu_custom_call.1} parent=1 // pred_check_branch
      %40 = sbr.rel (0) target = $region9
    $region8: #{tpu_custom_call.1} parent=1 // pred_region
      %s41 = sld [smem:[#allocation3]]
      %s42 = ssub.s32 0, 0
      %s43 = smul.u32 %s41, %s42
      %s44 = ssub.s32 1, %s41
      %s45 = smul.u32 %s44, 0
      %s46 = sadd.s32 %s43, %s45
      %s47 = smul.u32 8, %s46
      %s49 = ssub.s32 256, 256
      %50 = vsyncadd [#allocation8], %s49
      %s51 = smul.addr %s47, 32
      %s52 = scalar_lea.hbm %s2, %s51
      %s54 = sshll.u32 [#allocation7], 4
      %s55 = int_to_ptr.vmem [resolvable:$true] %s54
      %57 = dma.hbm_to_vmem [thread:$0]  %s52, 256, %s55, [#allocation8]
    $region9: #{tpu_custom_call.1} parent=1 // pred_fallthru
      _
    // Predicated region
    $region10: #{tpu_custom_call.1} parent=1 // pred_check
      _
    $region11: #{tpu_custom_call.1} parent=1 // pred_check_branch
      %59 = sbr.rel (0) target = $region13
    $region12: #{tpu_custom_call.1} parent=1 // pred_region
      %s60 = sld [smem:[#allocation3]]
      %s61 = ssub.s32 0, 0
      %s62 = smul.u32 %s60, %s61
      %s63 = ssub.s32 1, %s60
      %s64 = smul.u32 %s63, 0
      %s65 = sadd.s32 %s62, %s64
      %s66 = smul.u32 4, %s65
      %p67 = scmp.lt.s32.totalorder %s66, 3
      %s68 = scalar_select %p67, %s66, 3
      %s69 = smul.addr %s68, 2
      %s70 = scalar_lea.vmem %s3, %s69
      %s71 = sld [smem:[#allocation3]]
      %s72 = ssub.s32 0, 0
      %s73 = smul.u32 %s71, %s72
      %s74 = ssub.s32 1, %s71
      %s75 = smul.u32 %s74, 0
      %s76 = sadd.s32 %s73, %s75
      %s77 = smul.u32 4, %s76
    $region13: #{tpu_custom_call.1} parent=1 // pred_fallthru
      _
    // Predicated region
    $region14: #{tpu_custom_call.1} parent=1 // pred_check
      _
    $region15: #{tpu_custom_call.1} parent=1 // pred_check_branch
      %79 = sbr.rel (0) target = $region17
    $region16: #{tpu_custom_call.1} parent=1 // pred_region
      %80 = dma.done [#allocation5], 256
    $region17: #{tpu_custom_call.1} parent=1 // pred_fallthru
      _
    // Predicated region
    $region18: #{tpu_custom_call.1} parent=1 // pred_check
      _
    $region19: #{tpu_custom_call.1} parent=1 // pred_check_branch
      %82 = sbr.rel (0) target = $region21
    $region20: #{tpu_custom_call.1} parent=1 // pred_region
      %83 = dma.done [#allocation8], 256
    $region21: #{tpu_custom_call.1} parent=1 // pred_fallthru
      _
    %s84 = sld [smem:[#allocation3]]
    %s85 = ssub.s32 0, 0
    %s86 = smul.u32 %s84, %s85
    %s87 = ssub.s32 1, %s84
    %s88 = smul.u32 %s87, 0
    %s89 = sadd.s32 %s86, %s88
    %s90 = smul.u32 4, %s89
    %p91 = scmp.lt.s32.totalorder %s90, 3
    %s92 = scalar_select %p91, %s90, 3
    %s93 = smul.addr %s92, 2
    %s94 = scalar_lea.vmem %s3, %s93
    %s95 = sld [smem:[#allocation3]]
    %s96 = ssub.s32 0, 0
    %s97 = smul.u32 %s95, %s96
    %s98 = ssub.s32 1, %s95
    %s99 = smul.u32 %s98, 0
    %s100 = sadd.s32 %s97, %s99
    %s101 = smul.u32 8, %s100
    %s102 = sld [smem:[#allocation3]]
    %s103 = ssub.s32 0, 0
    %s104 = smul.u32 %s102, %s103
    %s105 = ssub.s32 1, %s102
    %s106 = smul.u32 %s105, 0
    %s107 = sadd.s32 %s104, %s106
    %s108 = smul.u32 8, %s107
    %s109 = sld [smem:[#allocation3]]
    %s110 = ssub.s32 0, 0
    %s111 = smul.u32 %s109, %s110
    %s112 = ssub.s32 1, %s109
    %s113 = smul.u32 %s112, 0
    %s114 = sadd.s32 %s111, %s113
    %s115 = smul.u32 4, %s114
    %p116 = scmp.lt.s32.totalorder %s115, 3
    %s117 = scalar_select %p116, %s115, 3
    %s118 = smul.addr %s117, 2
    %s119 = scalar_lea.vmem %s3, %s118
    %s120 = sld [smem:[#allocation3]]
    %s121 = ssub.s32 0, 0
    %s122 = smul.u32 %s120, %s121
    %s123 = ssub.s32 1, %s120
    %s124 = smul.u32 %s123, 0
    %s125 = sadd.s32 %s122, %s124
    %s126 = smul.u32 4, %s125
    %s127 = sld [smem:[#allocation3]]
    %s128 = sld [smem:[#allocation3 + $0x1]]
    %p129 = scmp.eq.s32.totalorder %s127, 0
    %p130 = scmp.eq.s32.totalorder %s128, 0
    %p131 = pnand %p129, %p130
    %p132 = pneg %p131
    // Predicated region
    $region22: #{tpu_custom_call.1} parent=1 // pred_check
      _
    $region23: #{tpu_custom_call.1} parent=1 // pred_check_branch
      %134 = sbr.rel (%p131) target = $region25
    $region24: #{tpu_custom_call.1} parent=1 // pred_region
      %v135 = vld [vmem:[#allocation4] sm:$0xff]
      %v136 = vld [vmem:[#allocation4 + $0x8] sm:$0xff]
      %137 = vst [vmem:[#allocation9] sm:$0xff] %v135
      %138 = vst [vmem:[#allocation9 + $0x8] sm:$0xff] %v136
    $region25: #{tpu_custom_call.1} parent=1 // pred_fallthru
      _
    %p139 = scmp.eq.s32.totalorder %s128, 1
    %p140 = pnand %p129, %p139
    %p141 = pneg %p140
    // Predicated region
    $region26: #{tpu_custom_call.1} parent=1 // pred_check
      _
    $region27: #{tpu_custom_call.1} parent=1 // pred_check_branch
      %143 = sbr.rel (%p140) target = $region29
    $region28: #{tpu_custom_call.1} parent=1 // pred_region
      %v144 = vld [vmem:[#allocation4] sm:$0xff]
      %v145 = vld [vmem:[#allocation4 + $0x8] sm:$0xff]
      %v146 = vlaneseq
      %v147 = vand.u32 %v146, 127
      %v148 = vadd.s32 %v147, 128
      %v149 = vadd.s32 %v147, 256
      %v150 = vadd.s32 %v147, 384
      %v151 = vadd.s32 %v147, 512
      %v152 = vadd.s32 %v147, 640
      %v153 = vadd.s32 %v147, 768
      %v154 = vadd.s32 %v147, 896
      %v157 = vcombine.high %v144, %v144
      %v159 = vunpack.c.l.s4 1983009808
      %v160 = vunpack.c.0.s8 %v159
      %v161 = vlaneseq
      %v162 = vshrl.u32 %v161, 7
      %v163 = vsub.s32 %v160, %v162
      %v164 = vrot.slane %v144, %v163
      %v166 = vunpack.c.l.s4 1983009808
      %v167 = vunpack.c.0.s8 %v166
      %v168 = vlaneseq
      %v169 = vshrl.u32 %v168, 7
      %v170 = vsub.s32 %v167, %v169
      %v171 = vrot.slane %v157, %v170
      %v172 = vcombine.high %v164, %v164
      %v173 = vcombine.high %v171, %v171
      %v174 = vcombine.high %v145, %v145
      %v176 = vunpack.c.l.s4 1983009808
      %v177 = vunpack.c.0.s8 %v176
      %v178 = vlaneseq
      %v179 = vshrl.u32 %v178, 7
      %v180 = vsub.s32 %v177, %v179
      %v181 = vrot.slane %v145, %v180
      %v183 = vunpack.c.l.s4 1983009808
      %v184 = vunpack.c.0.s8 %v183
      %v185 = vlaneseq
      %v186 = vshrl.u32 %v185, 7
      %v187 = vsub.s32 %v184, %v186
      %v188 = vrot.slane %v174, %v187
      %v189 = vcombine.high %v181, %v181
      %v190 = vcombine.high %v188, %v188
      %199 = vrot.lane.b32.xlu0 %v164, 4
      %v200 = vpop.permute.xlu0 %199
      %201 = vrot.lane.b32.xlu0 %v172, 4
      %v202 = vpop.permute.xlu0 %201
      %203 = vrot.lane.b32.xlu0 %v171, 4
      %v204 = vpop.permute.xlu0 %203
      %205 = vrot.lane.b32.xlu0 %v173, 4
      %v206 = vpop.permute.xlu0 %205
      %207 = vrot.lane.b32.xlu0 %v181, 4
      %v208 = vpop.permute.xlu0 %207
      %209 = vrot.lane.b32.xlu0 %v189, 4
      %v210 = vpop.permute.xlu0 %209
      %211 = vrot.lane.b32.xlu0 %v188, 4
      %v212 = vpop.permute.xlu0 %211
      %213 = vrot.lane.b32.xlu0 %v190, 4
      %v214 = vpop.permute.xlu0 %213
      %vm215 = vcmp.lt.s32.totalorder %v147, 4
      %v216 = vsel %vm215, %v212, %v214
      %v217 = vsel %vm215, %v210, %v212
      %v218 = vsel %vm215, %v208, %v210
      %v219 = vsel %vm215, %v206, %v208
      %v220 = vsel %vm215, %v204, %v206
      %v221 = vsel %vm215, %v202, %v204
      %v222 = vsel %vm215, %v200, %v202
      %v223 = vsel %vm215, %v214, %v200
      %224 = vrot.lane.b32.xlu0 %v164, 124
      %v225 = vpop.permute.xlu0 %224
      %226 = vrot.lane.b32.xlu0 %v172, 124
      %v227 = vpop.permute.xlu0 %226
      %228 = vrot.lane.b32.xlu0 %v171, 124
      %v229 = vpop.permute.xlu0 %228
      %230 = vrot.lane.b32.xlu0 %v173, 124
      %v231 = vpop.permute.xlu0 %230
      %232 = vrot.lane.b32.xlu0 %v181, 124
      %v233 = vpop.permute.xlu0 %232
      %234 = vrot.lane.b32.xlu0 %v189, 124
      %v235 = vpop.permute.xlu0 %234
      %236 = vrot.lane.b32.xlu0 %v188, 124
      %v237 = vpop.permute.xlu0 %236
      %238 = vrot.lane.b32.xlu0 %v190, 124
      %v239 = vpop.permute.xlu0 %238
      %vm240 = vcmp.lt.s32.totalorder %v147, 124
      %v241 = vsel %vm240, %v237, %v239
      %v242 = vsel %vm240, %v235, %v237
      %v243 = vsel %vm240, %v233, %v235
      %v244 = vsel %vm240, %v231, %v233
      %v245 = vsel %vm240, %v229, %v231
      %v246 = vsel %vm240, %v227, %v229
      %v247 = vsel %vm240, %v225, %v227
      %v248 = vsel %vm240, %v239, %v225
      %249 = vrot.lane.b32.xlu0 %v147, 4
      %v250 = vpop.permute.xlu0 %249
      %251 = vrot.lane.b32.xlu0 %v148, 4
      %v252 = vpop.permute.xlu0 %251
      %253 = vrot.lane.b32.xlu0 %v149, 4
      %v254 = vpop.permute.xlu0 %253
      %255 = vrot.lane.b32.xlu0 %v150, 4
      %v256 = vpop.permute.xlu0 %255
      %257 = vrot.lane.b32.xlu0 %v151, 4
      %v258 = vpop.permute.xlu0 %257
      %259 = vrot.lane.b32.xlu0 %v152, 4
      %v260 = vpop.permute.xlu0 %259
      %261 = vrot.lane.b32.xlu0 %v153, 4
      %v262 = vpop.permute.xlu0 %261
      %263 = vrot.lane.b32.xlu0 %v154, 4
      %v264 = vpop.permute.xlu0 %263
      %v265 = vsel %vm215, %v262, %v264
      %v266 = vsel %vm215, %v260, %v262
      %v267 = vsel %vm215, %v258, %v260
      %v268 = vsel %vm215, %v256, %v258
      %v269 = vsel %vm215, %v254, %v256
      %v270 = vsel %vm215, %v252, %v254
      %v271 = vsel %vm215, %v250, %v252
      %v272 = vsel %vm215, %v264, %v250
      %v273 = vxor.u32 %v147, 4
      %v274 = vxor.u32 %v148, 4
      %v275 = vxor.u32 %v149, 4
      %v276 = vxor.u32 %v150, 4
      %v277 = vxor.u32 %v151, 4
      %v278 = vxor.u32 %v152, 4
      %v279 = vxor.u32 %v153, 4
      %v280 = vxor.u32 %v154, 4
      %vm281 = vcmp.eq.s32.totalorder %v272, %v273
      %vm282 = vcmp.eq.s32.totalorder %v271, %v274
      %vm283 = vcmp.eq.s32.totalorder %v270, %v275
      %vm284 = vcmp.eq.s32.totalorder %v269, %v276
      %vm285 = vcmp.eq.s32.totalorder %v268, %v277
      %vm286 = vcmp.eq.s32.totalorder %v267, %v278
      %vm287 = vcmp.eq.s32.totalorder %v266, %v279
      %vm288 = vcmp.eq.s32.totalorder %v265, %v280
      %v289 = vsel %vm281, %v223, %v247
      %v290 = vsel %vm282, %v222, %v246
      %v291 = vsel %vm283, %v221, %v245
      %v292 = vsel %vm284, %v220, %v244
      %v293 = vsel %vm285, %v219, %v243
      %v294 = vsel %vm286, %v218, %v242
      %v295 = vsel %vm287, %v217, %v241
      %v296 = vsel %vm288, %v216, %v248
      %297 = vrot.lane.b32.xlu0 %v289, 8
      %v298 = vpop.permute.xlu0 %297
      %299 = vrot.lane.b32.xlu0 %v290, 8
      %v300 = vpop.permute.xlu0 %299
      %301 = vrot.lane.b32.xlu0 %v291, 8
      %v302 = vpop.permute.xlu0 %301
      %303 = vrot.lane.b32.xlu0 %v292, 8
      %v304 = vpop.permute.xlu0 %303
      %305 = vrot.lane.b32.xlu0 %v293, 8
      %v306 = vpop.permute.xlu0 %305
      %307 = vrot.lane.b32.xlu0 %v294, 8
      %v308 = vpop.permute.xlu0 %307
      %309 = vrot.lane.b32.xlu0 %v295, 8
      %v310 = vpop.permute.xlu0 %309
      %311 = vrot.lane.b32.xlu0 %v296, 8
      %v312 = vpop.permute.xlu0 %311
      %vm313 = vcmp.lt.s32.totalorder %v147, 8
      %v314 = vsel %vm313, %v310, %v312
      %v315 = vsel %vm313, %v308, %v310
      %v316 = vsel %vm313, %v306, %v308
      %v317 = vsel %vm313, %v304, %v306
      %v318 = vsel %vm313, %v302, %v304
      %v319 = vsel %vm313, %v300, %v302
      %v320 = vsel %vm313, %v298, %v300
      %v321 = vsel %vm313, %v312, %v298
      %322 = vrot.lane.b32.xlu0 %v289, 120
      %v323 = vpop.permute.xlu0 %322
      %324 = vrot.lane.b32.xlu0 %v290, 120
      %v325 = vpop.permute.xlu0 %324
      %326 = vrot.lane.b32.xlu0 %v291, 120
      %v327 = vpop.permute.xlu0 %326
      %328 = vrot.lane.b32.xlu0 %v292, 120
      %v329 = vpop.permute.xlu0 %328
      %330 = vrot.lane.b32.xlu0 %v293, 120
      %v331 = vpop.permute.xlu0 %330
      %332 = vrot.lane.b32.xlu0 %v294, 120
      %v333 = vpop.permute.xlu0 %332
      %334 = vrot.lane.b32.xlu0 %v295, 120
      %v335 = vpop.permute.xlu0 %334
      %336 = vrot.lane.b32.xlu0 %v296, 120
      %v337 = vpop.permute.xlu0 %336
      %vm338 = vcmp.lt.s32.totalorder %v147, 120
      %v339 = vsel %vm338, %v335, %v337
      %v340 = vsel %vm338, %v333, %v335
      %v341 = vsel %vm338, %v331, %v333
      %v342 = vsel %vm338, %v329, %v331
      %v343 = vsel %vm338, %v327, %v329
      %v344 = vsel %vm338, %v325, %v327
      %v345 = vsel %vm338, %v323, %v325
      %v346 = vsel %vm338, %v337, %v323
      %347 = vrot.lane.b32.xlu0 %v147, 8
      %v348 = vpop.permute.xlu0 %347
      %349 = vrot.lane.b32.xlu0 %v148, 8
      %v350 = vpop.permute.xlu0 %349
      %351 = vrot.lane.b32.xlu0 %v149, 8
      %v352 = vpop.permute.xlu0 %351
      %353 = vrot.lane.b32.xlu0 %v150, 8
      %v354 = vpop.permute.xlu0 %353
      %355 = vrot.lane.b32.xlu0 %v151, 8
      %v356 = vpop.permute.xlu0 %355
      %357 = vrot.lane.b32.xlu0 %v152, 8
      %v358 = vpop.permute.xlu0 %357
      %359 = vrot.lane.b32.xlu0 %v153, 8
      %v360 = vpop.permute.xlu0 %359
      %361 = vrot.lane.b32.xlu0 %v154, 8
      %v362 = vpop.permute.xlu0 %361
      %v363 = vsel %vm313, %v360, %v362
      %v364 = vsel %vm313, %v358, %v360
      %v365 = vsel %vm313, %v356, %v358
      %v366 = vsel %vm313, %v354, %v356
      %v367 = vsel %vm313, %v352, %v354
      %v368 = vsel %vm313, %v350, %v352
      %v369 = vsel %vm313, %v348, %v350
      %v370 = vsel %vm313, %v362, %v348
      %v371 = vxor.u32 %v147, 8
      %v372 = vxor.u32 %v148, 8
      %v373 = vxor.u32 %v149, 8
      %v374 = vxor.u32 %v150, 8
      %v375 = vxor.u32 %v151, 8
      %v376 = vxor.u32 %v152, 8
      %v377 = vxor.u32 %v153, 8
      %v378 = vxor.u32 %v154, 8
      %vm379 = vcmp.eq.s32.totalorder %v370, %v371
      %vm380 = vcmp.eq.s32.totalorder %v369, %v372
      %vm381 = vcmp.eq.s32.totalorder %v368, %v373
      %vm382 = vcmp.eq.s32.totalorder %v367, %v374
      %vm383 = vcmp.eq.s32.totalorder %v366, %v375
      %vm384 = vcmp.eq.s32.totalorder %v365, %v376
      %vm385 = vcmp.eq.s32.totalorder %v364, %v377
      %vm386 = vcmp.eq.s32.totalorder %v363, %v378
      %v387 = vsel %vm379, %v321, %v345
      %v388 = vsel %vm380, %v320, %v344
      %v389 = vsel %vm381, %v319, %v343
      %v390 = vsel %vm382, %v318, %v342
      %v391 = vsel %vm383, %v317, %v341
      %v392 = vsel %vm384, %v316, %v340
      %v393 = vsel %vm385, %v315, %v339
      %v394 = vsel %vm386, %v314, %v346
      %395 = vrot.lane.b32.xlu0 %v387, 16
      %v396 = vpop.permute.xlu0 %395
      %397 = vrot.lane.b32.xlu0 %v388, 16
      %v398 = vpop.permute.xlu0 %397
      %399 = vrot.lane.b32.xlu0 %v389, 16
      %v400 = vpop.permute.xlu0 %399
      %401 = vrot.lane.b32.xlu0 %v390, 16
      %v402 = vpop.permute.xlu0 %401
      %403 = vrot.lane.b32.xlu0 %v391, 16
      %v404 = vpop.permute.xlu0 %403
      %405 = vrot.lane.b32.xlu0 %v392, 16
      %v406 = vpop.permute.xlu0 %405
      %407 = vrot.lane.b32.xlu0 %v393, 16
      %v408 = vpop.permute.xlu0 %407
      %409 = vrot.lane.b32.xlu0 %v394, 16
      %v410 = vpop.permute.xlu0 %409
      %vm411 = vcmp.lt.s32.totalorder %v147, 16
      %v412 = vsel %vm411, %v408, %v410
      %v413 = vsel %vm411, %v406, %v408
      %v414 = vsel %vm411, %v404, %v406
      %v415 = vsel %vm411, %v402, %v404
      %v416 = vsel %vm411, %v400, %v402
      %v417 = vsel %vm411, %v398, %v400
      %v418 = vsel %vm411, %v396, %v398
      %v419 = vsel %vm411, %v410, %v396
      %420 = vrot.lane.b32.xlu0 %v387, 112
      %v421 = vpop.permute.xlu0 %420
      %422 = vrot.lane.b32.xlu0 %v388, 112
      %v423 = vpop.permute.xlu0 %422
      %424 = vrot.lane.b32.xlu0 %v389, 112
      %v425 = vpop.permute.xlu0 %424
      %426 = vrot.lane.b32.xlu0 %v390, 112
      %v427 = vpop.permute.xlu0 %426
      %428 = vrot.lane.b32.xlu0 %v391, 112
      %v429 = vpop.permute.xlu0 %428
      %430 = vrot.lane.b32.xlu0 %v392, 112
      %v431 = vpop.permute.xlu0 %430
      %432 = vrot.lane.b32.xlu0 %v393, 112
      %v433 = vpop.permute.xlu0 %432
      %434 = vrot.lane.b32.xlu0 %v394, 112
      %v435 = vpop.permute.xlu0 %434
      %vm436 = vcmp.lt.s32.totalorder %v147, 112
      %v437 = vsel %vm436, %v433, %v435
      %v438 = vsel %vm436, %v431, %v433
      %v439 = vsel %vm436, %v429, %v431
      %v440 = vsel %vm436, %v427, %v429
      %v441 = vsel %vm436, %v425, %v427
      %v442 = vsel %vm436, %v423, %v425
      %v443 = vsel %vm436, %v421, %v423
      %v444 = vsel %vm436, %v435, %v421
      %445 = vrot.lane.b32.xlu0 %v147, 16
      %v446 = vpop.permute.xlu0 %445
      %447 = vrot.lane.b32.xlu0 %v148, 16
      %v448 = vpop.permute.xlu0 %447
      %449 = vrot.lane.b32.xlu0 %v149, 16
      %v450 = vpop.permute.xlu0 %449
      %451 = vrot.lane.b32.xlu0 %v150, 16
      %v452 = vpop.permute.xlu0 %451
      %453 = vrot.lane.b32.xlu0 %v151, 16
      %v454 = vpop.permute.xlu0 %453
      %455 = vrot.lane.b32.xlu0 %v152, 16
      %v456 = vpop.permute.xlu0 %455
      %457 = vrot.lane.b32.xlu0 %v153, 16
      %v458 = vpop.permute.xlu0 %457
      %459 = vrot.lane.b32.xlu0 %v154, 16
      %v460 = vpop.permute.xlu0 %459
      %v461 = vsel %vm411, %v458, %v460
      %v462 = vsel %vm411, %v456, %v458
      %v463 = vsel %vm411, %v454, %v456
      %v464 = vsel %vm411, %v452, %v454
      %v465 = vsel %vm411, %v450, %v452
      %v466 = vsel %vm411, %v448, %v450
      %v467 = vsel %vm411, %v446, %v448
      %v468 = vsel %vm411, %v460, %v446
      %v469 = vxor.u32 %v147, 16
      %v470 = vxor.u32 %v148, 16
      %v471 = vxor.u32 %v149, 16
      %v472 = vxor.u32 %v150, 16
      %v473 = vxor.u32 %v151, 16
      %v474 = vxor.u32 %v152, 16
      %v475 = vxor.u32 %v153, 16
      %v476 = vxor.u32 %v154, 16
      %vm477 = vcmp.eq.s32.totalorder %v468, %v469
      %vm478 = vcmp.eq.s32.totalorder %v467, %v470
      %vm479 = vcmp.eq.s32.totalorder %v466, %v471
      %vm480 = vcmp.eq.s32.totalorder %v465, %v472
      %vm481 = vcmp.eq.s32.totalorder %v464, %v473
      %vm482 = vcmp.eq.s32.totalorder %v463, %v474
      %vm483 = vcmp.eq.s32.totalorder %v462, %v475
      %vm484 = vcmp.eq.s32.totalorder %v461, %v476
      %v485 = vsel %vm477, %v419, %v443
      %v486 = vsel %vm478, %v418, %v442
      %v487 = vsel %vm479, %v417, %v441
      %v488 = vsel %vm480, %v416, %v440
      %v489 = vsel %vm481, %v415, %v439
      %v490 = vsel %vm482, %v414, %v438
      %v491 = vsel %vm483, %v413, %v437
      %v492 = vsel %vm484, %v412, %v444
      %493 = vrot.lane.b32.xlu0 %v485, 32
      %v494 = vpop.permute.xlu0 %493
      %495 = vrot.lane.b32.xlu0 %v486, 32
      %v496 = vpop.permute.xlu0 %495
      %497 = vrot.lane.b32.xlu0 %v487, 32
      %v498 = vpop.permute.xlu0 %497
      %499 = vrot.lane.b32.xlu0 %v488, 32
      %v500 = vpop.permute.xlu0 %499
      %501 = vrot.lane.b32.xlu0 %v489, 32
      %v502 = vpop.permute.xlu0 %501
      %503 = vrot.lane.b32.xlu0 %v490, 32
      %v504 = vpop.permute.xlu0 %503
      %505 = vrot.lane.b32.xlu0 %v491, 32
      %v506 = vpop.permute.xlu0 %505
      %507 = vrot.lane.b32.xlu0 %v492, 32
      %v508 = vpop.permute.xlu0 %507
      %vm509 = vcmp.lt.s32.totalorder %v147, 32
      %v510 = vsel %vm509, %v506, %v508
      %v511 = vsel %vm509, %v504, %v506
      %v512 = vsel %vm509, %v502, %v504
      %v513 = vsel %vm509, %v500, %v502
      %v514 = vsel %vm509, %v498, %v500
      %v515 = vsel %vm509, %v496, %v498
      %v516 = vsel %vm509, %v494, %v496
      %v517 = vsel %vm509, %v508, %v494
      %518 = vrot.lane.b32.xlu0 %v485, 96
      %v519 = vpop.permute.xlu0 %518
      %520 = vrot.lane.b32.xlu0 %v486, 96
      %v521 = vpop.permute.xlu0 %520
      %522 = vrot.lane.b32.xlu0 %v487, 96
      %v523 = vpop.permute.xlu0 %522
      %524 = vrot.lane.b32.xlu0 %v488, 96
      %v525 = vpop.permute.xlu0 %524
      %526 = vrot.lane.b32.xlu0 %v489, 96
      %v527 = vpop.permute.xlu0 %526
      %528 = vrot.lane.b32.xlu0 %v490, 96
      %v529 = vpop.permute.xlu0 %528
      %530 = vrot.lane.b32.xlu0 %v491, 96
      %v531 = vpop.permute.xlu0 %530
      %532 = vrot.lane.b32.xlu0 %v492, 96
      %v533 = vpop.permute.xlu0 %532
      %vm534 = vcmp.lt.s32.totalorder %v147, 96
      %v535 = vsel %vm534, %v531, %v533
      %v536 = vsel %vm534, %v529, %v531
      %v537 = vsel %vm534, %v527, %v529
      %v538 = vsel %vm534, %v525, %v527
      %v539 = vsel %vm534, %v523, %v525
      %v540 = vsel %vm534, %v521, %v523
      %v541 = vsel %vm534, %v519, %v521
      %v542 = vsel %vm534, %v533, %v519
      %543 = vrot.lane.b32.xlu0 %v147, 32
      %v544 = vpop.permute.xlu0 %543
      %545 = vrot.lane.b32.xlu0 %v148, 32
      %v546 = vpop.permute.xlu0 %545
      %547 = vrot.lane.b32.xlu0 %v149, 32
      %v548 = vpop.permute.xlu0 %547
      %549 = vrot.lane.b32.xlu0 %v150, 32
      %v550 = vpop.permute.xlu0 %549
      %551 = vrot.lane.b32.xlu0 %v151, 32
      %v552 = vpop.permute.xlu0 %551
      %553 = vrot.lane.b32.xlu0 %v152, 32
      %v554 = vpop.permute.xlu0 %553
      %555 = vrot.lane.b32.xlu0 %v153, 32
      %v556 = vpop.permute.xlu0 %555
      %557 = vrot.lane.b32.xlu0 %v154, 32
      %v558 = vpop.permute.xlu0 %557
      %v559 = vsel %vm509, %v556, %v558
      %v560 = vsel %vm509, %v554, %v556
      %v561 = vsel %vm509, %v552, %v554
      %v562 = vsel %vm509, %v550, %v552
      %v563 = vsel %vm509, %v548, %v550
      %v564 = vsel %vm509, %v546, %v548
      %v565 = vsel %vm509, %v544, %v546
      %v566 = vsel %vm509, %v558, %v544
      %v567 = vxor.u32 %v147, 32
      %v568 = vxor.u32 %v148, 32
      %v569 = vxor.u32 %v149, 32
      %v570 = vxor.u32 %v150, 32
      %v571 = vxor.u32 %v151, 32
      %v572 = vxor.u32 %v152, 32
      %v573 = vxor.u32 %v153, 32
      %v574 = vxor.u32 %v154, 32
      %vm575 = vcmp.eq.s32.totalorder %v566, %v567
      %vm576 = vcmp.eq.s32.totalorder %v565, %v568
      %vm577 = vcmp.eq.s32.totalorder %v564, %v569
      %vm578 = vcmp.eq.s32.totalorder %v563, %v570
      %vm579 = vcmp.eq.s32.totalorder %v562, %v571
      %vm580 = vcmp.eq.s32.totalorder %v561, %v572
      %vm581 = vcmp.eq.s32.totalorder %v560, %v573
      %vm582 = vcmp.eq.s32.totalorder %v559, %v574
      %v583 = vsel %vm575, %v517, %v541
      %v584 = vsel %vm576, %v516, %v540
      %v585 = vsel %vm577, %v515, %v539
      %v586 = vsel %vm578, %v514, %v538
      %v587 = vsel %vm579, %v513, %v537
      %v588 = vsel %vm580, %v512, %v536
      %v589 = vsel %vm581, %v511, %v535
      %v590 = vsel %vm582, %v510, %v542
      %v599 = vcombine.low %v583, %v584
      %v600 = vcombine.low %v585, %v586
      %v602 = vunpack.c.l.s4 1983009808
      %v603 = vunpack.c.0.s8 %v602
      %v604 = vlaneseq
      %v605 = vshrl.u32 %v604, 7
      %v606 = vsub.s32 %v603, %v605
      %v607 = vrot.slane %v599, %v606
      %v609 = vunpack.c.l.s4 1983009808
      %v610 = vunpack.c.0.s8 %v609
      %v611 = vlaneseq
      %v612 = vshrl.u32 %v611, 7
      %v613 = vsub.s32 %v610, %v612
      %v614 = vrot.slane %v600, %v613
      %v615 = vcombine.low %v607, %v614
      %v616 = vcombine.low %v587, %v588
      %v617 = vcombine.low %v589, %v590
      %v619 = vunpack.c.l.s4 1983009808
      %v620 = vunpack.c.0.s8 %v619
      %v621 = vlaneseq
      %v622 = vshrl.u32 %v621, 7
      %v623 = vsub.s32 %v620, %v622
      %v624 = vrot.slane %v616, %v623
      %v626 = vunpack.c.l.s4 1983009808
      %v627 = vunpack.c.0.s8 %v626
      %v628 = vlaneseq
      %v629 = vshrl.u32 %v628, 7
      %v630 = vsub.s32 %v627, %v629
      %v631 = vrot.slane %v617, %v630
      %v632 = vcombine.low %v624, %v631
      %635 = vst [vmem:[#allocation9] sm:$0xff] %v615
      %636 = vst [vmem:[#allocation9 + $0x8] sm:$0xff] %v632
    $region29: #{tpu_custom_call.1} parent=1 // pred_fallthru
      _
    %p637 = scmp.eq.s32.totalorder %s127, 1
    %p638 = pnand %p637, %p130
    %p639 = pneg %p638
    // Predicated region
    $region30: #{tpu_custom_call.1} parent=1 // pred_check
      _
    $region31: #{tpu_custom_call.1} parent=1 // pred_check_branch
      %641 = sbr.rel (%p638) target = $region33
    $region32: #{tpu_custom_call.1} parent=1 // pred_region
      %v642 = vld [vmem:[#allocation4] sm:$0xff]
      %v643 = vld [vmem:[#allocation4 + $0x8] sm:$0xff]
      %v644 = vlaneseq
      %v645 = vand.u32 %v644, 127
      %v646 = vadd.s32 %v645, 128
      %v647 = vadd.s32 %v645, 256
      %v648 = vadd.s32 %v645, 384
      %v649 = vadd.s32 %v645, 512
      %v650 = vadd.s32 %v645, 640
      %v651 = vadd.s32 %v645, 768
      %v652 = vadd.s32 %v645, 896
      %v655 = vcombine.high %v642, %v642
      %v657 = vunpack.c.l.s4 1983009808
      %v658 = vunpack.c.0.s8 %v657
      %v659 = vlaneseq
      %v660 = vshrl.u32 %v659, 7
      %v661 = vsub.s32 %v658, %v660
      %v662 = vrot.slane %v642, %v661
      %v664 = vunpack.c.l.s4 1983009808
      %v665 = vunpack.c.0.s8 %v664
      %v666 = vlaneseq
      %v667 = vshrl.u32 %v666, 7
      %v668 = vsub.s32 %v665, %v667
      %v669 = vrot.slane %v655, %v668
      %v670 = vcombine.high %v662, %v662
      %v671 = vcombine.high %v669, %v669
      %v672 = vcombine.high %v643, %v643
      %v674 = vunpack.c.l.s4 1983009808
      %v675 = vunpack.c.0.s8 %v674
      %v676 = vlaneseq
      %v677 = vshrl.u32 %v676, 7
      %v678 = vsub.s32 %v675, %v677
      %v679 = vrot.slane %v643, %v678
      %v681 = vunpack.c.l.s4 1983009808
      %v682 = vunpack.c.0.s8 %v681
      %v683 = vlaneseq
      %v684 = vshrl.u32 %v683, 7
      %v685 = vsub.s32 %v682, %v684
      %v686 = vrot.slane %v672, %v685
      %v687 = vcombine.high %v679, %v679
      %v688 = vcombine.high %v686, %v686
      %697 = vrot.lane.b32.xlu0 %v662, 64
      %v698 = vpop.permute.xlu0 %697
      %699 = vrot.lane.b32.xlu0 %v670, 64
      %v700 = vpop.permute.xlu0 %699
      %701 = vrot.lane.b32.xlu0 %v669, 64
      %v702 = vpop.permute.xlu0 %701
      %703 = vrot.lane.b32.xlu0 %v671, 64
      %v704 = vpop.permute.xlu0 %703
      %705 = vrot.lane.b32.xlu0 %v679, 64
      %v706 = vpop.permute.xlu0 %705
      %707 = vrot.lane.b32.xlu0 %v687, 64
      %v708 = vpop.permute.xlu0 %707
      %709 = vrot.lane.b32.xlu0 %v686, 64
      %v710 = vpop.permute.xlu0 %709
      %711 = vrot.lane.b32.xlu0 %v688, 64
      %v712 = vpop.permute.xlu0 %711
      %vm713 = vcmp.lt.s32.totalorder %v645, 64
      %v714 = vsel %vm713, %v710, %v712
      %v715 = vsel %vm713, %v708, %v710
      %v716 = vsel %vm713, %v706, %v708
      %v717 = vsel %vm713, %v704, %v706
      %v718 = vsel %vm713, %v702, %v704
      %v719 = vsel %vm713, %v700, %v702
      %v720 = vsel %vm713, %v698, %v700
      %v721 = vsel %vm713, %v712, %v698
      %722 = vrot.lane.b32.xlu0 %v645, 64
      %v723 = vpop.permute.xlu0 %722
      %724 = vrot.lane.b32.xlu0 %v646, 64
      %v725 = vpop.permute.xlu0 %724
      %726 = vrot.lane.b32.xlu0 %v647, 64
      %v727 = vpop.permute.xlu0 %726
      %728 = vrot.lane.b32.xlu0 %v648, 64
      %v729 = vpop.permute.xlu0 %728
      %730 = vrot.lane.b32.xlu0 %v649, 64
      %v731 = vpop.permute.xlu0 %730
      %732 = vrot.lane.b32.xlu0 %v650, 64
      %v733 = vpop.permute.xlu0 %732
      %734 = vrot.lane.b32.xlu0 %v651, 64
      %v735 = vpop.permute.xlu0 %734
      %736 = vrot.lane.b32.xlu0 %v652, 64
      %v737 = vpop.permute.xlu0 %736
      %v738 = vsel %vm713, %v735, %v737
      %v739 = vsel %vm713, %v733, %v735
      %v740 = vsel %vm713, %v731, %v733
      %v741 = vsel %vm713, %v729, %v731
      %v742 = vsel %vm713, %v727, %v729
      %v743 = vsel %vm713, %v725, %v727
      %v744 = vsel %vm713, %v723, %v725
      %v745 = vsel %vm713, %v737, %v723
      %v746 = vxor.u32 %v645, 64
      %v747 = vxor.u32 %v646, 64
      %v748 = vxor.u32 %v647, 64
      %v749 = vxor.u32 %v648, 64
      %v750 = vxor.u32 %v649, 64
      %v751 = vxor.u32 %v650, 64
      %v752 = vxor.u32 %v651, 64
      %v753 = vxor.u32 %v652, 64
      %vm754 = vcmp.eq.s32.totalorder %v745, %v746
      %vm755 = vcmp.eq.s32.totalorder %v744, %v747
      %vm756 = vcmp.eq.s32.totalorder %v743, %v748
      %vm757 = vcmp.eq.s32.totalorder %v742, %v749
      %vm758 = vcmp.eq.s32.totalorder %v741, %v750
      %vm759 = vcmp.eq.s32.totalorder %v740, %v751
      %vm760 = vcmp.eq.s32.totalorder %v739, %v752
      %vm761 = vcmp.eq.s32.totalorder %v738, %v753
      %v762 = vsel %vm754, %v721, %v720
      %v763 = vsel %vm755, %v720, %v719
      %v764 = vsel %vm756, %v719, %v718
      %v765 = vsel %vm757, %v718, %v717
      %v766 = vsel %vm758, %v717, %v716
      %v767 = vsel %vm759, %v716, %v715
      %v768 = vsel %vm760, %v715, %v714
      %v769 = vsel %vm761, %v714, %v721
      %v770 = vxor.u32 %v645, 128
      %v771 = vxor.u32 %v646, 128
      %v772 = vxor.u32 %v647, 128
      %v773 = vxor.u32 %v648, 128
      %v774 = vxor.u32 %v649, 128
      %v775 = vxor.u32 %v650, 128
      %v776 = vxor.u32 %v651, 128
      %v777 = vxor.u32 %v652, 128
      %vm778 = vcmp.eq.s32.totalorder %v652, %v770
      %vm779 = vcmp.eq.s32.totalorder %v645, %v771
      %vm780 = vcmp.eq.s32.totalorder %v646, %v772
      %vm781 = vcmp.eq.s32.totalorder %v647, %v773
      %vm782 = vcmp.eq.s32.totalorder %v648, %v774
      %vm783 = vcmp.eq.s32.totalorder %v649, %v775
      %vm784 = vcmp.eq.s32.totalorder %v650, %v776
      %vm785 = vcmp.eq.s32.totalorder %v651, %v777
      %v786 = vsel %vm778, %v769, %v763
      %v787 = vsel %vm779, %v762, %v764
      %v788 = vsel %vm780, %v763, %v765
      %v789 = vsel %vm781, %v764, %v766
      %v790 = vsel %vm782, %v765, %v767
      %v791 = vsel %vm783, %v766, %v768
      %v792 = vsel %vm784, %v767, %v769
      %v793 = vsel %vm785, %v768, %v762
      %v794 = vxor.u32 %v645, 256
      %v795 = vxor.u32 %v646, 256
      %v796 = vxor.u32 %v647, 256
      %v797 = vxor.u32 %v648, 256
      %v798 = vxor.u32 %v649, 256
      %v799 = vxor.u32 %v650, 256
      %v800 = vxor.u32 %v651, 256
      %v801 = vxor.u32 %v652, 256
      %vm802 = vcmp.eq.s32.totalorder %v651, %v794
      %vm803 = vcmp.eq.s32.totalorder %v652, %v795
      %vm804 = vcmp.eq.s32.totalorder %v645, %v796
      %vm805 = vcmp.eq.s32.totalorder %v646, %v797
      %vm806 = vcmp.eq.s32.totalorder %v647, %v798
      %vm807 = vcmp.eq.s32.totalorder %v648, %v799
      %vm808 = vcmp.eq.s32.totalorder %v649, %v800
      %vm809 = vcmp.eq.s32.totalorder %v650, %v801
      %v810 = vsel %vm802, %v792, %v788
      %v811 = vsel %vm803, %v793, %v789
      %v812 = vsel %vm804, %v786, %v790
      %v813 = vsel %vm805, %v787, %v791
      %v814 = vsel %vm806, %v788, %v792
      %v815 = vsel %vm807, %v789, %v793
      %v816 = vsel %vm808, %v790, %v786
      %v817 = vsel %vm809, %v791, %v787
      %v826 = vcombine.low %v814, %v815
      %v827 = vcombine.low %v816, %v817
      %v829 = vunpack.c.l.s4 1983009808
      %v830 = vunpack.c.0.s8 %v829
      %v831 = vlaneseq
      %v832 = vshrl.u32 %v831, 7
      %v833 = vsub.s32 %v830, %v832
      %v834 = vrot.slane %v826, %v833
      %v836 = vunpack.c.l.s4 1983009808
      %v837 = vunpack.c.0.s8 %v836
      %v838 = vlaneseq
      %v839 = vshrl.u32 %v838, 7
      %v840 = vsub.s32 %v837, %v839
      %v841 = vrot.slane %v827, %v840
      %v842 = vcombine.low %v834, %v841
      %v843 = vcombine.low %v810, %v811
      %v844 = vcombine.low %v812, %v813
      %v846 = vunpack.c.l.s4 1983009808
      %v847 = vunpack.c.0.s8 %v846
      %v848 = vlaneseq
      %v849 = vshrl.u32 %v848, 7
      %v850 = vsub.s32 %v847, %v849
      %v851 = vrot.slane %v843, %v850
      %v853 = vunpack.c.l.s4 1983009808
      %v854 = vunpack.c.0.s8 %v853
      %v855 = vlaneseq
      %v856 = vshrl.u32 %v855, 7
      %v857 = vsub.s32 %v854, %v856
      %v858 = vrot.slane %v844, %v857
      %v859 = vcombine.low %v851, %v858
      %862 = vst [vmem:[#allocation9] sm:$0xff] %v842
      %863 = vst [vmem:[#allocation9 + $0x8] sm:$0xff] %v859
    $region33: #{tpu_custom_call.1} parent=1 // pred_fallthru
      _
    %p864 = pnand %p637, %p139
    %p865 = pneg %p864
    // Predicated region
    $region34: #{tpu_custom_call.1} parent=1 // pred_check
      _
    $region35: #{tpu_custom_call.1} parent=1 // pred_check_branch
      %867 = sbr.rel (%p864) target = $region37
    $region36: #{tpu_custom_call.1} parent=1 // pred_region
      %v868 = vld [vmem:[#allocation4] sm:$0xff]
      %v869 = vld [vmem:[#allocation4 + $0x8] sm:$0xff]
      %v870 = vlaneseq
      %v871 = vand.u32 %v870, 127
      %v872 = vadd.s32 %v871, 128
      %v873 = vadd.s32 %v871, 256
      %v874 = vadd.s32 %v871, 384
      %v875 = vadd.s32 %v871, 512
      %v876 = vadd.s32 %v871, 640
      %v877 = vadd.s32 %v871, 768
      %v878 = vadd.s32 %v871, 896
      %v881 = vcombine.high %v868, %v868
      %v883 = vunpack.c.l.s4 1983009808
      %v884 = vunpack.c.0.s8 %v883
      %v885 = vlaneseq
      %v886 = vshrl.u32 %v885, 7
      %v887 = vsub.s32 %v884, %v886
      %v888 = vrot.slane %v868, %v887
      %v890 = vunpack.c.l.s4 1983009808
      %v891 = vunpack.c.0.s8 %v890
      %v892 = vlaneseq
      %v893 = vshrl.u32 %v892, 7
      %v894 = vsub.s32 %v891, %v893
      %v895 = vrot.slane %v881, %v894
      %v896 = vcombine.high %v888, %v888
      %v897 = vcombine.high %v895, %v895
      %v898 = vcombine.high %v869, %v869
      %v900 = vunpack.c.l.s4 1983009808
      %v901 = vunpack.c.0.s8 %v900
      %v902 = vlaneseq
      %v903 = vshrl.u32 %v902, 7
      %v904 = vsub.s32 %v901, %v903
      %v905 = vrot.slane %v869, %v904
      %v907 = vunpack.c.l.s4 1983009808
      %v908 = vunpack.c.0.s8 %v907
      %v909 = vlaneseq
      %v910 = vshrl.u32 %v909, 7
      %v911 = vsub.s32 %v908, %v910
      %v912 = vrot.slane %v898, %v911
      %v913 = vcombine.high %v905, %v905
      %v914 = vcombine.high %v912, %v912
      %923 = vrot.lane.b32.xlu0 %v888, 4
      %v924 = vpop.permute.xlu0 %923
      %925 = vrot.lane.b32.xlu0 %v896, 4
      %v926 = vpop.permute.xlu0 %925
      %927 = vrot.lane.b32.xlu0 %v895, 4
      %v928 = vpop.permute.xlu0 %927
      %929 = vrot.lane.b32.xlu0 %v897, 4
      %v930 = vpop.permute.xlu0 %929
      %931 = vrot.lane.b32.xlu0 %v905, 4
      %v932 = vpop.permute.xlu0 %931
      %933 = vrot.lane.b32.xlu0 %v913, 4
      %v934 = vpop.permute.xlu0 %933
      %935 = vrot.lane.b32.xlu0 %v912, 4
      %v936 = vpop.permute.xlu0 %935
      %937 = vrot.lane.b32.xlu0 %v914, 4
      %v938 = vpop.permute.xlu0 %937
      %vm939 = vcmp.lt.s32.totalorder %v871, 4
      %v940 = vsel %vm939, %v936, %v938
      %v941 = vsel %vm939, %v934, %v936
      %v942 = vsel %vm939, %v932, %v934
      %v943 = vsel %vm939, %v930, %v932
      %v944 = vsel %vm939, %v928, %v930
      %v945 = vsel %vm939, %v926, %v928
      %v946 = vsel %vm939, %v924, %v926
      %v947 = vsel %vm939, %v938, %v924
      %948 = vrot.lane.b32.xlu0 %v888, 124
      %v949 = vpop.permute.xlu0 %948
      %950 = vrot.lane.b32.xlu0 %v896, 124
      %v951 = vpop.permute.xlu0 %950
      %952 = vrot.lane.b32.xlu0 %v895, 124
      %v953 = vpop.permute.xlu0 %952
      %954 = vrot.lane.b32.xlu0 %v897, 124
      %v955 = vpop.permute.xlu0 %954
      %956 = vrot.lane.b32.xlu0 %v905, 124
      %v957 = vpop.permute.xlu0 %956
      %958 = vrot.lane.b32.xlu0 %v913, 124
      %v959 = vpop.permute.xlu0 %958
      %960 = vrot.lane.b32.xlu0 %v912, 124
      %v961 = vpop.permute.xlu0 %960
      %962 = vrot.lane.b32.xlu0 %v914, 124
      %v963 = vpop.permute.xlu0 %962
      %vm964 = vcmp.lt.s32.totalorder %v871, 124
      %v965 = vsel %vm964, %v961, %v963
      %v966 = vsel %vm964, %v959, %v961
      %v967 = vsel %vm964, %v957, %v959
      %v968 = vsel %vm964, %v955, %v957
      %v969 = vsel %vm964, %v953, %v955
      %v970 = vsel %vm964, %v951, %v953
      %v971 = vsel %vm964, %v949, %v951
      %v972 = vsel %vm964, %v963, %v949
      %973 = vrot.lane.b32.xlu0 %v871, 4
      %v974 = vpop.permute.xlu0 %973
      %975 = vrot.lane.b32.xlu0 %v872, 4
      %v976 = vpop.permute.xlu0 %975
      %977 = vrot.lane.b32.xlu0 %v873, 4
      %v978 = vpop.permute.xlu0 %977
      %979 = vrot.lane.b32.xlu0 %v874, 4
      %v980 = vpop.permute.xlu0 %979
      %981 = vrot.lane.b32.xlu0 %v875, 4
      %v982 = vpop.permute.xlu0 %981
      %983 = vrot.lane.b32.xlu0 %v876, 4
      %v984 = vpop.permute.xlu0 %983
      %985 = vrot.lane.b32.xlu0 %v877, 4
      %v986 = vpop.permute.xlu0 %985
      %987 = vrot.lane.b32.xlu0 %v878, 4
      %v988 = vpop.permute.xlu0 %987
      %v989 = vsel %vm939, %v986, %v988
      %v990 = vsel %vm939, %v984, %v986
      %v991 = vsel %vm939, %v982, %v984
      %v992 = vsel %vm939, %v980, %v982
      %v993 = vsel %vm939, %v978, %v980
      %v994 = vsel %vm939, %v976, %v978
      %v995 = vsel %vm939, %v974, %v976
      %v996 = vsel %vm939, %v988, %v974
      %v997 = vxor.u32 %v871, 4
      %v998 = vxor.u32 %v872, 4
      %v999 = vxor.u32 %v873, 4
      %v1000 = vxor.u32 %v874, 4
      %v1001 = vxor.u32 %v875, 4
      %v1002 = vxor.u32 %v876, 4
      %v1003 = vxor.u32 %v877, 4
      %v1004 = vxor.u32 %v878, 4
      %vm1005 = vcmp.eq.s32.totalorder %v996, %v997
      %vm1006 = vcmp.eq.s32.totalorder %v995, %v998
      %vm1007 = vcmp.eq.s32.totalorder %v994, %v999
      %vm1008 = vcmp.eq.s32.totalorder %v993, %v1000
      %vm1009 = vcmp.eq.s32.totalorder %v992, %v1001
      %vm1010 = vcmp.eq.s32.totalorder %v991, %v1002
      %vm1011 = vcmp.eq.s32.totalorder %v990, %v1003
      %vm1012 = vcmp.eq.s32.totalorder %v989, %v1004
      %v1013 = vsel %vm1005, %v947, %v971
      %v1014 = vsel %vm1006, %v946, %v970
      %v1015 = vsel %vm1007, %v945, %v969
      %v1016 = vsel %vm1008, %v944, %v968
      %v1017 = vsel %vm1009, %v943, %v967
      %v1018 = vsel %vm1010, %v942, %v966
      %v1019 = vsel %vm1011, %v941, %v965
      %v1020 = vsel %vm1012, %v940, %v972
      %1021 = vrot.lane.b32.xlu0 %v1013, 8
      %v1022 = vpop.permute.xlu0 %1021
      %1023 = vrot.lane.b32.xlu0 %v1014, 8
      %v1024 = vpop.permute.xlu0 %1023
      %1025 = vrot.lane.b32.xlu0 %v1015, 8
      %v1026 = vpop.permute.xlu0 %1025
      %1027 = vrot.lane.b32.xlu0 %v1016, 8
      %v1028 = vpop.permute.xlu0 %1027
      %1029 = vrot.lane.b32.xlu0 %v1017, 8
      %v1030 = vpop.permute.xlu0 %1029
      %1031 = vrot.lane.b32.xlu0 %v1018, 8
      %v1032 = vpop.permute.xlu0 %1031
      %1033 = vrot.lane.b32.xlu0 %v1019, 8
      %v1034 = vpop.permute.xlu0 %1033
      %1035 = vrot.lane.b32.xlu0 %v1020, 8
      %v1036 = vpop.permute.xlu0 %1035
      %vm1037 = vcmp.lt.s32.totalorder %v871, 8
      %v1038 = vsel %vm1037, %v1034, %v1036
      %v1039 = vsel %vm1037, %v1032, %v1034
      %v1040 = vsel %vm1037, %v1030, %v1032
      %v1041 = vsel %vm1037, %v1028, %v1030
      %v1042 = vsel %vm1037, %v1026, %v1028
      %v1043 = vsel %vm1037, %v1024, %v1026
      %v1044 = vsel %vm1037, %v1022, %v1024
      %v1045 = vsel %vm1037, %v1036, %v1022
      %1046 = vrot.lane.b32.xlu0 %v1013, 120
      %v1047 = vpop.permute.xlu0 %1046
      %1048 = vrot.lane.b32.xlu0 %v1014, 120
      %v1049 = vpop.permute.xlu0 %1048
      %1050 = vrot.lane.b32.xlu0 %v1015, 120
      %v1051 = vpop.permute.xlu0 %1050
      %1052 = vrot.lane.b32.xlu0 %v1016, 120
      %v1053 = vpop.permute.xlu0 %1052
      %1054 = vrot.lane.b32.xlu0 %v1017, 120
      %v1055 = vpop.permute.xlu0 %1054
      %1056 = vrot.lane.b32.xlu0 %v1018, 120
      %v1057 = vpop.permute.xlu0 %1056
      %1058 = vrot.lane.b32.xlu0 %v1019, 120
      %v1059 = vpop.permute.xlu0 %1058
      %1060 = vrot.lane.b32.xlu0 %v1020, 120
      %v1061 = vpop.permute.xlu0 %1060
      %vm1062 = vcmp.lt.s32.totalorder %v871, 120
      %v1063 = vsel %vm1062, %v1059, %v1061
      %v1064 = vsel %vm1062, %v1057, %v1059
      %v1065 = vsel %vm1062, %v1055, %v1057
      %v1066 = vsel %vm1062, %v1053, %v1055
      %v1067 = vsel %vm1062, %v1051, %v1053
      %v1068 = vsel %vm1062, %v1049, %v1051
      %v1069 = vsel %vm1062, %v1047, %v1049
      %v1070 = vsel %vm1062, %v1061, %v1047
      %1071 = vrot.lane.b32.xlu0 %v871, 8
      %v1072 = vpop.permute.xlu0 %1071
      %1073 = vrot.lane.b32.xlu0 %v872, 8
      %v1074 = vpop.permute.xlu0 %1073
      %1075 = vrot.lane.b32.xlu0 %v873, 8
      %v1076 = vpop.permute.xlu0 %1075
      %1077 = vrot.lane.b32.xlu0 %v874, 8
      %v1078 = vpop.permute.xlu0 %1077
      %1079 = vrot.lane.b32.xlu0 %v875, 8
      %v1080 = vpop.permute.xlu0 %1079
      %1081 = vrot.lane.b32.xlu0 %v876, 8
      %v1082 = vpop.permute.xlu0 %1081
      %1083 = vrot.lane.b32.xlu0 %v877, 8
      %v1084 = vpop.permute.xlu0 %1083
      %1085 = vrot.lane.b32.xlu0 %v878, 8
      %v1086 = vpop.permute.xlu0 %1085
      %v1087 = vsel %vm1037, %v1084, %v1086
      %v1088 = vsel %vm1037, %v1082, %v1084
      %v1089 = vsel %vm1037, %v1080, %v1082
      %v1090 = vsel %vm1037, %v1078, %v1080
      %v1091 = vsel %vm1037, %v1076, %v1078
      %v1092 = vsel %vm1037, %v1074, %v1076
      %v1093 = vsel %vm1037, %v1072, %v1074
      %v1094 = vsel %vm1037, %v1086, %v1072
      %v1095 = vxor.u32 %v871, 8
      %v1096 = vxor.u32 %v872, 8
      %v1097 = vxor.u32 %v873, 8
      %v1098 = vxor.u32 %v874, 8
      %v1099 = vxor.u32 %v875, 8
      %v1100 = vxor.u32 %v876, 8
      %v1101 = vxor.u32 %v877, 8
      %v1102 = vxor.u32 %v878, 8
      %vm1103 = vcmp.eq.s32.totalorder %v1094, %v1095
      %vm1104 = vcmp.eq.s32.totalorder %v1093, %v1096
      %vm1105 = vcmp.eq.s32.totalorder %v1092, %v1097
      %vm1106 = vcmp.eq.s32.totalorder %v1091, %v1098
      %vm1107 = vcmp.eq.s32.totalorder %v1090, %v1099
      %vm1108 = vcmp.eq.s32.totalorder %v1089, %v1100
      %vm1109 = vcmp.eq.s32.totalorder %v1088, %v1101
      %vm1110 = vcmp.eq.s32.totalorder %v1087, %v1102
      %v1111 = vsel %vm1103, %v1045, %v1069
      %v1112 = vsel %vm1104, %v1044, %v1068
      %v1113 = vsel %vm1105, %v1043, %v1067
      %v1114 = vsel %vm1106, %v1042, %v1066
      %v1115 = vsel %vm1107, %v1041, %v1065
      %v1116 = vsel %vm1108, %v1040, %v1064
      %v1117 = vsel %vm1109, %v1039, %v1063
      %v1118 = vsel %vm1110, %v1038, %v1070
      %1119 = vrot.lane.b32.xlu0 %v1111, 16
      %v1120 = vpop.permute.xlu0 %1119
      %1121 = vrot.lane.b32.xlu0 %v1112, 16
      %v1122 = vpop.permute.xlu0 %1121
      %1123 = vrot.lane.b32.xlu0 %v1113, 16
      %v1124 = vpop.permute.xlu0 %1123
      %1125 = vrot.lane.b32.xlu0 %v1114, 16
      %v1126 = vpop.permute.xlu0 %1125
      %1127 = vrot.lane.b32.xlu0 %v1115, 16
      %v1128 = vpop.permute.xlu0 %1127
      %1129 = vrot.lane.b32.xlu0 %v1116, 16
      %v1130 = vpop.permute.xlu0 %1129
      %1131 = vrot.lane.b32.xlu0 %v1117, 16
      %v1132 = vpop.permute.xlu0 %1131
      %1133 = vrot.lane.b32.xlu0 %v1118, 16
      %v1134 = vpop.permute.xlu0 %1133
      %vm1135 = vcmp.lt.s32.totalorder %v871, 16
      %v1136 = vsel %vm1135, %v1132, %v1134
      %v1137 = vsel %vm1135, %v1130, %v1132
      %v1138 = vsel %vm1135, %v1128, %v1130
      %v1139 = vsel %vm1135, %v1126, %v1128
      %v1140 = vsel %vm1135, %v1124, %v1126
      %v1141 = vsel %vm1135, %v1122, %v1124
      %v1142 = vsel %vm1135, %v1120, %v1122
      %v1143 = vsel %vm1135, %v1134, %v1120
      %1144 = vrot.lane.b32.xlu0 %v1111, 112
      %v1145 = vpop.permute.xlu0 %1144
      %1146 = vrot.lane.b32.xlu0 %v1112, 112
      %v1147 = vpop.permute.xlu0 %1146
      %1148 = vrot.lane.b32.xlu0 %v1113, 112
      %v1149 = vpop.permute.xlu0 %1148
      %1150 = vrot.lane.b32.xlu0 %v1114, 112
      %v1151 = vpop.permute.xlu0 %1150
      %1152 = vrot.lane.b32.xlu0 %v1115, 112
      %v1153 = vpop.permute.xlu0 %1152
      %1154 = vrot.lane.b32.xlu0 %v1116, 112
      %v1155 = vpop.permute.xlu0 %1154
      %1156 = vrot.lane.b32.xlu0 %v1117, 112
      %v1157 = vpop.permute.xlu0 %1156
      %1158 = vrot.lane.b32.xlu0 %v1118, 112
      %v1159 = vpop.permute.xlu0 %1158
      %vm1160 = vcmp.lt.s32.totalorder %v871, 112
      %v1161 = vsel %vm1160, %v1157, %v1159
      %v1162 = vsel %vm1160, %v1155, %v1157
      %v1163 = vsel %vm1160, %v1153, %v1155
      %v1164 = vsel %vm1160, %v1151, %v1153
      %v1165 = vsel %vm1160, %v1149, %v1151
      %v1166 = vsel %vm1160, %v1147, %v1149
      %v1167 = vsel %vm1160, %v1145, %v1147
      %v1168 = vsel %vm1160, %v1159, %v1145
      %1169 = vrot.lane.b32.xlu0 %v871, 16
      %v1170 = vpop.permute.xlu0 %1169
      %1171 = vrot.lane.b32.xlu0 %v872, 16
      %v1172 = vpop.permute.xlu0 %1171
      %1173 = vrot.lane.b32.xlu0 %v873, 16
      %v1174 = vpop.permute.xlu0 %1173
      %1175 = vrot.lane.b32.xlu0 %v874, 16
      %v1176 = vpop.permute.xlu0 %1175
      %1177 = vrot.lane.b32.xlu0 %v875, 16
      %v1178 = vpop.permute.xlu0 %1177
      %1179 = vrot.lane.b32.xlu0 %v876, 16
      %v1180 = vpop.permute.xlu0 %1179
      %1181 = vrot.lane.b32.xlu0 %v877, 16
      %v1182 = vpop.permute.xlu0 %1181
      %1183 = vrot.lane.b32.xlu0 %v878, 16
      %v1184 = vpop.permute.xlu0 %1183
      %v1185 = vsel %vm1135, %v1182, %v1184
      %v1186 = vsel %vm1135, %v1180, %v1182
      %v1187 = vsel %vm1135, %v1178, %v1180
      %v1188 = vsel %vm1135, %v1176, %v1178
      %v1189 = vsel %vm1135, %v1174, %v1176
      %v1190 = vsel %vm1135, %v1172, %v1174
      %v1191 = vsel %vm1135, %v1170, %v1172
      %v1192 = vsel %vm1135, %v1184, %v1170
      %v1193 = vxor.u32 %v871, 16
      %v1194 = vxor.u32 %v872, 16
      %v1195 = vxor.u32 %v873, 16
      %v1196 = vxor.u32 %v874, 16
      %v1197 = vxor.u32 %v875, 16
      %v1198 = vxor.u32 %v876, 16
      %v1199 = vxor.u32 %v877, 16
      %v1200 = vxor.u32 %v878, 16
      %vm1201 = vcmp.eq.s32.totalorder %v1192, %v1193
      %vm1202 = vcmp.eq.s32.totalorder %v1191, %v1194
      %vm1203 = vcmp.eq.s32.totalorder %v1190, %v1195
      %vm1204 = vcmp.eq.s32.totalorder %v1189, %v1196
      %vm1205 = vcmp.eq.s32.totalorder %v1188, %v1197
      %vm1206 = vcmp.eq.s32.totalorder %v1187, %v1198
      %vm1207 = vcmp.eq.s32.totalorder %v1186, %v1199
      %vm1208 = vcmp.eq.s32.totalorder %v1185, %v1200
      %v1209 = vsel %vm1201, %v1143, %v1167
      %v1210 = vsel %vm1202, %v1142, %v1166
      %v1211 = vsel %vm1203, %v1141, %v1165
      %v1212 = vsel %vm1204, %v1140, %v1164
      %v1213 = vsel %vm1205, %v1139, %v1163
      %v1214 = vsel %vm1206, %v1138, %v1162
      %v1215 = vsel %vm1207, %v1137, %v1161
      %v1216 = vsel %vm1208, %v1136, %v1168
      %1217 = vrot.lane.b32.xlu0 %v1209, 32
      %v1218 = vpop.permute.xlu0 %1217
      %1219 = vrot.lane.b32.xlu0 %v1210, 32
      %v1220 = vpop.permute.xlu0 %1219
      %1221 = vrot.lane.b32.xlu0 %v1211, 32
      %v1222 = vpop.permute.xlu0 %1221
      %1223 = vrot.lane.b32.xlu0 %v1212, 32
      %v1224 = vpop.permute.xlu0 %1223
      %1225 = vrot.lane.b32.xlu0 %v1213, 32
      %v1226 = vpop.permute.xlu0 %1225
      %1227 = vrot.lane.b32.xlu0 %v1214, 32
      %v1228 = vpop.permute.xlu0 %1227
      %1229 = vrot.lane.b32.xlu0 %v1215, 32
      %v1230 = vpop.permute.xlu0 %1229
      %1231 = vrot.lane.b32.xlu0 %v1216, 32
      %v1232 = vpop.permute.xlu0 %1231
      %vm1233 = vcmp.lt.s32.totalorder %v871, 32
      %v1234 = vsel %vm1233, %v1230, %v1232
      %v1235 = vsel %vm1233, %v1228, %v1230
      %v1236 = vsel %vm1233, %v1226, %v1228
      %v1237 = vsel %vm1233, %v1224, %v1226
      %v1238 = vsel %vm1233, %v1222, %v1224
      %v1239 = vsel %vm1233, %v1220, %v1222
      %v1240 = vsel %vm1233, %v1218, %v1220
      %v1241 = vsel %vm1233, %v1232, %v1218
      %1242 = vrot.lane.b32.xlu0 %v1209, 96
      %v1243 = vpop.permute.xlu0 %1242
      %1244 = vrot.lane.b32.xlu0 %v1210, 96
      %v1245 = vpop.permute.xlu0 %1244
      %1246 = vrot.lane.b32.xlu0 %v1211, 96
      %v1247 = vpop.permute.xlu0 %1246
      %1248 = vrot.lane.b32.xlu0 %v1212, 96
      %v1249 = vpop.permute.xlu0 %1248
      %1250 = vrot.lane.b32.xlu0 %v1213, 96
      %v1251 = vpop.permute.xlu0 %1250
      %1252 = vrot.lane.b32.xlu0 %v1214, 96
      %v1253 = vpop.permute.xlu0 %1252
      %1254 = vrot.lane.b32.xlu0 %v1215, 96
      %v1255 = vpop.permute.xlu0 %1254
      %1256 = vrot.lane.b32.xlu0 %v1216, 96
      %v1257 = vpop.permute.xlu0 %1256
      %vm1258 = vcmp.lt.s32.totalorder %v871, 96
      %v1259 = vsel %vm1258, %v1255, %v1257
      %v1260 = vsel %vm1258, %v1253, %v1255
      %v1261 = vsel %vm1258, %v1251, %v1253
      %v1262 = vsel %vm1258, %v1249, %v1251
      %v1263 = vsel %vm1258, %v1247, %v1249
      %v1264 = vsel %vm1258, %v1245, %v1247
      %v1265 = vsel %vm1258, %v1243, %v1245
      %v1266 = vsel %vm1258, %v1257, %v1243
      %1267 = vrot.lane.b32.xlu0 %v871, 32
      %v1268 = vpop.permute.xlu0 %1267
      %1269 = vrot.lane.b32.xlu0 %v872, 32
      %v1270 = vpop.permute.xlu0 %1269
      %1271 = vrot.lane.b32.xlu0 %v873, 32
      %v1272 = vpop.permute.xlu0 %1271
      %1273 = vrot.lane.b32.xlu0 %v874, 32
      %v1274 = vpop.permute.xlu0 %1273
      %1275 = vrot.lane.b32.xlu0 %v875, 32
      %v1276 = vpop.permute.xlu0 %1275
      %1277 = vrot.lane.b32.xlu0 %v876, 32
      %v1278 = vpop.permute.xlu0 %1277
      %1279 = vrot.lane.b32.xlu0 %v877, 32
      %v1280 = vpop.permute.xlu0 %1279
      %1281 = vrot.lane.b32.xlu0 %v878, 32
      %v1282 = vpop.permute.xlu0 %1281
      %v1283 = vsel %vm1233, %v1280, %v1282
      %v1284 = vsel %vm1233, %v1278, %v1280
      %v1285 = vsel %vm1233, %v1276, %v1278
      %v1286 = vsel %vm1233, %v1274, %v1276
      %v1287 = vsel %vm1233, %v1272, %v1274
      %v1288 = vsel %vm1233, %v1270, %v1272
      %v1289 = vsel %vm1233, %v1268, %v1270
      %v1290 = vsel %vm1233, %v1282, %v1268
      %v1291 = vxor.u32 %v871, 32
      %v1292 = vxor.u32 %v872, 32
      %v1293 = vxor.u32 %v873, 32
      %v1294 = vxor.u32 %v874, 32
      %v1295 = vxor.u32 %v875, 32
      %v1296 = vxor.u32 %v876, 32
      %v1297 = vxor.u32 %v877, 32
      %v1298 = vxor.u32 %v878, 32
      %vm1299 = vcmp.eq.s32.totalorder %v1290, %v1291
      %vm1300 = vcmp.eq.s32.totalorder %v1289, %v1292
      %vm1301 = vcmp.eq.s32.totalorder %v1288, %v1293
      %vm1302 = vcmp.eq.s32.totalorder %v1287, %v1294
      %vm1303 = vcmp.eq.s32.totalorder %v1286, %v1295
      %vm1304 = vcmp.eq.s32.totalorder %v1285, %v1296
      %vm1305 = vcmp.eq.s32.totalorder %v1284, %v1297
      %vm1306 = vcmp.eq.s32.totalorder %v1283, %v1298
      %v1307 = vsel %vm1299, %v1241, %v1265
      %v1308 = vsel %vm1300, %v1240, %v1264
      %v1309 = vsel %vm1301, %v1239, %v1263
      %v1310 = vsel %vm1302, %v1238, %v1262
      %v1311 = vsel %vm1303, %v1237, %v1261
      %v1312 = vsel %vm1304, %v1236, %v1260
      %v1313 = vsel %vm1305, %v1235, %v1259
      %v1314 = vsel %vm1306, %v1234, %v1266
      %1315 = vrot.lane.b32.xlu0 %v1307, 64
      %v1316 = vpop.permute.xlu0 %1315
      %1317 = vrot.lane.b32.xlu0 %v1308, 64
      %v1318 = vpop.permute.xlu0 %1317
      %1319 = vrot.lane.b32.xlu0 %v1309, 64
      %v1320 = vpop.permute.xlu0 %1319
      %1321 = vrot.lane.b32.xlu0 %v1310, 64
      %v1322 = vpop.permute.xlu0 %1321
      %1323 = vrot.lane.b32.xlu0 %v1311, 64
      %v1324 = vpop.permute.xlu0 %1323
      %1325 = vrot.lane.b32.xlu0 %v1312, 64
      %v1326 = vpop.permute.xlu0 %1325
      %1327 = vrot.lane.b32.xlu0 %v1313, 64
      %v1328 = vpop.permute.xlu0 %1327
      %1329 = vrot.lane.b32.xlu0 %v1314, 64
      %v1330 = vpop.permute.xlu0 %1329
      %vm1331 = vcmp.lt.s32.totalorder %v871, 64
      %v1332 = vsel %vm1331, %v1328, %v1330
      %v1333 = vsel %vm1331, %v1326, %v1328
      %v1334 = vsel %vm1331, %v1324, %v1326
      %v1335 = vsel %vm1331, %v1322, %v1324
      %v1336 = vsel %vm1331, %v1320, %v1322
      %v1337 = vsel %vm1331, %v1318, %v1320
      %v1338 = vsel %vm1331, %v1316, %v1318
      %v1339 = vsel %vm1331, %v1330, %v1316
      %1340 = vrot.lane.b32.xlu0 %v871, 64
      %v1341 = vpop.permute.xlu0 %1340
      %1342 = vrot.lane.b32.xlu0 %v872, 64
      %v1343 = vpop.permute.xlu0 %1342
      %1344 = vrot.lane.b32.xlu0 %v873, 64
      %v1345 = vpop.permute.xlu0 %1344
      %1346 = vrot.lane.b32.xlu0 %v874, 64
      %v1347 = vpop.permute.xlu0 %1346
      %1348 = vrot.lane.b32.xlu0 %v875, 64
      %v1349 = vpop.permute.xlu0 %1348
      %1350 = vrot.lane.b32.xlu0 %v876, 64
      %v1351 = vpop.permute.xlu0 %1350
      %1352 = vrot.lane.b32.xlu0 %v877, 64
      %v1353 = vpop.permute.xlu0 %1352
      %1354 = vrot.lane.b32.xlu0 %v878, 64
      %v1355 = vpop.permute.xlu0 %1354
      %v1356 = vsel %vm1331, %v1353, %v1355
      %v1357 = vsel %vm1331, %v1351, %v1353
      %v1358 = vsel %vm1331, %v1349, %v1351
      %v1359 = vsel %vm1331, %v1347, %v1349
      %v1360 = vsel %vm1331, %v1345, %v1347
      %v1361 = vsel %vm1331, %v1343, %v1345
      %v1362 = vsel %vm1331, %v1341, %v1343
      %v1363 = vsel %vm1331, %v1355, %v1341
      %v1364 = vxor.u32 %v871, 64
      %v1365 = vxor.u32 %v872, 64
      %v1366 = vxor.u32 %v873, 64
      %v1367 = vxor.u32 %v874, 64
      %v1368 = vxor.u32 %v875, 64
      %v1369 = vxor.u32 %v876, 64
      %v1370 = vxor.u32 %v877, 64
      %v1371 = vxor.u32 %v878, 64
      %vm1372 = vcmp.eq.s32.totalorder %v1363, %v1364
      %vm1373 = vcmp.eq.s32.totalorder %v1362, %v1365
      %vm1374 = vcmp.eq.s32.totalorder %v1361, %v1366
      %vm1375 = vcmp.eq.s32.totalorder %v1360, %v1367
      %vm1376 = vcmp.eq.s32.totalorder %v1359, %v1368
      %vm1377 = vcmp.eq.s32.totalorder %v1358, %v1369
      %vm1378 = vcmp.eq.s32.totalorder %v1357, %v1370
      %vm1379 = vcmp.eq.s32.totalorder %v1356, %v1371
      %v1380 = vsel %vm1372, %v1339, %v1338
      %v1381 = vsel %vm1373, %v1338, %v1337
      %v1382 = vsel %vm1374, %v1337, %v1336
      %v1383 = vsel %vm1375, %v1336, %v1335
      %v1384 = vsel %vm1376, %v1335, %v1334
      %v1385 = vsel %vm1377, %v1334, %v1333
      %v1386 = vsel %vm1378, %v1333, %v1332
      %v1387 = vsel %vm1379, %v1332, %v1339
      %v1388 = vxor.u32 %v871, 128
      %v1389 = vxor.u32 %v872, 128
      %v1390 = vxor.u32 %v873, 128
      %v1391 = vxor.u32 %v874, 128
      %v1392 = vxor.u32 %v875, 128
      %v1393 = vxor.u32 %v876, 128
      %v1394 = vxor.u32 %v877, 128
      %v1395 = vxor.u32 %v878, 128
      %vm1396 = vcmp.eq.s32.totalorder %v878, %v1388
      %vm1397 = vcmp.eq.s32.totalorder %v871, %v1389
      %vm1398 = vcmp.eq.s32.totalorder %v872, %v1390
      %vm1399 = vcmp.eq.s32.totalorder %v873, %v1391
      %vm1400 = vcmp.eq.s32.totalorder %v874, %v1392
      %vm1401 = vcmp.eq.s32.totalorder %v875, %v1393
      %vm1402 = vcmp.eq.s32.totalorder %v876, %v1394
      %vm1403 = vcmp.eq.s32.totalorder %v877, %v1395
      %v1404 = vsel %vm1396, %v1387, %v1381
      %v1405 = vsel %vm1397, %v1380, %v1382
      %v1406 = vsel %vm1398, %v1381, %v1383
      %v1407 = vsel %vm1399, %v1382, %v1384
      %v1408 = vsel %vm1400, %v1383, %v1385
      %v1409 = vsel %vm1401, %v1384, %v1386
      %v1410 = vsel %vm1402, %v1385, %v1387
      %v1411 = vsel %vm1403, %v1386, %v1380
      %v1412 = vxor.u32 %v871, 256
      %v1413 = vxor.u32 %v872, 256
      %v1414 = vxor.u32 %v873, 256
      %v1415 = vxor.u32 %v874, 256
      %v1416 = vxor.u32 %v875, 256
      %v1417 = vxor.u32 %v876, 256
      %v1418 = vxor.u32 %v877, 256
      %v1419 = vxor.u32 %v878, 256
      %vm1420 = vcmp.eq.s32.totalorder %v877, %v1412
      %vm1421 = vcmp.eq.s32.totalorder %v878, %v1413
      %vm1422 = vcmp.eq.s32.totalorder %v871, %v1414
      %vm1423 = vcmp.eq.s32.totalorder %v872, %v1415
      %vm1424 = vcmp.eq.s32.totalorder %v873, %v1416
      %vm1425 = vcmp.eq.s32.totalorder %v874, %v1417
      %vm1426 = vcmp.eq.s32.totalorder %v875, %v1418
      %vm1427 = vcmp.eq.s32.totalorder %v876, %v1419
      %v1428 = vsel %vm1420, %v1410, %v1406
      %v1429 = vsel %vm1421, %v1411, %v1407
      %v1430 = vsel %vm1422, %v1404, %v1408
      %v1431 = vsel %vm1423, %v1405, %v1409
      %v1432 = vsel %vm1424, %v1406, %v1410
      %v1433 = vsel %vm1425, %v1407, %v1411
      %v1434 = vsel %vm1426, %v1408, %v1404
      %v1435 = vsel %vm1427, %v1409, %v1405
      %v1444 = vcombine.low %v1432, %v1433
      %v1445 = vcombine.low %v1434, %v1435
      %v1447 = vunpack.c.l.s4 1983009808
      %v1448 = vunpack.c.0.s8 %v1447
      %v1449 = vlaneseq
      %v1450 = vshrl.u32 %v1449, 7
      %v1451 = vsub.s32 %v1448, %v1450
      %v1452 = vrot.slane %v1444, %v1451
      %v1454 = vunpack.c.l.s4 1983009808
      %v1455 = vunpack.c.0.s8 %v1454
      %v1456 = vlaneseq
      %v1457 = vshrl.u32 %v1456, 7
      %v1458 = vsub.s32 %v1455, %v1457
      %v1459 = vrot.slane %v1445, %v1458
      %v1460 = vcombine.low %v1452, %v1459
      %v1461 = vcombine.low %v1428, %v1429
      %v1462 = vcombine.low %v1430, %v1431
      %v1464 = vunpack.c.l.s4 1983009808
      %v1465 = vunpack.c.0.s8 %v1464
      %v1466 = vlaneseq
      %v1467 = vshrl.u32 %v1466, 7
      %v1468 = vsub.s32 %v1465, %v1467
      %v1469 = vrot.slane %v1461, %v1468
      %v1471 = vunpack.c.l.s4 1983009808
      %v1472 = vunpack.c.0.s8 %v1471
      %v1473 = vlaneseq
      %v1474 = vshrl.u32 %v1473, 7
      %v1475 = vsub.s32 %v1472, %v1474
      %v1476 = vrot.slane %v1462, %v1475
      %v1477 = vcombine.low %v1469, %v1476
      %1480 = vst [vmem:[#allocation9] sm:$0xff] %v1460
      %1481 = vst [vmem:[#allocation9 + $0x8] sm:$0xff] %v1477
    $region37: #{tpu_custom_call.1} parent=1 // pred_fallthru
      _
    // Predicated region
    $region38: #{tpu_custom_call.1} parent=1 // pred_check
      _
    $region39: #{tpu_custom_call.1} parent=1 // pred_check_branch
      %1483 = sbr.rel (%p131) target = $region41
    $region40: #{tpu_custom_call.1} parent=1 // pred_region
      %v1484 = vld [vmem:[#allocation7] sm:$0xff]
      %v1485 = vld [vmem:[#allocation7 + $0x8] sm:$0xff]
      %1486 = vst [vmem:[#allocation10] sm:$0xff] %v1484
      %1487 = vst [vmem:[#allocation10 + $0x8] sm:$0xff] %v1485
    $region41: #{tpu_custom_call.1} parent=1 // pred_fallthru
      _
    // Predicated region
    $region42: #{tpu_custom_call.1} parent=1 // pred_check
      _
    $region43: #{tpu_custom_call.1} parent=1 // pred_check_branch
      %1489 = sbr.rel (%p140) target = $region45
    $region44: #{tpu_custom_call.1} parent=1 // pred_region
      %v1490 = vld [vmem:[#allocation7] sm:$0xff]
      %v1491 = vld [vmem:[#allocation7 + $0x8] sm:$0xff]
      %v1492 = vlaneseq
      %v1493 = vand.u32 %v1492, 127
      %v1494 = vadd.s32 %v1493, 128
      %v1495 = vadd.s32 %v1493, 256
      %v1496 = vadd.s32 %v1493, 384
      %v1497 = vadd.s32 %v1493, 512
      %v1498 = vadd.s32 %v1493, 640
      %v1499 = vadd.s32 %v1493, 768
      %v1500 = vadd.s32 %v1493, 896
      %v1503 = vcombine.high %v1490, %v1490
      %v1505 = vunpack.c.l.s4 1983009808
      %v1506 = vunpack.c.0.s8 %v1505
      %v1507 = vlaneseq
      %v1508 = vshrl.u32 %v1507, 7
      %v1509 = vsub.s32 %v1506, %v1508
      %v1510 = vrot.slane %v1490, %v1509
      %v1512 = vunpack.c.l.s4 1983009808
      %v1513 = vunpack.c.0.s8 %v1512
      %v1514 = vlaneseq
      %v1515 = vshrl.u32 %v1514, 7
      %v1516 = vsub.s32 %v1513, %v1515
      %v1517 = vrot.slane %v1503, %v1516
      %v1518 = vcombine.high %v1510, %v1510
      %v1519 = vcombine.high %v1517, %v1517
      %v1520 = vcombine.high %v1491, %v1491
      %v1522 = vunpack.c.l.s4 1983009808
      %v1523 = vunpack.c.0.s8 %v1522
      %v1524 = vlaneseq
      %v1525 = vshrl.u32 %v1524, 7
      %v1526 = vsub.s32 %v1523, %v1525
      %v1527 = vrot.slane %v1491, %v1526
      %v1529 = vunpack.c.l.s4 1983009808
      %v1530 = vunpack.c.0.s8 %v1529
      %v1531 = vlaneseq
      %v1532 = vshrl.u32 %v1531, 7
      %v1533 = vsub.s32 %v1530, %v1532
      %v1534 = vrot.slane %v1520, %v1533
      %v1535 = vcombine.high %v1527, %v1527
      %v1536 = vcombine.high %v1534, %v1534
      %1545 = vrot.lane.b32.xlu0 %v1510, 4
      %v1546 = vpop.permute.xlu0 %1545
      %1547 = vrot.lane.b32.xlu0 %v1518, 4
      %v1548 = vpop.permute.xlu0 %1547
      %1549 = vrot.lane.b32.xlu0 %v1517, 4
      %v1550 = vpop.permute.xlu0 %1549
      %1551 = vrot.lane.b32.xlu0 %v1519, 4
      %v1552 = vpop.permute.xlu0 %1551
      %1553 = vrot.lane.b32.xlu0 %v1527, 4
      %v1554 = vpop.permute.xlu0 %1553
      %1555 = vrot.lane.b32.xlu0 %v1535, 4
      %v1556 = vpop.permute.xlu0 %1555
      %1557 = vrot.lane.b32.xlu0 %v1534, 4
      %v1558 = vpop.permute.xlu0 %1557
      %1559 = vrot.lane.b32.xlu0 %v1536, 4
      %v1560 = vpop.permute.xlu0 %1559
      %vm1561 = vcmp.lt.s32.totalorder %v1493, 4
      %v1562 = vsel %vm1561, %v1558, %v1560
      %v1563 = vsel %vm1561, %v1556, %v1558
      %v1564 = vsel %vm1561, %v1554, %v1556
      %v1565 = vsel %vm1561, %v1552, %v1554
      %v1566 = vsel %vm1561, %v1550, %v1552
      %v1567 = vsel %vm1561, %v1548, %v1550
      %v1568 = vsel %vm1561, %v1546, %v1548
      %v1569 = vsel %vm1561, %v1560, %v1546
      %1570 = vrot.lane.b32.xlu0 %v1510, 124
      %v1571 = vpop.permute.xlu0 %1570
      %1572 = vrot.lane.b32.xlu0 %v1518, 124
      %v1573 = vpop.permute.xlu0 %1572
      %1574 = vrot.lane.b32.xlu0 %v1517, 124
      %v1575 = vpop.permute.xlu0 %1574
      %1576 = vrot.lane.b32.xlu0 %v1519, 124
      %v1577 = vpop.permute.xlu0 %1576
      %1578 = vrot.lane.b32.xlu0 %v1527, 124
      %v1579 = vpop.permute.xlu0 %1578
      %1580 = vrot.lane.b32.xlu0 %v1535, 124
      %v1581 = vpop.permute.xlu0 %1580
      %1582 = vrot.lane.b32.xlu0 %v1534, 124
      %v1583 = vpop.permute.xlu0 %1582
      %1584 = vrot.lane.b32.xlu0 %v1536, 124
      %v1585 = vpop.permute.xlu0 %1584
      %vm1586 = vcmp.lt.s32.totalorder %v1493, 124
      %v1587 = vsel %vm1586, %v1583, %v1585
      %v1588 = vsel %vm1586, %v1581, %v1583
      %v1589 = vsel %vm1586, %v1579, %v1581
      %v1590 = vsel %vm1586, %v1577, %v1579
      %v1591 = vsel %vm1586, %v1575, %v1577
      %v1592 = vsel %vm1586, %v1573, %v1575
      %v1593 = vsel %vm1586, %v1571, %v1573
      %v1594 = vsel %vm1586, %v1585, %v1571
      %1595 = vrot.lane.b32.xlu0 %v1493, 4
      %v1596 = vpop.permute.xlu0 %1595
      %1597 = vrot.lane.b32.xlu0 %v1494, 4
      %v1598 = vpop.permute.xlu0 %1597
      %1599 = vrot.lane.b32.xlu0 %v1495, 4
      %v1600 = vpop.permute.xlu0 %1599
      %1601 = vrot.lane.b32.xlu0 %v1496, 4
      %v1602 = vpop.permute.xlu0 %1601
      %1603 = vrot.lane.b32.xlu0 %v1497, 4
      %v1604 = vpop.permute.xlu0 %1603
      %1605 = vrot.lane.b32.xlu0 %v1498, 4
      %v1606 = vpop.permute.xlu0 %1605
      %1607 = vrot.lane.b32.xlu0 %v1499, 4
      %v1608 = vpop.permute.xlu0 %1607
      %1609 = vrot.lane.b32.xlu0 %v1500, 4
      %v1610 = vpop.permute.xlu0 %1609
      %v1611 = vsel %vm1561, %v1608, %v1610
      %v1612 = vsel %vm1561, %v1606, %v1608
      %v1613 = vsel %vm1561, %v1604, %v1606
      %v1614 = vsel %vm1561, %v1602, %v1604
      %v1615 = vsel %vm1561, %v1600, %v1602
      %v1616 = vsel %vm1561, %v1598, %v1600
      %v1617 = vsel %vm1561, %v1596, %v1598
      %v1618 = vsel %vm1561, %v1610, %v1596
      %v1619 = vxor.u32 %v1493, 4
      %v1620 = vxor.u32 %v1494, 4
      %v1621 = vxor.u32 %v1495, 4
      %v1622 = vxor.u32 %v1496, 4
      %v1623 = vxor.u32 %v1497, 4
      %v1624 = vxor.u32 %v1498, 4
      %v1625 = vxor.u32 %v1499, 4
      %v1626 = vxor.u32 %v1500, 4
      %vm1627 = vcmp.eq.s32.totalorder %v1618, %v1619
      %vm1628 = vcmp.eq.s32.totalorder %v1617, %v1620
      %vm1629 = vcmp.eq.s32.totalorder %v1616, %v1621
      %vm1630 = vcmp.eq.s32.totalorder %v1615, %v1622
      %vm1631 = vcmp.eq.s32.totalorder %v1614, %v1623
      %vm1632 = vcmp.eq.s32.totalorder %v1613, %v1624
      %vm1633 = vcmp.eq.s32.totalorder %v1612, %v1625
      %vm1634 = vcmp.eq.s32.totalorder %v1611, %v1626
      %v1635 = vsel %vm1627, %v1569, %v1593
      %v1636 = vsel %vm1628, %v1568, %v1592
      %v1637 = vsel %vm1629, %v1567, %v1591
      %v1638 = vsel %vm1630, %v1566, %v1590
      %v1639 = vsel %vm1631, %v1565, %v1589
      %v1640 = vsel %vm1632, %v1564, %v1588
      %v1641 = vsel %vm1633, %v1563, %v1587
      %v1642 = vsel %vm1634, %v1562, %v1594
      %1643 = vrot.lane.b32.xlu0 %v1635, 8
      %v1644 = vpop.permute.xlu0 %1643
      %1645 = vrot.lane.b32.xlu0 %v1636, 8
      %v1646 = vpop.permute.xlu0 %1645
      %1647 = vrot.lane.b32.xlu0 %v1637, 8
      %v1648 = vpop.permute.xlu0 %1647
      %1649 = vrot.lane.b32.xlu0 %v1638, 8
      %v1650 = vpop.permute.xlu0 %1649
      %1651 = vrot.lane.b32.xlu0 %v1639, 8
      %v1652 = vpop.permute.xlu0 %1651
      %1653 = vrot.lane.b32.xlu0 %v1640, 8
      %v1654 = vpop.permute.xlu0 %1653
      %1655 = vrot.lane.b32.xlu0 %v1641, 8
      %v1656 = vpop.permute.xlu0 %1655
      %1657 = vrot.lane.b32.xlu0 %v1642, 8
      %v1658 = vpop.permute.xlu0 %1657
      %vm1659 = vcmp.lt.s32.totalorder %v1493, 8
      %v1660 = vsel %vm1659, %v1656, %v1658
      %v1661 = vsel %vm1659, %v1654, %v1656
      %v1662 = vsel %vm1659, %v1652, %v1654
      %v1663 = vsel %vm1659, %v1650, %v1652
      %v1664 = vsel %vm1659, %v1648, %v1650
      %v1665 = vsel %vm1659, %v1646, %v1648
      %v1666 = vsel %vm1659, %v1644, %v1646
      %v1667 = vsel %vm1659, %v1658, %v1644
      %1668 = vrot.lane.b32.xlu0 %v1635, 120
      %v1669 = vpop.permute.xlu0 %1668
      %1670 = vrot.lane.b32.xlu0 %v1636, 120
      %v1671 = vpop.permute.xlu0 %1670
      %1672 = vrot.lane.b32.xlu0 %v1637, 120
      %v1673 = vpop.permute.xlu0 %1672
      %1674 = vrot.lane.b32.xlu0 %v1638, 120
      %v1675 = vpop.permute.xlu0 %1674
      %1676 = vrot.lane.b32.xlu0 %v1639, 120
      %v1677 = vpop.permute.xlu0 %1676
      %1678 = vrot.lane.b32.xlu0 %v1640, 120
      %v1679 = vpop.permute.xlu0 %1678
      %1680 = vrot.lane.b32.xlu0 %v1641, 120
      %v1681 = vpop.permute.xlu0 %1680
      %1682 = vrot.lane.b32.xlu0 %v1642, 120
      %v1683 = vpop.permute.xlu0 %1682
      %vm1684 = vcmp.lt.s32.totalorder %v1493, 120
      %v1685 = vsel %vm1684, %v1681, %v1683
      %v1686 = vsel %vm1684, %v1679, %v1681
      %v1687 = vsel %vm1684, %v1677, %v1679
      %v1688 = vsel %vm1684, %v1675, %v1677
      %v1689 = vsel %vm1684, %v1673, %v1675
      %v1690 = vsel %vm1684, %v1671, %v1673
      %v1691 = vsel %vm1684, %v1669, %v1671
      %v1692 = vsel %vm1684, %v1683, %v1669
      %1693 = vrot.lane.b32.xlu0 %v1493, 8
      %v1694 = vpop.permute.xlu0 %1693
      %1695 = vrot.lane.b32.xlu0 %v1494, 8
      %v1696 = vpop.permute.xlu0 %1695
      %1697 = vrot.lane.b32.xlu0 %v1495, 8
      %v1698 = vpop.permute.xlu0 %1697
      %1699 = vrot.lane.b32.xlu0 %v1496, 8
      %v1700 = vpop.permute.xlu0 %1699
      %1701 = vrot.lane.b32.xlu0 %v1497, 8
      %v1702 = vpop.permute.xlu0 %1701
      %1703 = vrot.lane.b32.xlu0 %v1498, 8
      %v1704 = vpop.permute.xlu0 %1703
      %1705 = vrot.lane.b32.xlu0 %v1499, 8
      %v1706 = vpop.permute.xlu0 %1705
      %1707 = vrot.lane.b32.xlu0 %v1500, 8
      %v1708 = vpop.permute.xlu0 %1707
      %v1709 = vsel %vm1659, %v1706, %v1708
      %v1710 = vsel %vm1659, %v1704, %v1706
      %v1711 = vsel %vm1659, %v1702, %v1704
      %v1712 = vsel %vm1659, %v1700, %v1702
      %v1713 = vsel %vm1659, %v1698, %v1700
      %v1714 = vsel %vm1659, %v1696, %v1698
      %v1715 = vsel %vm1659, %v1694, %v1696
      %v1716 = vsel %vm1659, %v1708, %v1694
      %v1717 = vxor.u32 %v1493, 8
      %v1718 = vxor.u32 %v1494, 8
      %v1719 = vxor.u32 %v1495, 8
      %v1720 = vxor.u32 %v1496, 8
      %v1721 = vxor.u32 %v1497, 8
      %v1722 = vxor.u32 %v1498, 8
      %v1723 = vxor.u32 %v1499, 8
      %v1724 = vxor.u32 %v1500, 8
      %vm1725 = vcmp.eq.s32.totalorder %v1716, %v1717
      %vm1726 = vcmp.eq.s32.totalorder %v1715, %v1718
      %vm1727 = vcmp.eq.s32.totalorder %v1714, %v1719
      %vm1728 = vcmp.eq.s32.totalorder %v1713, %v1720
      %vm1729 = vcmp.eq.s32.totalorder %v1712, %v1721
      %vm1730 = vcmp.eq.s32.totalorder %v1711, %v1722
      %vm1731 = vcmp.eq.s32.totalorder %v1710, %v1723
      %vm1732 = vcmp.eq.s32.totalorder %v1709, %v1724
      %v1733 = vsel %vm1725, %v1667, %v1691
      %v1734 = vsel %vm1726, %v1666, %v1690
      %v1735 = vsel %vm1727, %v1665, %v1689
      %v1736 = vsel %vm1728, %v1664, %v1688
      %v1737 = vsel %vm1729, %v1663, %v1687
      %v1738 = vsel %vm1730, %v1662, %v1686
      %v1739 = vsel %vm1731, %v1661, %v1685
      %v1740 = vsel %vm1732, %v1660, %v1692
      %1741 = vrot.lane.b32.xlu0 %v1733, 16
      %v1742 = vpop.permute.xlu0 %1741
      %1743 = vrot.lane.b32.xlu0 %v1734, 16
      %v1744 = vpop.permute.xlu0 %1743
      %1745 = vrot.lane.b32.xlu0 %v1735, 16
      %v1746 = vpop.permute.xlu0 %1745
      %1747 = vrot.lane.b32.xlu0 %v1736, 16
      %v1748 = vpop.permute.xlu0 %1747
      %1749 = vrot.lane.b32.xlu0 %v1737, 16
      %v1750 = vpop.permute.xlu0 %1749
      %1751 = vrot.lane.b32.xlu0 %v1738, 16
      %v1752 = vpop.permute.xlu0 %1751
      %1753 = vrot.lane.b32.xlu0 %v1739, 16
      %v1754 = vpop.permute.xlu0 %1753
      %1755 = vrot.lane.b32.xlu0 %v1740, 16
      %v1756 = vpop.permute.xlu0 %1755
      %vm1757 = vcmp.lt.s32.totalorder %v1493, 16
      %v1758 = vsel %vm1757, %v1754, %v1756
      %v1759 = vsel %vm1757, %v1752, %v1754
      %v1760 = vsel %vm1757, %v1750, %v1752
      %v1761 = vsel %vm1757, %v1748, %v1750
      %v1762 = vsel %vm1757, %v1746, %v1748
      %v1763 = vsel %vm1757, %v1744, %v1746
      %v1764 = vsel %vm1757, %v1742, %v1744
      %v1765 = vsel %vm1757, %v1756, %v1742
      %1766 = vrot.lane.b32.xlu0 %v1733, 112
      %v1767 = vpop.permute.xlu0 %1766
      %1768 = vrot.lane.b32.xlu0 %v1734, 112
      %v1769 = vpop.permute.xlu0 %1768
      %1770 = vrot.lane.b32.xlu0 %v1735, 112
      %v1771 = vpop.permute.xlu0 %1770
      %1772 = vrot.lane.b32.xlu0 %v1736, 112
      %v1773 = vpop.permute.xlu0 %1772
      %1774 = vrot.lane.b32.xlu0 %v1737, 112
      %v1775 = vpop.permute.xlu0 %1774
      %1776 = vrot.lane.b32.xlu0 %v1738, 112
      %v1777 = vpop.permute.xlu0 %1776
      %1778 = vrot.lane.b32.xlu0 %v1739, 112
      %v1779 = vpop.permute.xlu0 %1778
      %1780 = vrot.lane.b32.xlu0 %v1740, 112
      %v1781 = vpop.permute.xlu0 %1780
      %vm1782 = vcmp.lt.s32.totalorder %v1493, 112
      %v1783 = vsel %vm1782, %v1779, %v1781
      %v1784 = vsel %vm1782, %v1777, %v1779
      %v1785 = vsel %vm1782, %v1775, %v1777
      %v1786 = vsel %vm1782, %v1773, %v1775
      %v1787 = vsel %vm1782, %v1771, %v1773
      %v1788 = vsel %vm1782, %v1769, %v1771
      %v1789 = vsel %vm1782, %v1767, %v1769
      %v1790 = vsel %vm1782, %v1781, %v1767
      %1791 = vrot.lane.b32.xlu0 %v1493, 16
      %v1792 = vpop.permute.xlu0 %1791
      %1793 = vrot.lane.b32.xlu0 %v1494, 16
      %v1794 = vpop.permute.xlu0 %1793
      %1795 = vrot.lane.b32.xlu0 %v1495, 16
      %v1796 = vpop.permute.xlu0 %1795
      %1797 = vrot.lane.b32.xlu0 %v1496, 16
      %v1798 = vpop.permute.xlu0 %1797
      %1799 = vrot.lane.b32.xlu0 %v1497, 16
      %v1800 = vpop.permute.xlu0 %1799
      %1801 = vrot.lane.b32.xlu0 %v1498, 16
      %v1802 = vpop.permute.xlu0 %1801
      %1803 = vrot.lane.b32.xlu0 %v1499, 16
      %v1804 = vpop.permute.xlu0 %1803
      %1805 = vrot.lane.b32.xlu0 %v1500, 16
      %v1806 = vpop.permute.xlu0 %1805
      %v1807 = vsel %vm1757, %v1804, %v1806
      %v1808 = vsel %vm1757, %v1802, %v1804
      %v1809 = vsel %vm1757, %v1800, %v1802
      %v1810 = vsel %vm1757, %v1798, %v1800
      %v1811 = vsel %vm1757, %v1796, %v1798
      %v1812 = vsel %vm1757, %v1794, %v1796
      %v1813 = vsel %vm1757, %v1792, %v1794
      %v1814 = vsel %vm1757, %v1806, %v1792
      %v1815 = vxor.u32 %v1493, 16
      %v1816 = vxor.u32 %v1494, 16
      %v1817 = vxor.u32 %v1495, 16
      %v1818 = vxor.u32 %v1496, 16
      %v1819 = vxor.u32 %v1497, 16
      %v1820 = vxor.u32 %v1498, 16
      %v1821 = vxor.u32 %v1499, 16
      %v1822 = vxor.u32 %v1500, 16
      %vm1823 = vcmp.eq.s32.totalorder %v1814, %v1815
      %vm1824 = vcmp.eq.s32.totalorder %v1813, %v1816
      %vm1825 = vcmp.eq.s32.totalorder %v1812, %v1817
      %vm1826 = vcmp.eq.s32.totalorder %v1811, %v1818
      %vm1827 = vcmp.eq.s32.totalorder %v1810, %v1819
      %vm1828 = vcmp.eq.s32.totalorder %v1809, %v1820
      %vm1829 = vcmp.eq.s32.totalorder %v1808, %v1821
      %vm1830 = vcmp.eq.s32.totalorder %v1807, %v1822
      %v1831 = vsel %vm1823, %v1765, %v1789
      %v1832 = vsel %vm1824, %v1764, %v1788
      %v1833 = vsel %vm1825, %v1763, %v1787
      %v1834 = vsel %vm1826, %v1762, %v1786
      %v1835 = vsel %vm1827, %v1761, %v1785
      %v1836 = vsel %vm1828, %v1760, %v1784
      %v1837 = vsel %vm1829, %v1759, %v1783
      %v1838 = vsel %vm1830, %v1758, %v1790
      %1839 = vrot.lane.b32.xlu0 %v1831, 32
      %v1840 = vpop.permute.xlu0 %1839
      %1841 = vrot.lane.b32.xlu0 %v1832, 32
      %v1842 = vpop.permute.xlu0 %1841
      %1843 = vrot.lane.b32.xlu0 %v1833, 32
      %v1844 = vpop.permute.xlu0 %1843
      %1845 = vrot.lane.b32.xlu0 %v1834, 32
      %v1846 = vpop.permute.xlu0 %1845
      %1847 = vrot.lane.b32.xlu0 %v1835, 32
      %v1848 = vpop.permute.xlu0 %1847
      %1849 = vrot.lane.b32.xlu0 %v1836, 32
      %v1850 = vpop.permute.xlu0 %1849
      %1851 = vrot.lane.b32.xlu0 %v1837, 32
      %v1852 = vpop.permute.xlu0 %1851
      %1853 = vrot.lane.b32.xlu0 %v1838, 32
      %v1854 = vpop.permute.xlu0 %1853
      %vm1855 = vcmp.lt.s32.totalorder %v1493, 32
      %v1856 = vsel %vm1855, %v1852, %v1854
      %v1857 = vsel %vm1855, %v1850, %v1852
      %v1858 = vsel %vm1855, %v1848, %v1850
      %v1859 = vsel %vm1855, %v1846, %v1848
      %v1860 = vsel %vm1855, %v1844, %v1846
      %v1861 = vsel %vm1855, %v1842, %v1844
      %v1862 = vsel %vm1855, %v1840, %v1842
      %v1863 = vsel %vm1855, %v1854, %v1840
      %1864 = vrot.lane.b32.xlu0 %v1831, 96
      %v1865 = vpop.permute.xlu0 %1864
      %1866 = vrot.lane.b32.xlu0 %v1832, 96
      %v1867 = vpop.permute.xlu0 %1866
      %1868 = vrot.lane.b32.xlu0 %v1833, 96
      %v1869 = vpop.permute.xlu0 %1868
      %1870 = vrot.lane.b32.xlu0 %v1834, 96
      %v1871 = vpop.permute.xlu0 %1870
      %1872 = vrot.lane.b32.xlu0 %v1835, 96
      %v1873 = vpop.permute.xlu0 %1872
      %1874 = vrot.lane.b32.xlu0 %v1836, 96
      %v1875 = vpop.permute.xlu0 %1874
      %1876 = vrot.lane.b32.xlu0 %v1837, 96
      %v1877 = vpop.permute.xlu0 %1876
      %1878 = vrot.lane.b32.xlu0 %v1838, 96
      %v1879 = vpop.permute.xlu0 %1878
      %vm1880 = vcmp.lt.s32.totalorder %v1493, 96
      %v1881 = vsel %vm1880, %v1877, %v1879
      %v1882 = vsel %vm1880, %v1875, %v1877
      %v1883 = vsel %vm1880, %v1873, %v1875
      %v1884 = vsel %vm1880, %v1871, %v1873
      %v1885 = vsel %vm1880, %v1869, %v1871
      %v1886 = vsel %vm1880, %v1867, %v1869
      %v1887 = vsel %vm1880, %v1865, %v1867
      %v1888 = vsel %vm1880, %v1879, %v1865
      %1889 = vrot.lane.b32.xlu0 %v1493, 32
      %v1890 = vpop.permute.xlu0 %1889
      %1891 = vrot.lane.b32.xlu0 %v1494, 32
      %v1892 = vpop.permute.xlu0 %1891
      %1893 = vrot.lane.b32.xlu0 %v1495, 32
      %v1894 = vpop.permute.xlu0 %1893
      %1895 = vrot.lane.b32.xlu0 %v1496, 32
      %v1896 = vpop.permute.xlu0 %1895
      %1897 = vrot.lane.b32.xlu0 %v1497, 32
      %v1898 = vpop.permute.xlu0 %1897
      %1899 = vrot.lane.b32.xlu0 %v1498, 32
      %v1900 = vpop.permute.xlu0 %1899
      %1901 = vrot.lane.b32.xlu0 %v1499, 32
      %v1902 = vpop.permute.xlu0 %1901
      %1903 = vrot.lane.b32.xlu0 %v1500, 32
      %v1904 = vpop.permute.xlu0 %1903
      %v1905 = vsel %vm1855, %v1902, %v1904
      %v1906 = vsel %vm1855, %v1900, %v1902
      %v1907 = vsel %vm1855, %v1898, %v1900
      %v1908 = vsel %vm1855, %v1896, %v1898
      %v1909 = vsel %vm1855, %v1894, %v1896
      %v1910 = vsel %vm1855, %v1892, %v1894
      %v1911 = vsel %vm1855, %v1890, %v1892
      %v1912 = vsel %vm1855, %v1904, %v1890
      %v1913 = vxor.u32 %v1493, 32
      %v1914 = vxor.u32 %v1494, 32
      %v1915 = vxor.u32 %v1495, 32
      %v1916 = vxor.u32 %v1496, 32
      %v1917 = vxor.u32 %v1497, 32
      %v1918 = vxor.u32 %v1498, 32
      %v1919 = vxor.u32 %v1499, 32
      %v1920 = vxor.u32 %v1500, 32
      %vm1921 = vcmp.eq.s32.totalorder %v1912, %v1913
      %vm1922 = vcmp.eq.s32.totalorder %v1911, %v1914
      %vm1923 = vcmp.eq.s32.totalorder %v1910, %v1915
      %vm1924 = vcmp.eq.s32.totalorder %v1909, %v1916
      %vm1925 = vcmp.eq.s32.totalorder %v1908, %v1917
      %vm1926 = vcmp.eq.s32.totalorder %v1907, %v1918
      %vm1927 = vcmp.eq.s32.totalorder %v1906, %v1919
      %vm1928 = vcmp.eq.s32.totalorder %v1905, %v1920
      %v1929 = vsel %vm1921, %v1863, %v1887
      %v1930 = vsel %vm1922, %v1862, %v1886
      %v1931 = vsel %vm1923, %v1861, %v1885
      %v1932 = vsel %vm1924, %v1860, %v1884
      %v1933 = vsel %vm1925, %v1859, %v1883
      %v1934 = vsel %vm1926, %v1858, %v1882
      %v1935 = vsel %vm1927, %v1857, %v1881
      %v1936 = vsel %vm1928, %v1856, %v1888
      %v1945 = vcombine.low %v1929, %v1930
      %v1946 = vcombine.low %v1931, %v1932
      %v1948 = vunpack.c.l.s4 1983009808
      %v1949 = vunpack.c.0.s8 %v1948
      %v1950 = vlaneseq
      %v1951 = vshrl.u32 %v1950, 7
      %v1952 = vsub.s32 %v1949, %v1951
      %v1953 = vrot.slane %v1945, %v1952
      %v1955 = vunpack.c.l.s4 1983009808
      %v1956 = vunpack.c.0.s8 %v1955
      %v1957 = vlaneseq
      %v1958 = vshrl.u32 %v1957, 7
      %v1959 = vsub.s32 %v1956, %v1958
      %v1960 = vrot.slane %v1946, %v1959
      %v1961 = vcombine.low %v1953, %v1960
      %v1962 = vcombine.low %v1933, %v1934
      %v1963 = vcombine.low %v1935, %v1936
      %v1965 = vunpack.c.l.s4 1983009808
      %v1966 = vunpack.c.0.s8 %v1965
      %v1967 = vlaneseq
      %v1968 = vshrl.u32 %v1967, 7
      %v1969 = vsub.s32 %v1966, %v1968
      %v1970 = vrot.slane %v1962, %v1969
      %v1972 = vunpack.c.l.s4 1983009808
      %v1973 = vunpack.c.0.s8 %v1972
      %v1974 = vlaneseq
      %v1975 = vshrl.u32 %v1974, 7
      %v1976 = vsub.s32 %v1973, %v1975
      %v1977 = vrot.slane %v1963, %v1976
      %v1978 = vcombine.low %v1970, %v1977
      %1981 = vst [vmem:[#allocation10] sm:$0xff] %v1961
      %1982 = vst [vmem:[#allocation10 + $0x8] sm:$0xff] %v1978
    $region45: #{tpu_custom_call.1} parent=1 // pred_fallthru
      _
    // Predicated region
    $region46: #{tpu_custom_call.1} parent=1 // pred_check
      _
    $region47: #{tpu_custom_call.1} parent=1 // pred_check_branch
      %1984 = sbr.rel (%p638) target = $region49
    $region48: #{tpu_custom_call.1} parent=1 // pred_region
      %v1985 = vld [vmem:[#allocation7] sm:$0xff]
      %v1986 = vld [vmem:[#allocation7 + $0x8] sm:$0xff]
      %v1987 = vlaneseq
      %v1988 = vand.u32 %v1987, 127
      %v1989 = vadd.s32 %v1988, 128
      %v1990 = vadd.s32 %v1988, 256
      %v1991 = vadd.s32 %v1988, 384
      %v1992 = vadd.s32 %v1988, 512
      %v1993 = vadd.s32 %v1988, 640
      %v1994 = vadd.s32 %v1988, 768
      %v1995 = vadd.s32 %v1988, 896
      %v1998 = vcombine.high %v1985, %v1985
      %v2000 = vunpack.c.l.s4 1983009808
      %v2001 = vunpack.c.0.s8 %v2000
      %v2002 = vlaneseq
      %v2003 = vshrl.u32 %v2002, 7
      %v2004 = vsub.s32 %v2001, %v2003
      %v2005 = vrot.slane %v1985, %v2004
      %v2007 = vunpack.c.l.s4 1983009808
      %v2008 = vunpack.c.0.s8 %v2007
      %v2009 = vlaneseq
      %v2010 = vshrl.u32 %v2009, 7
      %v2011 = vsub.s32 %v2008, %v2010
      %v2012 = vrot.slane %v1998, %v2011
      %v2013 = vcombine.high %v2005, %v2005
      %v2014 = vcombine.high %v2012, %v2012
      %v2015 = vcombine.high %v1986, %v1986
      %v2017 = vunpack.c.l.s4 1983009808
      %v2018 = vunpack.c.0.s8 %v2017
      %v2019 = vlaneseq
      %v2020 = vshrl.u32 %v2019, 7
      %v2021 = vsub.s32 %v2018, %v2020
      %v2022 = vrot.slane %v1986, %v2021
      %v2024 = vunpack.c.l.s4 1983009808
      %v2025 = vunpack.c.0.s8 %v2024
      %v2026 = vlaneseq
      %v2027 = vshrl.u32 %v2026, 7
      %v2028 = vsub.s32 %v2025, %v2027
      %v2029 = vrot.slane %v2015, %v2028
      %v2030 = vcombine.high %v2022, %v2022
      %v2031 = vcombine.high %v2029, %v2029
      %2040 = vrot.lane.b32.xlu0 %v2005, 64
      %v2041 = vpop.permute.xlu0 %2040
      %2042 = vrot.lane.b32.xlu0 %v2013, 64
      %v2043 = vpop.permute.xlu0 %2042
      %2044 = vrot.lane.b32.xlu0 %v2012, 64
      %v2045 = vpop.permute.xlu0 %2044
      %2046 = vrot.lane.b32.xlu0 %v2014, 64
      %v2047 = vpop.permute.xlu0 %2046
      %2048 = vrot.lane.b32.xlu0 %v2022, 64
      %v2049 = vpop.permute.xlu0 %2048
      %2050 = vrot.lane.b32.xlu0 %v2030, 64
      %v2051 = vpop.permute.xlu0 %2050
      %2052 = vrot.lane.b32.xlu0 %v2029, 64
      %v2053 = vpop.permute.xlu0 %2052
      %2054 = vrot.lane.b32.xlu0 %v2031, 64
      %v2055 = vpop.permute.xlu0 %2054
      %vm2056 = vcmp.lt.s32.totalorder %v1988, 64
      %v2057 = vsel %vm2056, %v2053, %v2055
      %v2058 = vsel %vm2056, %v2051, %v2053
      %v2059 = vsel %vm2056, %v2049, %v2051
      %v2060 = vsel %vm2056, %v2047, %v2049
      %v2061 = vsel %vm2056, %v2045, %v2047
      %v2062 = vsel %vm2056, %v2043, %v2045
      %v2063 = vsel %vm2056, %v2041, %v2043
      %v2064 = vsel %vm2056, %v2055, %v2041
      %2065 = vrot.lane.b32.xlu0 %v1988, 64
      %v2066 = vpop.permute.xlu0 %2065
      %2067 = vrot.lane.b32.xlu0 %v1989, 64
      %v2068 = vpop.permute.xlu0 %2067
      %2069 = vrot.lane.b32.xlu0 %v1990, 64
      %v2070 = vpop.permute.xlu0 %2069
      %2071 = vrot.lane.b32.xlu0 %v1991, 64
      %v2072 = vpop.permute.xlu0 %2071
      %2073 = vrot.lane.b32.xlu0 %v1992, 64
      %v2074 = vpop.permute.xlu0 %2073
      %2075 = vrot.lane.b32.xlu0 %v1993, 64
      %v2076 = vpop.permute.xlu0 %2075
      %2077 = vrot.lane.b32.xlu0 %v1994, 64
      %v2078 = vpop.permute.xlu0 %2077
      %2079 = vrot.lane.b32.xlu0 %v1995, 64
      %v2080 = vpop.permute.xlu0 %2079
      %v2081 = vsel %vm2056, %v2078, %v2080
      %v2082 = vsel %vm2056, %v2076, %v2078
      %v2083 = vsel %vm2056, %v2074, %v2076
      %v2084 = vsel %vm2056, %v2072, %v2074
      %v2085 = vsel %vm2056, %v2070, %v2072
      %v2086 = vsel %vm2056, %v2068, %v2070
      %v2087 = vsel %vm2056, %v2066, %v2068
      %v2088 = vsel %vm2056, %v2080, %v2066
      %v2089 = vxor.u32 %v1988, 64
      %v2090 = vxor.u32 %v1989, 64
      %v2091 = vxor.u32 %v1990, 64
      %v2092 = vxor.u32 %v1991, 64
      %v2093 = vxor.u32 %v1992, 64
      %v2094 = vxor.u32 %v1993, 64
      %v2095 = vxor.u32 %v1994, 64
      %v2096 = vxor.u32 %v1995, 64
      %vm2097 = vcmp.eq.s32.totalorder %v2088, %v2089
      %vm2098 = vcmp.eq.s32.totalorder %v2087, %v2090
      %vm2099 = vcmp.eq.s32.totalorder %v2086, %v2091
      %vm2100 = vcmp.eq.s32.totalorder %v2085, %v2092
      %vm2101 = vcmp.eq.s32.totalorder %v2084, %v2093
      %vm2102 = vcmp.eq.s32.totalorder %v2083, %v2094
      %vm2103 = vcmp.eq.s32.totalorder %v2082, %v2095
      %vm2104 = vcmp.eq.s32.totalorder %v2081, %v2096
      %v2105 = vsel %vm2097, %v2064, %v2063
      %v2106 = vsel %vm2098, %v2063, %v2062
      %v2107 = vsel %vm2099, %v2062, %v2061
      %v2108 = vsel %vm2100, %v2061, %v2060
      %v2109 = vsel %vm2101, %v2060, %v2059
      %v2110 = vsel %vm2102, %v2059, %v2058
      %v2111 = vsel %vm2103, %v2058, %v2057
      %v2112 = vsel %vm2104, %v2057, %v2064
      %v2113 = vxor.u32 %v1988, 128
      %v2114 = vxor.u32 %v1989, 128
      %v2115 = vxor.u32 %v1990, 128
      %v2116 = vxor.u32 %v1991, 128
      %v2117 = vxor.u32 %v1992, 128
      %v2118 = vxor.u32 %v1993, 128
      %v2119 = vxor.u32 %v1994, 128
      %v2120 = vxor.u32 %v1995, 128
      %vm2121 = vcmp.eq.s32.totalorder %v1995, %v2113
      %vm2122 = vcmp.eq.s32.totalorder %v1988, %v2114
      %vm2123 = vcmp.eq.s32.totalorder %v1989, %v2115
      %vm2124 = vcmp.eq.s32.totalorder %v1990, %v2116
      %vm2125 = vcmp.eq.s32.totalorder %v1991, %v2117
      %vm2126 = vcmp.eq.s32.totalorder %v1992, %v2118
      %vm2127 = vcmp.eq.s32.totalorder %v1993, %v2119
      %vm2128 = vcmp.eq.s32.totalorder %v1994, %v2120
      %v2129 = vsel %vm2121, %v2112, %v2106
      %v2130 = vsel %vm2122, %v2105, %v2107
      %v2131 = vsel %vm2123, %v2106, %v2108
      %v2132 = vsel %vm2124, %v2107, %v2109
      %v2133 = vsel %vm2125, %v2108, %v2110
      %v2134 = vsel %vm2126, %v2109, %v2111
      %v2135 = vsel %vm2127, %v2110, %v2112
      %v2136 = vsel %vm2128, %v2111, %v2105
      %v2137 = vxor.u32 %v1988, 256
      %v2138 = vxor.u32 %v1989, 256
      %v2139 = vxor.u32 %v1990, 256
      %v2140 = vxor.u32 %v1991, 256
      %v2141 = vxor.u32 %v1992, 256
      %v2142 = vxor.u32 %v1993, 256
      %v2143 = vxor.u32 %v1994, 256
      %v2144 = vxor.u32 %v1995, 256
      %vm2145 = vcmp.eq.s32.totalorder %v1994, %v2137
      %vm2146 = vcmp.eq.s32.totalorder %v1995, %v2138
      %vm2147 = vcmp.eq.s32.totalorder %v1988, %v2139
      %vm2148 = vcmp.eq.s32.totalorder %v1989, %v2140
      %vm2149 = vcmp.eq.s32.totalorder %v1990, %v2141
      %vm2150 = vcmp.eq.s32.totalorder %v1991, %v2142
      %vm2151 = vcmp.eq.s32.totalorder %v1992, %v2143
      %vm2152 = vcmp.eq.s32.totalorder %v1993, %v2144
      %v2153 = vsel %vm2145, %v2135, %v2131
      %v2154 = vsel %vm2146, %v2136, %v2132
      %v2155 = vsel %vm2147, %v2129, %v2133
      %v2156 = vsel %vm2148, %v2130, %v2134
      %v2157 = vsel %vm2149, %v2131, %v2135
      %v2158 = vsel %vm2150, %v2132, %v2136
      %v2159 = vsel %vm2151, %v2133, %v2129
      %v2160 = vsel %vm2152, %v2134, %v2130
      %v2169 = vcombine.low %v2157, %v2158
      %v2170 = vcombine.low %v2159, %v2160
      %v2172 = vunpack.c.l.s4 1983009808
      %v2173 = vunpack.c.0.s8 %v2172
      %v2174 = vlaneseq
      %v2175 = vshrl.u32 %v2174, 7
      %v2176 = vsub.s32 %v2173, %v2175
      %v2177 = vrot.slane %v2169, %v2176
      %v2179 = vunpack.c.l.s4 1983009808
      %v2180 = vunpack.c.0.s8 %v2179
      %v2181 = vlaneseq
      %v2182 = vshrl.u32 %v2181, 7
      %v2183 = vsub.s32 %v2180, %v2182
      %v2184 = vrot.slane %v2170, %v2183
      %v2185 = vcombine.low %v2177, %v2184
      %v2186 = vcombine.low %v2153, %v2154
      %v2187 = vcombine.low %v2155, %v2156
      %v2189 = vunpack.c.l.s4 1983009808
      %v2190 = vunpack.c.0.s8 %v2189
      %v2191 = vlaneseq
      %v2192 = vshrl.u32 %v2191, 7
      %v2193 = vsub.s32 %v2190, %v2192
      %v2194 = vrot.slane %v2186, %v2193
      %v2196 = vunpack.c.l.s4 1983009808
      %v2197 = vunpack.c.0.s8 %v2196
      %v2198 = vlaneseq
      %v2199 = vshrl.u32 %v2198, 7
      %v2200 = vsub.s32 %v2197, %v2199
      %v2201 = vrot.slane %v2187, %v2200
      %v2202 = vcombine.low %v2194, %v2201
      %2205 = vst [vmem:[#allocation10] sm:$0xff] %v2185
      %2206 = vst [vmem:[#allocation10 + $0x8] sm:$0xff] %v2202
    $region49: #{tpu_custom_call.1} parent=1 // pred_fallthru
      _
    // Predicated region
    $region50: #{tpu_custom_call.1} parent=1 // pred_check
      _
    $region51: #{tpu_custom_call.1} parent=1 // pred_check_branch
      %2208 = sbr.rel (%p864) target = $region53
    $region52: #{tpu_custom_call.1} parent=1 // pred_region
      %v2209 = vld [vmem:[#allocation7] sm:$0xff]
      %v2210 = vld [vmem:[#allocation7 + $0x8] sm:$0xff]
      %v2211 = vlaneseq
      %v2212 = vand.u32 %v2211, 127
      %v2213 = vadd.s32 %v2212, 128
      %v2214 = vadd.s32 %v2212, 256
      %v2215 = vadd.s32 %v2212, 384
      %v2216 = vadd.s32 %v2212, 512
      %v2217 = vadd.s32 %v2212, 640
      %v2218 = vadd.s32 %v2212, 768
      %v2219 = vadd.s32 %v2212, 896
      %v2222 = vcombine.high %v2209, %v2209
      %v2224 = vunpack.c.l.s4 1983009808
      %v2225 = vunpack.c.0.s8 %v2224
      %v2226 = vlaneseq
      %v2227 = vshrl.u32 %v2226, 7
      %v2228 = vsub.s32 %v2225, %v2227
      %v2229 = vrot.slane %v2209, %v2228
      %v2231 = vunpack.c.l.s4 1983009808
      %v2232 = vunpack.c.0.s8 %v2231
      %v2233 = vlaneseq
      %v2234 = vshrl.u32 %v2233, 7
      %v2235 = vsub.s32 %v2232, %v2234
      %v2236 = vrot.slane %v2222, %v2235
      %v2237 = vcombine.high %v2229, %v2229
      %v2238 = vcombine.high %v2236, %v2236
      %v2239 = vcombine.high %v2210, %v2210
      %v2241 = vunpack.c.l.s4 1983009808
      %v2242 = vunpack.c.0.s8 %v2241
      %v2243 = vlaneseq
      %v2244 = vshrl.u32 %v2243, 7
      %v2245 = vsub.s32 %v2242, %v2244
      %v2246 = vrot.slane %v2210, %v2245
      %v2248 = vunpack.c.l.s4 1983009808
      %v2249 = vunpack.c.0.s8 %v2248
      %v2250 = vlaneseq
      %v2251 = vshrl.u32 %v2250, 7
      %v2252 = vsub.s32 %v2249, %v2251
      %v2253 = vrot.slane %v2239, %v2252
      %v2254 = vcombine.high %v2246, %v2246
      %v2255 = vcombine.high %v2253, %v2253
      %2264 = vrot.lane.b32.xlu0 %v2229, 4
      %v2265 = vpop.permute.xlu0 %2264
      %2266 = vrot.lane.b32.xlu0 %v2237, 4
      %v2267 = vpop.permute.xlu0 %2266
      %2268 = vrot.lane.b32.xlu0 %v2236, 4
      %v2269 = vpop.permute.xlu0 %2268
      %2270 = vrot.lane.b32.xlu0 %v2238, 4
      %v2271 = vpop.permute.xlu0 %2270
      %2272 = vrot.lane.b32.xlu0 %v2246, 4
      %v2273 = vpop.permute.xlu0 %2272
      %2274 = vrot.lane.b32.xlu0 %v2254, 4
      %v2275 = vpop.permute.xlu0 %2274
      %2276 = vrot.lane.b32.xlu0 %v2253, 4
      %v2277 = vpop.permute.xlu0 %2276
      %2278 = vrot.lane.b32.xlu0 %v2255, 4
      %v2279 = vpop.permute.xlu0 %2278
      %vm2280 = vcmp.lt.s32.totalorder %v2212, 4
      %v2281 = vsel %vm2280, %v2277, %v2279
      %v2282 = vsel %vm2280, %v2275, %v2277
      %v2283 = vsel %vm2280, %v2273, %v2275
      %v2284 = vsel %vm2280, %v2271, %v2273
      %v2285 = vsel %vm2280, %v2269, %v2271
      %v2286 = vsel %vm2280, %v2267, %v2269
      %v2287 = vsel %vm2280, %v2265, %v2267
      %v2288 = vsel %vm2280, %v2279, %v2265
      %2289 = vrot.lane.b32.xlu0 %v2229, 124
      %v2290 = vpop.permute.xlu0 %2289
      %2291 = vrot.lane.b32.xlu0 %v2237, 124
      %v2292 = vpop.permute.xlu0 %2291
      %2293 = vrot.lane.b32.xlu0 %v2236, 124
      %v2294 = vpop.permute.xlu0 %2293
      %2295 = vrot.lane.b32.xlu0 %v2238, 124
      %v2296 = vpop.permute.xlu0 %2295
      %2297 = vrot.lane.b32.xlu0 %v2246, 124
      %v2298 = vpop.permute.xlu0 %2297
      %2299 = vrot.lane.b32.xlu0 %v2254, 124
      %v2300 = vpop.permute.xlu0 %2299
      %2301 = vrot.lane.b32.xlu0 %v2253, 124
      %v2302 = vpop.permute.xlu0 %2301
      %2303 = vrot.lane.b32.xlu0 %v2255, 124
      %v2304 = vpop.permute.xlu0 %2303
      %vm2305 = vcmp.lt.s32.totalorder %v2212, 124
      %v2306 = vsel %vm2305, %v2302, %v2304
      %v2307 = vsel %vm2305, %v2300, %v2302
      %v2308 = vsel %vm2305, %v2298, %v2300
      %v2309 = vsel %vm2305, %v2296, %v2298
      %v2310 = vsel %vm2305, %v2294, %v2296
      %v2311 = vsel %vm2305, %v2292, %v2294
      %v2312 = vsel %vm2305, %v2290, %v2292
      %v2313 = vsel %vm2305, %v2304, %v2290
      %2314 = vrot.lane.b32.xlu0 %v2212, 4
      %v2315 = vpop.permute.xlu0 %2314
      %2316 = vrot.lane.b32.xlu0 %v2213, 4
      %v2317 = vpop.permute.xlu0 %2316
      %2318 = vrot.lane.b32.xlu0 %v2214, 4
      %v2319 = vpop.permute.xlu0 %2318
      %2320 = vrot.lane.b32.xlu0 %v2215, 4
      %v2321 = vpop.permute.xlu0 %2320
      %2322 = vrot.lane.b32.xlu0 %v2216, 4
      %v2323 = vpop.permute.xlu0 %2322
      %2324 = vrot.lane.b32.xlu0 %v2217, 4
      %v2325 = vpop.permute.xlu0 %2324
      %2326 = vrot.lane.b32.xlu0 %v2218, 4
      %v2327 = vpop.permute.xlu0 %2326
      %2328 = vrot.lane.b32.xlu0 %v2219, 4
      %v2329 = vpop.permute.xlu0 %2328
      %v2330 = vsel %vm2280, %v2327, %v2329
      %v2331 = vsel %vm2280, %v2325, %v2327
      %v2332 = vsel %vm2280, %v2323, %v2325
      %v2333 = vsel %vm2280, %v2321, %v2323
      %v2334 = vsel %vm2280, %v2319, %v2321
      %v2335 = vsel %vm2280, %v2317, %v2319
      %v2336 = vsel %vm2280, %v2315, %v2317
      %v2337 = vsel %vm2280, %v2329, %v2315
      %v2338 = vxor.u32 %v2212, 4
      %v2339 = vxor.u32 %v2213, 4
      %v2340 = vxor.u32 %v2214, 4
      %v2341 = vxor.u32 %v2215, 4
      %v2342 = vxor.u32 %v2216, 4
      %v2343 = vxor.u32 %v2217, 4
      %v2344 = vxor.u32 %v2218, 4
      %v2345 = vxor.u32 %v2219, 4
      %vm2346 = vcmp.eq.s32.totalorder %v2337, %v2338
      %vm2347 = vcmp.eq.s32.totalorder %v2336, %v2339
      %vm2348 = vcmp.eq.s32.totalorder %v2335, %v2340
      %vm2349 = vcmp.eq.s32.totalorder %v2334, %v2341
      %vm2350 = vcmp.eq.s32.totalorder %v2333, %v2342
      %vm2351 = vcmp.eq.s32.totalorder %v2332, %v2343
      %vm2352 = vcmp.eq.s32.totalorder %v2331, %v2344
      %vm2353 = vcmp.eq.s32.totalorder %v2330, %v2345
      %v2354 = vsel %vm2346, %v2288, %v2312
      %v2355 = vsel %vm2347, %v2287, %v2311
      %v2356 = vsel %vm2348, %v2286, %v2310
      %v2357 = vsel %vm2349, %v2285, %v2309
      %v2358 = vsel %vm2350, %v2284, %v2308
      %v2359 = vsel %vm2351, %v2283, %v2307
      %v2360 = vsel %vm2352, %v2282, %v2306
      %v2361 = vsel %vm2353, %v2281, %v2313
      %2362 = vrot.lane.b32.xlu0 %v2354, 8
      %v2363 = vpop.permute.xlu0 %2362
      %2364 = vrot.lane.b32.xlu0 %v2355, 8
      %v2365 = vpop.permute.xlu0 %2364
      %2366 = vrot.lane.b32.xlu0 %v2356, 8
      %v2367 = vpop.permute.xlu0 %2366
      %2368 = vrot.lane.b32.xlu0 %v2357, 8
      %v2369 = vpop.permute.xlu0 %2368
      %2370 = vrot.lane.b32.xlu0 %v2358, 8
      %v2371 = vpop.permute.xlu0 %2370
      %2372 = vrot.lane.b32.xlu0 %v2359, 8
      %v2373 = vpop.permute.xlu0 %2372
      %2374 = vrot.lane.b32.xlu0 %v2360, 8
      %v2375 = vpop.permute.xlu0 %2374
      %2376 = vrot.lane.b32.xlu0 %v2361, 8
      %v2377 = vpop.permute.xlu0 %2376
      %vm2378 = vcmp.lt.s32.totalorder %v2212, 8
      %v2379 = vsel %vm2378, %v2375, %v2377
      %v2380 = vsel %vm2378, %v2373, %v2375
      %v2381 = vsel %vm2378, %v2371, %v2373
      %v2382 = vsel %vm2378, %v2369, %v2371
      %v2383 = vsel %vm2378, %v2367, %v2369
      %v2384 = vsel %vm2378, %v2365, %v2367
      %v2385 = vsel %vm2378, %v2363, %v2365
      %v2386 = vsel %vm2378, %v2377, %v2363
      %2387 = vrot.lane.b32.xlu0 %v2354, 120
      %v2388 = vpop.permute.xlu0 %2387
      %2389 = vrot.lane.b32.xlu0 %v2355, 120
      %v2390 = vpop.permute.xlu0 %2389
      %2391 = vrot.lane.b32.xlu0 %v2356, 120
      %v2392 = vpop.permute.xlu0 %2391
      %2393 = vrot.lane.b32.xlu0 %v2357, 120
      %v2394 = vpop.permute.xlu0 %2393
      %2395 = vrot.lane.b32.xlu0 %v2358, 120
      %v2396 = vpop.permute.xlu0 %2395
      %2397 = vrot.lane.b32.xlu0 %v2359, 120
      %v2398 = vpop.permute.xlu0 %2397
      %2399 = vrot.lane.b32.xlu0 %v2360, 120
      %v2400 = vpop.permute.xlu0 %2399
      %2401 = vrot.lane.b32.xlu0 %v2361, 120
      %v2402 = vpop.permute.xlu0 %2401
      %vm2403 = vcmp.lt.s32.totalorder %v2212, 120
      %v2404 = vsel %vm2403, %v2400, %v2402
      %v2405 = vsel %vm2403, %v2398, %v2400
      %v2406 = vsel %vm2403, %v2396, %v2398
      %v2407 = vsel %vm2403, %v2394, %v2396
      %v2408 = vsel %vm2403, %v2392, %v2394
      %v2409 = vsel %vm2403, %v2390, %v2392
      %v2410 = vsel %vm2403, %v2388, %v2390
      %v2411 = vsel %vm2403, %v2402, %v2388
      %2412 = vrot.lane.b32.xlu0 %v2212, 8
      %v2413 = vpop.permute.xlu0 %2412
      %2414 = vrot.lane.b32.xlu0 %v2213, 8
      %v2415 = vpop.permute.xlu0 %2414
      %2416 = vrot.lane.b32.xlu0 %v2214, 8
      %v2417 = vpop.permute.xlu0 %2416
      %2418 = vrot.lane.b32.xlu0 %v2215, 8
      %v2419 = vpop.permute.xlu0 %2418
      %2420 = vrot.lane.b32.xlu0 %v2216, 8
      %v2421 = vpop.permute.xlu0 %2420
      %2422 = vrot.lane.b32.xlu0 %v2217, 8
      %v2423 = vpop.permute.xlu0 %2422
      %2424 = vrot.lane.b32.xlu0 %v2218, 8
      %v2425 = vpop.permute.xlu0 %2424
      %2426 = vrot.lane.b32.xlu0 %v2219, 8
      %v2427 = vpop.permute.xlu0 %2426
      %v2428 = vsel %vm2378, %v2425, %v2427
      %v2429 = vsel %vm2378, %v2423, %v2425
      %v2430 = vsel %vm2378, %v2421, %v2423
      %v2431 = vsel %vm2378, %v2419, %v2421
      %v2432 = vsel %vm2378, %v2417, %v2419
      %v2433 = vsel %vm2378, %v2415, %v2417
      %v2434 = vsel %vm2378, %v2413, %v2415
      %v2435 = vsel %vm2378, %v2427, %v2413
      %v2436 = vxor.u32 %v2212, 8
      %v2437 = vxor.u32 %v2213, 8
      %v2438 = vxor.u32 %v2214, 8
      %v2439 = vxor.u32 %v2215, 8
      %v2440 = vxor.u32 %v2216, 8
      %v2441 = vxor.u32 %v2217, 8
      %v2442 = vxor.u32 %v2218, 8
      %v2443 = vxor.u32 %v2219, 8
      %vm2444 = vcmp.eq.s32.totalorder %v2435, %v2436
      %vm2445 = vcmp.eq.s32.totalorder %v2434, %v2437
      %vm2446 = vcmp.eq.s32.totalorder %v2433, %v2438
      %vm2447 = vcmp.eq.s32.totalorder %v2432, %v2439
      %vm2448 = vcmp.eq.s32.totalorder %v2431, %v2440
      %vm2449 = vcmp.eq.s32.totalorder %v2430, %v2441
      %vm2450 = vcmp.eq.s32.totalorder %v2429, %v2442
      %vm2451 = vcmp.eq.s32.totalorder %v2428, %v2443
      %v2452 = vsel %vm2444, %v2386, %v2410
      %v2453 = vsel %vm2445, %v2385, %v2409
      %v2454 = vsel %vm2446, %v2384, %v2408
      %v2455 = vsel %vm2447, %v2383, %v2407
      %v2456 = vsel %vm2448, %v2382, %v2406
      %v2457 = vsel %vm2449, %v2381, %v2405
      %v2458 = vsel %vm2450, %v2380, %v2404
      %v2459 = vsel %vm2451, %v2379, %v2411
      %2460 = vrot.lane.b32.xlu0 %v2452, 16
      %v2461 = vpop.permute.xlu0 %2460
      %2462 = vrot.lane.b32.xlu0 %v2453, 16
      %v2463 = vpop.permute.xlu0 %2462
      %2464 = vrot.lane.b32.xlu0 %v2454, 16
      %v2465 = vpop.permute.xlu0 %2464
      %2466 = vrot.lane.b32.xlu0 %v2455, 16
      %v2467 = vpop.permute.xlu0 %2466
      %2468 = vrot.lane.b32.xlu0 %v2456, 16
      %v2469 = vpop.permute.xlu0 %2468
      %2470 = vrot.lane.b32.xlu0 %v2457, 16
      %v2471 = vpop.permute.xlu0 %2470
      %2472 = vrot.lane.b32.xlu0 %v2458, 16
      %v2473 = vpop.permute.xlu0 %2472
      %2474 = vrot.lane.b32.xlu0 %v2459, 16
      %v2475 = vpop.permute.xlu0 %2474
      %vm2476 = vcmp.lt.s32.totalorder %v2212, 16
      %v2477 = vsel %vm2476, %v2473, %v2475
      %v2478 = vsel %vm2476, %v2471, %v2473
      %v2479 = vsel %vm2476, %v2469, %v2471
      %v2480 = vsel %vm2476, %v2467, %v2469
      %v2481 = vsel %vm2476, %v2465, %v2467
      %v2482 = vsel %vm2476, %v2463, %v2465
      %v2483 = vsel %vm2476, %v2461, %v2463
      %v2484 = vsel %vm2476, %v2475, %v2461
      %2485 = vrot.lane.b32.xlu0 %v2452, 112
      %v2486 = vpop.permute.xlu0 %2485
      %2487 = vrot.lane.b32.xlu0 %v2453, 112
      %v2488 = vpop.permute.xlu0 %2487
      %2489 = vrot.lane.b32.xlu0 %v2454, 112
      %v2490 = vpop.permute.xlu0 %2489
      %2491 = vrot.lane.b32.xlu0 %v2455, 112
      %v2492 = vpop.permute.xlu0 %2491
      %2493 = vrot.lane.b32.xlu0 %v2456, 112
      %v2494 = vpop.permute.xlu0 %2493
      %2495 = vrot.lane.b32.xlu0 %v2457, 112
      %v2496 = vpop.permute.xlu0 %2495
      %2497 = vrot.lane.b32.xlu0 %v2458, 112
      %v2498 = vpop.permute.xlu0 %2497
      %2499 = vrot.lane.b32.xlu0 %v2459, 112
      %v2500 = vpop.permute.xlu0 %2499
      %vm2501 = vcmp.lt.s32.totalorder %v2212, 112
      %v2502 = vsel %vm2501, %v2498, %v2500
      %v2503 = vsel %vm2501, %v2496, %v2498
      %v2504 = vsel %vm2501, %v2494, %v2496
      %v2505 = vsel %vm2501, %v2492, %v2494
      %v2506 = vsel %vm2501, %v2490, %v2492
      %v2507 = vsel %vm2501, %v2488, %v2490
      %v2508 = vsel %vm2501, %v2486, %v2488
      %v2509 = vsel %vm2501, %v2500, %v2486
      %2510 = vrot.lane.b32.xlu0 %v2212, 16
      %v2511 = vpop.permute.xlu0 %2510
      %2512 = vrot.lane.b32.xlu0 %v2213, 16
      %v2513 = vpop.permute.xlu0 %2512
      %2514 = vrot.lane.b32.xlu0 %v2214, 16
      %v2515 = vpop.permute.xlu0 %2514
      %2516 = vrot.lane.b32.xlu0 %v2215, 16
      %v2517 = vpop.permute.xlu0 %2516
      %2518 = vrot.lane.b32.xlu0 %v2216, 16
      %v2519 = vpop.permute.xlu0 %2518
      %2520 = vrot.lane.b32.xlu0 %v2217, 16
      %v2521 = vpop.permute.xlu0 %2520
      %2522 = vrot.lane.b32.xlu0 %v2218, 16
      %v2523 = vpop.permute.xlu0 %2522
      %2524 = vrot.lane.b32.xlu0 %v2219, 16
      %v2525 = vpop.permute.xlu0 %2524
      %v2526 = vsel %vm2476, %v2523, %v2525
      %v2527 = vsel %vm2476, %v2521, %v2523
      %v2528 = vsel %vm2476, %v2519, %v2521
      %v2529 = vsel %vm2476, %v2517, %v2519
      %v2530 = vsel %vm2476, %v2515, %v2517
      %v2531 = vsel %vm2476, %v2513, %v2515
      %v2532 = vsel %vm2476, %v2511, %v2513
      %v2533 = vsel %vm2476, %v2525, %v2511
      %v2534 = vxor.u32 %v2212, 16
      %v2535 = vxor.u32 %v2213, 16
      %v2536 = vxor.u32 %v2214, 16
      %v2537 = vxor.u32 %v2215, 16
      %v2538 = vxor.u32 %v2216, 16
      %v2539 = vxor.u32 %v2217, 16
      %v2540 = vxor.u32 %v2218, 16
      %v2541 = vxor.u32 %v2219, 16
      %vm2542 = vcmp.eq.s32.totalorder %v2533, %v2534
      %vm2543 = vcmp.eq.s32.totalorder %v2532, %v2535
      %vm2544 = vcmp.eq.s32.totalorder %v2531, %v2536
      %vm2545 = vcmp.eq.s32.totalorder %v2530, %v2537
      %vm2546 = vcmp.eq.s32.totalorder %v2529, %v2538
      %vm2547 = vcmp.eq.s32.totalorder %v2528, %v2539
      %vm2548 = vcmp.eq.s32.totalorder %v2527, %v2540
      %vm2549 = vcmp.eq.s32.totalorder %v2526, %v2541
      %v2550 = vsel %vm2542, %v2484, %v2508
      %v2551 = vsel %vm2543, %v2483, %v2507
      %v2552 = vsel %vm2544, %v2482, %v2506
      %v2553 = vsel %vm2545, %v2481, %v2505
      %v2554 = vsel %vm2546, %v2480, %v2504
      %v2555 = vsel %vm2547, %v2479, %v2503
      %v2556 = vsel %vm2548, %v2478, %v2502
      %v2557 = vsel %vm2549, %v2477, %v2509
      %2558 = vrot.lane.b32.xlu0 %v2550, 32
      %v2559 = vpop.permute.xlu0 %2558
      %2560 = vrot.lane.b32.xlu0 %v2551, 32
      %v2561 = vpop.permute.xlu0 %2560
      %2562 = vrot.lane.b32.xlu0 %v2552, 32
      %v2563 = vpop.permute.xlu0 %2562
      %2564 = vrot.lane.b32.xlu0 %v2553, 32
      %v2565 = vpop.permute.xlu0 %2564
      %2566 = vrot.lane.b32.xlu0 %v2554, 32
      %v2567 = vpop.permute.xlu0 %2566
      %2568 = vrot.lane.b32.xlu0 %v2555, 32
      %v2569 = vpop.permute.xlu0 %2568
      %2570 = vrot.lane.b32.xlu0 %v2556, 32
      %v2571 = vpop.permute.xlu0 %2570
      %2572 = vrot.lane.b32.xlu0 %v2557, 32
      %v2573 = vpop.permute.xlu0 %2572
      %vm2574 = vcmp.lt.s32.totalorder %v2212, 32
      %v2575 = vsel %vm2574, %v2571, %v2573
      %v2576 = vsel %vm2574, %v2569, %v2571
      %v2577 = vsel %vm2574, %v2567, %v2569
      %v2578 = vsel %vm2574, %v2565, %v2567
      %v2579 = vsel %vm2574, %v2563, %v2565
      %v2580 = vsel %vm2574, %v2561, %v2563
      %v2581 = vsel %vm2574, %v2559, %v2561
      %v2582 = vsel %vm2574, %v2573, %v2559
      %2583 = vrot.lane.b32.xlu0 %v2550, 96
      %v2584 = vpop.permute.xlu0 %2583
      %2585 = vrot.lane.b32.xlu0 %v2551, 96
      %v2586 = vpop.permute.xlu0 %2585
      %2587 = vrot.lane.b32.xlu0 %v2552, 96
      %v2588 = vpop.permute.xlu0 %2587
      %2589 = vrot.lane.b32.xlu0 %v2553, 96
      %v2590 = vpop.permute.xlu0 %2589
      %2591 = vrot.lane.b32.xlu0 %v2554, 96
      %v2592 = vpop.permute.xlu0 %2591
      %2593 = vrot.lane.b32.xlu0 %v2555, 96
      %v2594 = vpop.permute.xlu0 %2593
      %2595 = vrot.lane.b32.xlu0 %v2556, 96
      %v2596 = vpop.permute.xlu0 %2595
      %2597 = vrot.lane.b32.xlu0 %v2557, 96
      %v2598 = vpop.permute.xlu0 %2597
      %vm2599 = vcmp.lt.s32.totalorder %v2212, 96
      %v2600 = vsel %vm2599, %v2596, %v2598
      %v2601 = vsel %vm2599, %v2594, %v2596
      %v2602 = vsel %vm2599, %v2592, %v2594
      %v2603 = vsel %vm2599, %v2590, %v2592
      %v2604 = vsel %vm2599, %v2588, %v2590
      %v2605 = vsel %vm2599, %v2586, %v2588
      %v2606 = vsel %vm2599, %v2584, %v2586
      %v2607 = vsel %vm2599, %v2598, %v2584
      %2608 = vrot.lane.b32.xlu0 %v2212, 32
      %v2609 = vpop.permute.xlu0 %2608
      %2610 = vrot.lane.b32.xlu0 %v2213, 32
      %v2611 = vpop.permute.xlu0 %2610
      %2612 = vrot.lane.b32.xlu0 %v2214, 32
      %v2613 = vpop.permute.xlu0 %2612
      %2614 = vrot.lane.b32.xlu0 %v2215, 32
      %v2615 = vpop.permute.xlu0 %2614
      %2616 = vrot.lane.b32.xlu0 %v2216, 32
      %v2617 = vpop.permute.xlu0 %2616
      %2618 = vrot.lane.b32.xlu0 %v2217, 32
      %v2619 = vpop.permute.xlu0 %2618
      %2620 = vrot.lane.b32.xlu0 %v2218, 32
      %v2621 = vpop.permute.xlu0 %2620
      %2622 = vrot.lane.b32.xlu0 %v2219, 32
      %v2623 = vpop.permute.xlu0 %2622
      %v2624 = vsel %vm2574, %v2621, %v2623
      %v2625 = vsel %vm2574, %v2619, %v2621
      %v2626 = vsel %vm2574, %v2617, %v2619
      %v2627 = vsel %vm2574, %v2615, %v2617
      %v2628 = vsel %vm2574, %v2613, %v2615
      %v2629 = vsel %vm2574, %v2611, %v2613
      %v2630 = vsel %vm2574, %v2609, %v2611
      %v2631 = vsel %vm2574, %v2623, %v2609
      %v2632 = vxor.u32 %v2212, 32
      %v2633 = vxor.u32 %v2213, 32
      %v2634 = vxor.u32 %v2214, 32
      %v2635 = vxor.u32 %v2215, 32
      %v2636 = vxor.u32 %v2216, 32
      %v2637 = vxor.u32 %v2217, 32
      %v2638 = vxor.u32 %v2218, 32
      %v2639 = vxor.u32 %v2219, 32
      %vm2640 = vcmp.eq.s32.totalorder %v2631, %v2632
      %vm2641 = vcmp.eq.s32.totalorder %v2630, %v2633
      %vm2642 = vcmp.eq.s32.totalorder %v2629, %v2634
      %vm2643 = vcmp.eq.s32.totalorder %v2628, %v2635
      %vm2644 = vcmp.eq.s32.totalorder %v2627, %v2636
      %vm2645 = vcmp.eq.s32.totalorder %v2626, %v2637
      %vm2646 = vcmp.eq.s32.totalorder %v2625, %v2638
      %vm2647 = vcmp.eq.s32.totalorder %v2624, %v2639
      %v2648 = vsel %vm2640, %v2582, %v2606
      %v2649 = vsel %vm2641, %v2581, %v2605
      %v2650 = vsel %vm2642, %v2580, %v2604
      %v2651 = vsel %vm2643, %v2579, %v2603
      %v2652 = vsel %vm2644, %v2578, %v2602
      %v2653 = vsel %vm2645, %v2577, %v2601
      %v2654 = vsel %vm2646, %v2576, %v2600
      %v2655 = vsel %vm2647, %v2575, %v2607
      %2656 = vrot.lane.b32.xlu0 %v2648, 64
      %v2657 = vpop.permute.xlu0 %2656
      %2658 = vrot.lane.b32.xlu0 %v2649, 64
      %v2659 = vpop.permute.xlu0 %2658
      %2660 = vrot.lane.b32.xlu0 %v2650, 64
      %v2661 = vpop.permute.xlu0 %2660
      %2662 = vrot.lane.b32.xlu0 %v2651, 64
      %v2663 = vpop.permute.xlu0 %2662
      %2664 = vrot.lane.b32.xlu0 %v2652, 64
      %v2665 = vpop.permute.xlu0 %2664
      %2666 = vrot.lane.b32.xlu0 %v2653, 64
      %v2667 = vpop.permute.xlu0 %2666
      %2668 = vrot.lane.b32.xlu0 %v2654, 64
      %v2669 = vpop.permute.xlu0 %2668
      %2670 = vrot.lane.b32.xlu0 %v2655, 64
      %v2671 = vpop.permute.xlu0 %2670
      %vm2672 = vcmp.lt.s32.totalorder %v2212, 64
      %v2673 = vsel %vm2672, %v2669, %v2671
      %v2674 = vsel %vm2672, %v2667, %v2669
      %v2675 = vsel %vm2672, %v2665, %v2667
      %v2676 = vsel %vm2672, %v2663, %v2665
      %v2677 = vsel %vm2672, %v2661, %v2663
      %v2678 = vsel %vm2672, %v2659, %v2661
      %v2679 = vsel %vm2672, %v2657, %v2659
      %v2680 = vsel %vm2672, %v2671, %v2657
      %2681 = vrot.lane.b32.xlu0 %v2212, 64
      %v2682 = vpop.permute.xlu0 %2681
      %2683 = vrot.lane.b32.xlu0 %v2213, 64
      %v2684 = vpop.permute.xlu0 %2683
      %2685 = vrot.lane.b32.xlu0 %v2214, 64
      %v2686 = vpop.permute.xlu0 %2685
      %2687 = vrot.lane.b32.xlu0 %v2215, 64
      %v2688 = vpop.permute.xlu0 %2687
      %2689 = vrot.lane.b32.xlu0 %v2216, 64
      %v2690 = vpop.permute.xlu0 %2689
      %2691 = vrot.lane.b32.xlu0 %v2217, 64
      %v2692 = vpop.permute.xlu0 %2691
      %2693 = vrot.lane.b32.xlu0 %v2218, 64
      %v2694 = vpop.permute.xlu0 %2693
      %2695 = vrot.lane.b32.xlu0 %v2219, 64
      %v2696 = vpop.permute.xlu0 %2695
      %v2697 = vsel %vm2672, %v2694, %v2696
      %v2698 = vsel %vm2672, %v2692, %v2694
      %v2699 = vsel %vm2672, %v2690, %v2692
      %v2700 = vsel %vm2672, %v2688, %v2690
      %v2701 = vsel %vm2672, %v2686, %v2688
      %v2702 = vsel %vm2672, %v2684, %v2686
      %v2703 = vsel %vm2672, %v2682, %v2684
      %v2704 = vsel %vm2672, %v2696, %v2682
      %v2705 = vxor.u32 %v2212, 64
      %v2706 = vxor.u32 %v2213, 64
      %v2707 = vxor.u32 %v2214, 64
      %v2708 = vxor.u32 %v2215, 64
      %v2709 = vxor.u32 %v2216, 64
      %v2710 = vxor.u32 %v2217, 64
      %v2711 = vxor.u32 %v2218, 64
      %v2712 = vxor.u32 %v2219, 64
      %vm2713 = vcmp.eq.s32.totalorder %v2704, %v2705
      %vm2714 = vcmp.eq.s32.totalorder %v2703, %v2706
      %vm2715 = vcmp.eq.s32.totalorder %v2702, %v2707
      %vm2716 = vcmp.eq.s32.totalorder %v2701, %v2708
      %vm2717 = vcmp.eq.s32.totalorder %v2700, %v2709
      %vm2718 = vcmp.eq.s32.totalorder %v2699, %v2710
      %vm2719 = vcmp.eq.s32.totalorder %v2698, %v2711
      %vm2720 = vcmp.eq.s32.totalorder %v2697, %v2712
      %v2721 = vsel %vm2713, %v2680, %v2679
      %v2722 = vsel %vm2714, %v2679, %v2678
      %v2723 = vsel %vm2715, %v2678, %v2677
      %v2724 = vsel %vm2716, %v2677, %v2676
      %v2725 = vsel %vm2717, %v2676, %v2675
      %v2726 = vsel %vm2718, %v2675, %v2674
      %v2727 = vsel %vm2719, %v2674, %v2673
      %v2728 = vsel %vm2720, %v2673, %v2680
      %v2729 = vxor.u32 %v2212, 128
      %v2730 = vxor.u32 %v2213, 128
      %v2731 = vxor.u32 %v2214, 128
      %v2732 = vxor.u32 %v2215, 128
      %v2733 = vxor.u32 %v2216, 128
      %v2734 = vxor.u32 %v2217, 128
      %v2735 = vxor.u32 %v2218, 128
      %v2736 = vxor.u32 %v2219, 128
      %vm2737 = vcmp.eq.s32.totalorder %v2219, %v2729
      %vm2738 = vcmp.eq.s32.totalorder %v2212, %v2730
      %vm2739 = vcmp.eq.s32.totalorder %v2213, %v2731
      %vm2740 = vcmp.eq.s32.totalorder %v2214, %v2732
      %vm2741 = vcmp.eq.s32.totalorder %v2215, %v2733
      %vm2742 = vcmp.eq.s32.totalorder %v2216, %v2734
      %vm2743 = vcmp.eq.s32.totalorder %v2217, %v2735
      %vm2744 = vcmp.eq.s32.totalorder %v2218, %v2736
      %v2745 = vsel %vm2737, %v2728, %v2722
      %v2746 = vsel %vm2738, %v2721, %v2723
      %v2747 = vsel %vm2739, %v2722, %v2724
      %v2748 = vsel %vm2740, %v2723, %v2725
      %v2749 = vsel %vm2741, %v2724, %v2726
      %v2750 = vsel %vm2742, %v2725, %v2727
      %v2751 = vsel %vm2743, %v2726, %v2728
      %v2752 = vsel %vm2744, %v2727, %v2721
      %v2753 = vxor.u32 %v2212, 256
      %v2754 = vxor.u32 %v2213, 256
      %v2755 = vxor.u32 %v2214, 256
      %v2756 = vxor.u32 %v2215, 256
      %v2757 = vxor.u32 %v2216, 256
      %v2758 = vxor.u32 %v2217, 256
      %v2759 = vxor.u32 %v2218, 256
      %v2760 = vxor.u32 %v2219, 256
      %vm2761 = vcmp.eq.s32.totalorder %v2218, %v2753
      %vm2762 = vcmp.eq.s32.totalorder %v2219, %v2754
      %vm2763 = vcmp.eq.s32.totalorder %v2212, %v2755
      %vm2764 = vcmp.eq.s32.totalorder %v2213, %v2756
      %vm2765 = vcmp.eq.s32.totalorder %v2214, %v2757
      %vm2766 = vcmp.eq.s32.totalorder %v2215, %v2758
      %vm2767 = vcmp.eq.s32.totalorder %v2216, %v2759
      %vm2768 = vcmp.eq.s32.totalorder %v2217, %v2760
      %v2769 = vsel %vm2761, %v2751, %v2747
      %v2770 = vsel %vm2762, %v2752, %v2748
      %v2771 = vsel %vm2763, %v2745, %v2749
      %v2772 = vsel %vm2764, %v2746, %v2750
      %v2773 = vsel %vm2765, %v2747, %v2751
      %v2774 = vsel %vm2766, %v2748, %v2752
      %v2775 = vsel %vm2767, %v2749, %v2745
      %v2776 = vsel %vm2768, %v2750, %v2746
      %v2785 = vcombine.low %v2773, %v2774
      %v2786 = vcombine.low %v2775, %v2776
      %v2788 = vunpack.c.l.s4 1983009808
      %v2789 = vunpack.c.0.s8 %v2788
      %v2790 = vlaneseq
      %v2791 = vshrl.u32 %v2790, 7
      %v2792 = vsub.s32 %v2789, %v2791
      %v2793 = vrot.slane %v2785, %v2792
      %v2795 = vunpack.c.l.s4 1983009808
      %v2796 = vunpack.c.0.s8 %v2795
      %v2797 = vlaneseq
      %v2798 = vshrl.u32 %v2797, 7
      %v2799 = vsub.s32 %v2796, %v2798
      %v2800 = vrot.slane %v2786, %v2799
      %v2801 = vcombine.low %v2793, %v2800
      %v2802 = vcombine.low %v2769, %v2770
      %v2803 = vcombine.low %v2771, %v2772
      %v2805 = vunpack.c.l.s4 1983009808
      %v2806 = vunpack.c.0.s8 %v2805
      %v2807 = vlaneseq
      %v2808 = vshrl.u32 %v2807, 7
      %v2809 = vsub.s32 %v2806, %v2808
      %v2810 = vrot.slane %v2802, %v2809
      %v2812 = vunpack.c.l.s4 1983009808
      %v2813 = vunpack.c.0.s8 %v2812
      %v2814 = vlaneseq
      %v2815 = vshrl.u32 %v2814, 7
      %v2816 = vsub.s32 %v2813, %v2815
      %v2817 = vrot.slane %v2803, %v2816
      %v2818 = vcombine.low %v2810, %v2817
      %2821 = vst [vmem:[#allocation10] sm:$0xff] %v2801
      %2822 = vst [vmem:[#allocation10 + $0x8] sm:$0xff] %v2818
    $region53: #{tpu_custom_call.1} parent=1 // pred_fallthru
      _
    // Predicated region
    $region54: #{tpu_custom_call.1} parent=1 // pred_check
      _
    $region55: #{tpu_custom_call.1} parent=1 // pred_check_branch
      %2824 = sbr.rel (%p131) target = $region57
    $region56: #{tpu_custom_call.1} parent=1 // pred_region
      %v2825 = vld [vmem:[%s119] sm:$0xff]
      %2826 = vst [vmem:[#allocation12] sm:$0xff] %v2825
    $region57: #{tpu_custom_call.1} parent=1 // pred_fallthru
      _
    // Predicated region
    $region58: #{tpu_custom_call.1} parent=1 // pred_check
      _
    $region59: #{tpu_custom_call.1} parent=1 // pred_check_branch
      %2828 = sbr.rel (%p140) target = $region61
    $region60: #{tpu_custom_call.1} parent=1 // pred_region
      %v2829 = vld [vmem:[%s119] sm:$0xff]
      %v2830 = vlaneseq
      %v2831 = vand.u32 %v2830, 127
      %v2832 = vadd.s32 %v2831, 128
      %v2833 = vadd.s32 %v2831, 256
      %v2834 = vadd.s32 %v2831, 384
      %v2836 = vcombine.high %v2829, %v2829
      %v2838 = vunpack.c.l.s4 1983009808
      %v2839 = vunpack.c.0.s8 %v2838
      %v2840 = vlaneseq
      %v2841 = vshrl.u32 %v2840, 7
      %v2842 = vsub.s32 %v2839, %v2841
      %v2843 = vrot.slane %v2829, %v2842
      %v2845 = vunpack.c.l.s4 1983009808
      %v2846 = vunpack.c.0.s8 %v2845
      %v2847 = vlaneseq
      %v2848 = vshrl.u32 %v2847, 7
      %v2849 = vsub.s32 %v2846, %v2848
      %v2850 = vrot.slane %v2836, %v2849
      %v2851 = vcombine.high %v2843, %v2843
      %v2852 = vcombine.high %v2850, %v2850
      %2857 = vrot.lane.b32.xlu0 %v2843, 2
      %v2858 = vpop.permute.xlu0 %2857
      %2859 = vrot.lane.b32.xlu0 %v2851, 2
      %v2860 = vpop.permute.xlu0 %2859
      %2861 = vrot.lane.b32.xlu0 %v2850, 2
      %v2862 = vpop.permute.xlu0 %2861
      %2863 = vrot.lane.b32.xlu0 %v2852, 2
      %v2864 = vpop.permute.xlu0 %2863
      %vm2865 = vcmp.lt.s32.totalorder %v2831, 2
      %v2866 = vsel %vm2865, %v2862, %v2864
      %v2867 = vsel %vm2865, %v2860, %v2862
      %v2868 = vsel %vm2865, %v2858, %v2860
      %v2869 = vsel %vm2865, %v2864, %v2858
      %2870 = vrot.lane.b32.xlu0 %v2843, 126
      %v2871 = vpop.permute.xlu0 %2870
      %2872 = vrot.lane.b32.xlu0 %v2851, 126
      %v2873 = vpop.permute.xlu0 %2872
      %2874 = vrot.lane.b32.xlu0 %v2850, 126
      %v2875 = vpop.permute.xlu0 %2874
      %2876 = vrot.lane.b32.xlu0 %v2852, 126
      %v2877 = vpop.permute.xlu0 %2876
      %vm2878 = vcmp.lt.s32.totalorder %v2831, 126
      %v2879 = vsel %vm2878, %v2875, %v2877
      %v2880 = vsel %vm2878, %v2873, %v2875
      %v2881 = vsel %vm2878, %v2871, %v2873
      %v2882 = vsel %vm2878, %v2877, %v2871
      %2883 = vrot.lane.b32.xlu0 %v2831, 2
      %v2884 = vpop.permute.xlu0 %2883
      %2885 = vrot.lane.b32.xlu0 %v2832, 2
      %v2886 = vpop.permute.xlu0 %2885
      %2887 = vrot.lane.b32.xlu0 %v2833, 2
      %v2888 = vpop.permute.xlu0 %2887
      %2889 = vrot.lane.b32.xlu0 %v2834, 2
      %v2890 = vpop.permute.xlu0 %2889
      %v2891 = vsel %vm2865, %v2888, %v2890
      %v2892 = vsel %vm2865, %v2886, %v2888
      %v2893 = vsel %vm2865, %v2884, %v2886
      %v2894 = vsel %vm2865, %v2890, %v2884
      %v2895 = vxor.u32 %v2831, 2
      %v2896 = vxor.u32 %v2832, 2
      %v2897 = vxor.u32 %v2833, 2
      %v2898 = vxor.u32 %v2834, 2
      %vm2899 = vcmp.eq.s32.totalorder %v2894, %v2895
      %vm2900 = vcmp.eq.s32.totalorder %v2893, %v2896
      %vm2901 = vcmp.eq.s32.totalorder %v2892, %v2897
      %vm2902 = vcmp.eq.s32.totalorder %v2891, %v2898
      %v2903 = vsel %vm2899, %v2869, %v2881
      %v2904 = vsel %vm2900, %v2868, %v2880
      %v2905 = vsel %vm2901, %v2867, %v2879
      %v2906 = vsel %vm2902, %v2866, %v2882
      %2907 = vrot.lane.b32.xlu0 %v2903, 4
      %v2908 = vpop.permute.xlu0 %2907
      %2909 = vrot.lane.b32.xlu0 %v2904, 4
      %v2910 = vpop.permute.xlu0 %2909
      %2911 = vrot.lane.b32.xlu0 %v2905, 4
      %v2912 = vpop.permute.xlu0 %2911
      %2913 = vrot.lane.b32.xlu0 %v2906, 4
      %v2914 = vpop.permute.xlu0 %2913
      %vm2915 = vcmp.lt.s32.totalorder %v2831, 4
      %v2916 = vsel %vm2915, %v2912, %v2914
      %v2917 = vsel %vm2915, %v2910, %v2912
      %v2918 = vsel %vm2915, %v2908, %v2910
      %v2919 = vsel %vm2915, %v2914, %v2908
      %2920 = vrot.lane.b32.xlu0 %v2903, 124
      %v2921 = vpop.permute.xlu0 %2920
      %2922 = vrot.lane.b32.xlu0 %v2904, 124
      %v2923 = vpop.permute.xlu0 %2922
      %2924 = vrot.lane.b32.xlu0 %v2905, 124
      %v2925 = vpop.permute.xlu0 %2924
      %2926 = vrot.lane.b32.xlu0 %v2906, 124
      %v2927 = vpop.permute.xlu0 %2926
      %vm2928 = vcmp.lt.s32.totalorder %v2831, 124
      %v2929 = vsel %vm2928, %v2925, %v2927
      %v2930 = vsel %vm2928, %v2923, %v2925
      %v2931 = vsel %vm2928, %v2921, %v2923
      %v2932 = vsel %vm2928, %v2927, %v2921
      %2933 = vrot.lane.b32.xlu0 %v2831, 4
      %v2934 = vpop.permute.xlu0 %2933
      %2935 = vrot.lane.b32.xlu0 %v2832, 4
      %v2936 = vpop.permute.xlu0 %2935
      %2937 = vrot.lane.b32.xlu0 %v2833, 4
      %v2938 = vpop.permute.xlu0 %2937
      %2939 = vrot.lane.b32.xlu0 %v2834, 4
      %v2940 = vpop.permute.xlu0 %2939
      %v2941 = vsel %vm2915, %v2938, %v2940
      %v2942 = vsel %vm2915, %v2936, %v2938
      %v2943 = vsel %vm2915, %v2934, %v2936
      %v2944 = vsel %vm2915, %v2940, %v2934
      %v2945 = vxor.u32 %v2831, 4
      %v2946 = vxor.u32 %v2832, 4
      %v2947 = vxor.u32 %v2833, 4
      %v2948 = vxor.u32 %v2834, 4
      %vm2949 = vcmp.eq.s32.totalorder %v2944, %v2945
      %vm2950 = vcmp.eq.s32.totalorder %v2943, %v2946
      %vm2951 = vcmp.eq.s32.totalorder %v2942, %v2947
      %vm2952 = vcmp.eq.s32.totalorder %v2941, %v2948
      %v2953 = vsel %vm2949, %v2919, %v2931
      %v2954 = vsel %vm2950, %v2918, %v2930
      %v2955 = vsel %vm2951, %v2917, %v2929
      %v2956 = vsel %vm2952, %v2916, %v2932
      %2957 = vrot.lane.b32.xlu0 %v2953, 8
      %v2958 = vpop.permute.xlu0 %2957
      %2959 = vrot.lane.b32.xlu0 %v2954, 8
      %v2960 = vpop.permute.xlu0 %2959
      %2961 = vrot.lane.b32.xlu0 %v2955, 8
      %v2962 = vpop.permute.xlu0 %2961
      %2963 = vrot.lane.b32.xlu0 %v2956, 8
      %v2964 = vpop.permute.xlu0 %2963
      %vm2965 = vcmp.lt.s32.totalorder %v2831, 8
      %v2966 = vsel %vm2965, %v2962, %v2964
      %v2967 = vsel %vm2965, %v2960, %v2962
      %v2968 = vsel %vm2965, %v2958, %v2960
      %v2969 = vsel %vm2965, %v2964, %v2958
      %2970 = vrot.lane.b32.xlu0 %v2953, 120
      %v2971 = vpop.permute.xlu0 %2970
      %2972 = vrot.lane.b32.xlu0 %v2954, 120
      %v2973 = vpop.permute.xlu0 %2972
      %2974 = vrot.lane.b32.xlu0 %v2955, 120
      %v2975 = vpop.permute.xlu0 %2974
      %2976 = vrot.lane.b32.xlu0 %v2956, 120
      %v2977 = vpop.permute.xlu0 %2976
      %vm2978 = vcmp.lt.s32.totalorder %v2831, 120
      %v2979 = vsel %vm2978, %v2975, %v2977
      %v2980 = vsel %vm2978, %v2973, %v2975
      %v2981 = vsel %vm2978, %v2971, %v2973
      %v2982 = vsel %vm2978, %v2977, %v2971
      %2983 = vrot.lane.b32.xlu0 %v2831, 8
      %v2984 = vpop.permute.xlu0 %2983
      %2985 = vrot.lane.b32.xlu0 %v2832, 8
      %v2986 = vpop.permute.xlu0 %2985
      %2987 = vrot.lane.b32.xlu0 %v2833, 8
      %v2988 = vpop.permute.xlu0 %2987
      %2989 = vrot.lane.b32.xlu0 %v2834, 8
      %v2990 = vpop.permute.xlu0 %2989
      %v2991 = vsel %vm2965, %v2988, %v2990
      %v2992 = vsel %vm2965, %v2986, %v2988
      %v2993 = vsel %vm2965, %v2984, %v2986
      %v2994 = vsel %vm2965, %v2990, %v2984
      %v2995 = vxor.u32 %v2831, 8
      %v2996 = vxor.u32 %v2832, 8
      %v2997 = vxor.u32 %v2833, 8
      %v2998 = vxor.u32 %v2834, 8
      %vm2999 = vcmp.eq.s32.totalorder %v2994, %v2995
      %vm3000 = vcmp.eq.s32.totalorder %v2993, %v2996
      %vm3001 = vcmp.eq.s32.totalorder %v2992, %v2997
      %vm3002 = vcmp.eq.s32.totalorder %v2991, %v2998
      %v3003 = vsel %vm2999, %v2969, %v2981
      %v3004 = vsel %vm3000, %v2968, %v2980
      %v3005 = vsel %vm3001, %v2967, %v2979
      %v3006 = vsel %vm3002, %v2966, %v2982
      %3007 = vrot.lane.b32.xlu0 %v3003, 16
      %v3008 = vpop.permute.xlu0 %3007
      %3009 = vrot.lane.b32.xlu0 %v3004, 16
      %v3010 = vpop.permute.xlu0 %3009
      %3011 = vrot.lane.b32.xlu0 %v3005, 16
      %v3012 = vpop.permute.xlu0 %3011
      %3013 = vrot.lane.b32.xlu0 %v3006, 16
      %v3014 = vpop.permute.xlu0 %3013
      %vm3015 = vcmp.lt.s32.totalorder %v2831, 16
      %v3016 = vsel %vm3015, %v3012, %v3014
      %v3017 = vsel %vm3015, %v3010, %v3012
      %v3018 = vsel %vm3015, %v3008, %v3010
      %v3019 = vsel %vm3015, %v3014, %v3008
      %3020 = vrot.lane.b32.xlu0 %v3003, 112
      %v3021 = vpop.permute.xlu0 %3020
      %3022 = vrot.lane.b32.xlu0 %v3004, 112
      %v3023 = vpop.permute.xlu0 %3022
      %3024 = vrot.lane.b32.xlu0 %v3005, 112
      %v3025 = vpop.permute.xlu0 %3024
      %3026 = vrot.lane.b32.xlu0 %v3006, 112
      %v3027 = vpop.permute.xlu0 %3026
      %vm3028 = vcmp.lt.s32.totalorder %v2831, 112
      %v3029 = vsel %vm3028, %v3025, %v3027
      %v3030 = vsel %vm3028, %v3023, %v3025
      %v3031 = vsel %vm3028, %v3021, %v3023
      %v3032 = vsel %vm3028, %v3027, %v3021
      %3033 = vrot.lane.b32.xlu0 %v2831, 16
      %v3034 = vpop.permute.xlu0 %3033
      %3035 = vrot.lane.b32.xlu0 %v2832, 16
      %v3036 = vpop.permute.xlu0 %3035
      %3037 = vrot.lane.b32.xlu0 %v2833, 16
      %v3038 = vpop.permute.xlu0 %3037
      %3039 = vrot.lane.b32.xlu0 %v2834, 16
      %v3040 = vpop.permute.xlu0 %3039
      %v3041 = vsel %vm3015, %v3038, %v3040
      %v3042 = vsel %vm3015, %v3036, %v3038
      %v3043 = vsel %vm3015, %v3034, %v3036
      %v3044 = vsel %vm3015, %v3040, %v3034
      %v3045 = vxor.u32 %v2831, 16
      %v3046 = vxor.u32 %v2832, 16
      %v3047 = vxor.u32 %v2833, 16
      %v3048 = vxor.u32 %v2834, 16
      %vm3049 = vcmp.eq.s32.totalorder %v3044, %v3045
      %vm3050 = vcmp.eq.s32.totalorder %v3043, %v3046
      %vm3051 = vcmp.eq.s32.totalorder %v3042, %v3047
      %vm3052 = vcmp.eq.s32.totalorder %v3041, %v3048
      %v3053 = vsel %vm3049, %v3019, %v3031
      %v3054 = vsel %vm3050, %v3018, %v3030
      %v3055 = vsel %vm3051, %v3017, %v3029
      %v3056 = vsel %vm3052, %v3016, %v3032
      %v3061 = vcombine.low %v3053, %v3054
      %v3062 = vcombine.low %v3055, %v3056
      %v3064 = vunpack.c.l.s4 1983009808
      %v3065 = vunpack.c.0.s8 %v3064
      %v3066 = vlaneseq
      %v3067 = vshrl.u32 %v3066, 7
      %v3068 = vsub.s32 %v3065, %v3067
      %v3069 = vrot.slane %v3061, %v3068
      %v3071 = vunpack.c.l.s4 1983009808
      %v3072 = vunpack.c.0.s8 %v3071
      %v3073 = vlaneseq
      %v3074 = vshrl.u32 %v3073, 7
      %v3075 = vsub.s32 %v3072, %v3074
      %v3076 = vrot.slane %v3062, %v3075
      %v3077 = vcombine.low %v3069, %v3076
      %3079 = vst [vmem:[#allocation12] sm:$0xff] %v3077
    $region61: #{tpu_custom_call.1} parent=1 // pred_fallthru
      _
    // Predicated region
    $region62: #{tpu_custom_call.1} parent=1 // pred_check
      _
    $region63: #{tpu_custom_call.1} parent=1 // pred_check_branch
      %3081 = sbr.rel (%p638) target = $region65
    $region64: #{tpu_custom_call.1} parent=1 // pred_region
      %v3082 = vld [vmem:[%s119] sm:$0xff]
      %v3083 = vlaneseq
      %v3084 = vand.u32 %v3083, 127
      %v3085 = vadd.s32 %v3084, 128
      %v3086 = vadd.s32 %v3084, 256
      %v3087 = vadd.s32 %v3084, 384
      %v3089 = vcombine.high %v3082, %v3082
      %v3091 = vunpack.c.l.s4 1983009808
      %v3092 = vunpack.c.0.s8 %v3091
      %v3093 = vlaneseq
      %v3094 = vshrl.u32 %v3093, 7
      %v3095 = vsub.s32 %v3092, %v3094
      %v3096 = vrot.slane %v3082, %v3095
      %v3098 = vunpack.c.l.s4 1983009808
      %v3099 = vunpack.c.0.s8 %v3098
      %v3100 = vlaneseq
      %v3101 = vshrl.u32 %v3100, 7
      %v3102 = vsub.s32 %v3099, %v3101
      %v3103 = vrot.slane %v3089, %v3102
      %v3104 = vcombine.high %v3096, %v3096
      %v3105 = vcombine.high %v3103, %v3103
      %3110 = vrot.lane.b32.xlu0 %v3096, 32
      %v3111 = vpop.permute.xlu0 %3110
      %3112 = vrot.lane.b32.xlu0 %v3104, 32
      %v3113 = vpop.permute.xlu0 %3112
      %3114 = vrot.lane.b32.xlu0 %v3103, 32
      %v3115 = vpop.permute.xlu0 %3114
      %3116 = vrot.lane.b32.xlu0 %v3105, 32
      %v3117 = vpop.permute.xlu0 %3116
      %vm3118 = vcmp.lt.s32.totalorder %v3084, 32
      %v3119 = vsel %vm3118, %v3115, %v3117
      %v3120 = vsel %vm3118, %v3113, %v3115
      %v3121 = vsel %vm3118, %v3111, %v3113
      %v3122 = vsel %vm3118, %v3117, %v3111
      %3123 = vrot.lane.b32.xlu0 %v3096, 96
      %v3124 = vpop.permute.xlu0 %3123
      %3125 = vrot.lane.b32.xlu0 %v3104, 96
      %v3126 = vpop.permute.xlu0 %3125
      %3127 = vrot.lane.b32.xlu0 %v3103, 96
      %v3128 = vpop.permute.xlu0 %3127
      %3129 = vrot.lane.b32.xlu0 %v3105, 96
      %v3130 = vpop.permute.xlu0 %3129
      %vm3131 = vcmp.lt.s32.totalorder %v3084, 96
      %v3132 = vsel %vm3131, %v3128, %v3130
      %v3133 = vsel %vm3131, %v3126, %v3128
      %v3134 = vsel %vm3131, %v3124, %v3126
      %v3135 = vsel %vm3131, %v3130, %v3124
      %3136 = vrot.lane.b32.xlu0 %v3084, 32
      %v3137 = vpop.permute.xlu0 %3136
      %3138 = vrot.lane.b32.xlu0 %v3085, 32
      %v3139 = vpop.permute.xlu0 %3138
      %3140 = vrot.lane.b32.xlu0 %v3086, 32
      %v3141 = vpop.permute.xlu0 %3140
      %3142 = vrot.lane.b32.xlu0 %v3087, 32
      %v3143 = vpop.permute.xlu0 %3142
      %v3144 = vsel %vm3118, %v3141, %v3143
      %v3145 = vsel %vm3118, %v3139, %v3141
      %v3146 = vsel %vm3118, %v3137, %v3139
      %v3147 = vsel %vm3118, %v3143, %v3137
      %v3148 = vxor.u32 %v3084, 32
      %v3149 = vxor.u32 %v3085, 32
      %v3150 = vxor.u32 %v3086, 32
      %v3151 = vxor.u32 %v3087, 32
      %vm3152 = vcmp.eq.s32.totalorder %v3147, %v3148
      %vm3153 = vcmp.eq.s32.totalorder %v3146, %v3149
      %vm3154 = vcmp.eq.s32.totalorder %v3145, %v3150
      %vm3155 = vcmp.eq.s32.totalorder %v3144, %v3151
      %v3156 = vsel %vm3152, %v3122, %v3134
      %v3157 = vsel %vm3153, %v3121, %v3133
      %v3158 = vsel %vm3154, %v3120, %v3132
      %v3159 = vsel %vm3155, %v3119, %v3135
      %3160 = vrot.lane.b32.xlu0 %v3156, 64
      %v3161 = vpop.permute.xlu0 %3160
      %3162 = vrot.lane.b32.xlu0 %v3157, 64
      %v3163 = vpop.permute.xlu0 %3162
      %3164 = vrot.lane.b32.xlu0 %v3158, 64
      %v3165 = vpop.permute.xlu0 %3164
      %3166 = vrot.lane.b32.xlu0 %v3159, 64
      %v3167 = vpop.permute.xlu0 %3166
      %vm3168 = vcmp.lt.s32.totalorder %v3084, 64
      %v3169 = vsel %vm3168, %v3165, %v3167
      %v3170 = vsel %vm3168, %v3163, %v3165
      %v3171 = vsel %vm3168, %v3161, %v3163
      %v3172 = vsel %vm3168, %v3167, %v3161
      %3173 = vrot.lane.b32.xlu0 %v3084, 64
      %v3174 = vpop.permute.xlu0 %3173
      %3175 = vrot.lane.b32.xlu0 %v3085, 64
      %v3176 = vpop.permute.xlu0 %3175
      %3177 = vrot.lane.b32.xlu0 %v3086, 64
      %v3178 = vpop.permute.xlu0 %3177
      %3179 = vrot.lane.b32.xlu0 %v3087, 64
      %v3180 = vpop.permute.xlu0 %3179
      %v3181 = vsel %vm3168, %v3178, %v3180
      %v3182 = vsel %vm3168, %v3176, %v3178
      %v3183 = vsel %vm3168, %v3174, %v3176
      %v3184 = vsel %vm3168, %v3180, %v3174
      %v3185 = vxor.u32 %v3084, 64
      %v3186 = vxor.u32 %v3085, 64
      %v3187 = vxor.u32 %v3086, 64
      %v3188 = vxor.u32 %v3087, 64
      %vm3189 = vcmp.eq.s32.totalorder %v3184, %v3185
      %vm3190 = vcmp.eq.s32.totalorder %v3183, %v3186
      %vm3191 = vcmp.eq.s32.totalorder %v3182, %v3187
      %vm3192 = vcmp.eq.s32.totalorder %v3181, %v3188
      %v3193 = vsel %vm3189, %v3172, %v3171
      %v3194 = vsel %vm3190, %v3171, %v3170
      %v3195 = vsel %vm3191, %v3170, %v3169
      %v3196 = vsel %vm3192, %v3169, %v3172
      %v3197 = vxor.u32 %v3084, 128
      %v3198 = vxor.u32 %v3085, 128
      %v3199 = vxor.u32 %v3086, 128
      %v3200 = vxor.u32 %v3087, 128
      %vm3201 = vcmp.eq.s32.totalorder %v3087, %v3197
      %vm3202 = vcmp.eq.s32.totalorder %v3084, %v3198
      %vm3203 = vcmp.eq.s32.totalorder %v3085, %v3199
      %vm3204 = vcmp.eq.s32.totalorder %v3086, %v3200
      %v3205 = vsel %vm3201, %v3196, %v3194
      %v3206 = vsel %vm3202, %v3193, %v3195
      %v3207 = vsel %vm3203, %v3194, %v3196
      %v3208 = vsel %vm3204, %v3195, %v3193
      %v3213 = vcombine.low %v3207, %v3208
      %v3214 = vcombine.low %v3205, %v3206
      %v3216 = vunpack.c.l.s4 1983009808
      %v3217 = vunpack.c.0.s8 %v3216
      %v3218 = vlaneseq
      %v3219 = vshrl.u32 %v3218, 7
      %v3220 = vsub.s32 %v3217, %v3219
      %v3221 = vrot.slane %v3213, %v3220
      %v3223 = vunpack.c.l.s4 1983009808
      %v3224 = vunpack.c.0.s8 %v3223
      %v3225 = vlaneseq
      %v3226 = vshrl.u32 %v3225, 7
      %v3227 = vsub.s32 %v3224, %v3226
      %v3228 = vrot.slane %v3214, %v3227
      %v3229 = vcombine.low %v3221, %v3228
      %3231 = vst [vmem:[#allocation12] sm:$0xff] %v3229
    $region65: #{tpu_custom_call.1} parent=1 // pred_fallthru
      _
    // Predicated region
    $region66: #{tpu_custom_call.1} parent=1 // pred_check
      _
    $region67: #{tpu_custom_call.1} parent=1 // pred_check_branch
      %3233 = sbr.rel (%p864) target = $region69
    $region68: #{tpu_custom_call.1} parent=1 // pred_region
      %v3234 = vld [vmem:[%s119] sm:$0xff]
      %v3235 = vlaneseq
      %v3236 = vand.u32 %v3235, 127
      %v3237 = vadd.s32 %v3236, 128
      %v3238 = vadd.s32 %v3236, 256
      %v3239 = vadd.s32 %v3236, 384
      %v3241 = vcombine.high %v3234, %v3234
      %v3243 = vunpack.c.l.s4 1983009808
      %v3244 = vunpack.c.0.s8 %v3243
      %v3245 = vlaneseq
      %v3246 = vshrl.u32 %v3245, 7
      %v3247 = vsub.s32 %v3244, %v3246
      %v3248 = vrot.slane %v3234, %v3247
      %v3250 = vunpack.c.l.s4 1983009808
      %v3251 = vunpack.c.0.s8 %v3250
      %v3252 = vlaneseq
      %v3253 = vshrl.u32 %v3252, 7
      %v3254 = vsub.s32 %v3251, %v3253
      %v3255 = vrot.slane %v3241, %v3254
      %v3256 = vcombine.high %v3248, %v3248
      %v3257 = vcombine.high %v3255, %v3255
      %3262 = vrot.lane.b32.xlu0 %v3248, 2
      %v3263 = vpop.permute.xlu0 %3262
      %3264 = vrot.lane.b32.xlu0 %v3256, 2
      %v3265 = vpop.permute.xlu0 %3264
      %3266 = vrot.lane.b32.xlu0 %v3255, 2
      %v3267 = vpop.permute.xlu0 %3266
      %3268 = vrot.lane.b32.xlu0 %v3257, 2
      %v3269 = vpop.permute.xlu0 %3268
      %vm3270 = vcmp.lt.s32.totalorder %v3236, 2
      %v3271 = vsel %vm3270, %v3267, %v3269
      %v3272 = vsel %vm3270, %v3265, %v3267
      %v3273 = vsel %vm3270, %v3263, %v3265
      %v3274 = vsel %vm3270, %v3269, %v3263
      %3275 = vrot.lane.b32.xlu0 %v3248, 126
      %v3276 = vpop.permute.xlu0 %3275
      %3277 = vrot.lane.b32.xlu0 %v3256, 126
      %v3278 = vpop.permute.xlu0 %3277
      %3279 = vrot.lane.b32.xlu0 %v3255, 126
      %v3280 = vpop.permute.xlu0 %3279
      %3281 = vrot.lane.b32.xlu0 %v3257, 126
      %v3282 = vpop.permute.xlu0 %3281
      %vm3283 = vcmp.lt.s32.totalorder %v3236, 126
      %v3284 = vsel %vm3283, %v3280, %v3282
      %v3285 = vsel %vm3283, %v3278, %v3280
      %v3286 = vsel %vm3283, %v3276, %v3278
      %v3287 = vsel %vm3283, %v3282, %v3276
      %3288 = vrot.lane.b32.xlu0 %v3236, 2
      %v3289 = vpop.permute.xlu0 %3288
      %3290 = vrot.lane.b32.xlu0 %v3237, 2
      %v3291 = vpop.permute.xlu0 %3290
      %3292 = vrot.lane.b32.xlu0 %v3238, 2
      %v3293 = vpop.permute.xlu0 %3292
      %3294 = vrot.lane.b32.xlu0 %v3239, 2
      %v3295 = vpop.permute.xlu0 %3294
      %v3296 = vsel %vm3270, %v3293, %v3295
      %v3297 = vsel %vm3270, %v3291, %v3293
      %v3298 = vsel %vm3270, %v3289, %v3291
      %v3299 = vsel %vm3270, %v3295, %v3289
      %v3300 = vxor.u32 %v3236, 2
      %v3301 = vxor.u32 %v3237, 2
      %v3302 = vxor.u32 %v3238, 2
      %v3303 = vxor.u32 %v3239, 2
      %vm3304 = vcmp.eq.s32.totalorder %v3299, %v3300
      %vm3305 = vcmp.eq.s32.totalorder %v3298, %v3301
      %vm3306 = vcmp.eq.s32.totalorder %v3297, %v3302
      %vm3307 = vcmp.eq.s32.totalorder %v3296, %v3303
      %v3308 = vsel %vm3304, %v3274, %v3286
      %v3309 = vsel %vm3305, %v3273, %v3285
      %v3310 = vsel %vm3306, %v3272, %v3284
      %v3311 = vsel %vm3307, %v3271, %v3287
      %3312 = vrot.lane.b32.xlu0 %v3308, 4
      %v3313 = vpop.permute.xlu0 %3312
      %3314 = vrot.lane.b32.xlu0 %v3309, 4
      %v3315 = vpop.permute.xlu0 %3314
      %3316 = vrot.lane.b32.xlu0 %v3310, 4
      %v3317 = vpop.permute.xlu0 %3316
      %3318 = vrot.lane.b32.xlu0 %v3311, 4
      %v3319 = vpop.permute.xlu0 %3318
      %vm3320 = vcmp.lt.s32.totalorder %v3236, 4
      %v3321 = vsel %vm3320, %v3317, %v3319
      %v3322 = vsel %vm3320, %v3315, %v3317
      %v3323 = vsel %vm3320, %v3313, %v3315
      %v3324 = vsel %vm3320, %v3319, %v3313
      %3325 = vrot.lane.b32.xlu0 %v3308, 124
      %v3326 = vpop.permute.xlu0 %3325
      %3327 = vrot.lane.b32.xlu0 %v3309, 124
      %v3328 = vpop.permute.xlu0 %3327
      %3329 = vrot.lane.b32.xlu0 %v3310, 124
      %v3330 = vpop.permute.xlu0 %3329
      %3331 = vrot.lane.b32.xlu0 %v3311, 124
      %v3332 = vpop.permute.xlu0 %3331
      %vm3333 = vcmp.lt.s32.totalorder %v3236, 124
      %v3334 = vsel %vm3333, %v3330, %v3332
      %v3335 = vsel %vm3333, %v3328, %v3330
      %v3336 = vsel %vm3333, %v3326, %v3328
      %v3337 = vsel %vm3333, %v3332, %v3326
      %3338 = vrot.lane.b32.xlu0 %v3236, 4
      %v3339 = vpop.permute.xlu0 %3338
      %3340 = vrot.lane.b32.xlu0 %v3237, 4
      %v3341 = vpop.permute.xlu0 %3340
      %3342 = vrot.lane.b32.xlu0 %v3238, 4
      %v3343 = vpop.permute.xlu0 %3342
      %3344 = vrot.lane.b32.xlu0 %v3239, 4
      %v3345 = vpop.permute.xlu0 %3344
      %v3346 = vsel %vm3320, %v3343, %v3345
      %v3347 = vsel %vm3320, %v3341, %v3343
      %v3348 = vsel %vm3320, %v3339, %v3341
      %v3349 = vsel %vm3320, %v3345, %v3339
      %v3350 = vxor.u32 %v3236, 4
      %v3351 = vxor.u32 %v3237, 4
      %v3352 = vxor.u32 %v3238, 4
      %v3353 = vxor.u32 %v3239, 4
      %vm3354 = vcmp.eq.s32.totalorder %v3349, %v3350
      %vm3355 = vcmp.eq.s32.totalorder %v3348, %v3351
      %vm3356 = vcmp.eq.s32.totalorder %v3347, %v3352
      %vm3357 = vcmp.eq.s32.totalorder %v3346, %v3353
      %v3358 = vsel %vm3354, %v3324, %v3336
      %v3359 = vsel %vm3355, %v3323, %v3335
      %v3360 = vsel %vm3356, %v3322, %v3334
      %v3361 = vsel %vm3357, %v3321, %v3337
      %3362 = vrot.lane.b32.xlu0 %v3358, 8
      %v3363 = vpop.permute.xlu0 %3362
      %3364 = vrot.lane.b32.xlu0 %v3359, 8
      %v3365 = vpop.permute.xlu0 %3364
      %3366 = vrot.lane.b32.xlu0 %v3360, 8
      %v3367 = vpop.permute.xlu0 %3366
      %3368 = vrot.lane.b32.xlu0 %v3361, 8
      %v3369 = vpop.permute.xlu0 %3368
      %vm3370 = vcmp.lt.s32.totalorder %v3236, 8
      %v3371 = vsel %vm3370, %v3367, %v3369
      %v3372 = vsel %vm3370, %v3365, %v3367
      %v3373 = vsel %vm3370, %v3363, %v3365
      %v3374 = vsel %vm3370, %v3369, %v3363
      %3375 = vrot.lane.b32.xlu0 %v3358, 120
      %v3376 = vpop.permute.xlu0 %3375
      %3377 = vrot.lane.b32.xlu0 %v3359, 120
      %v3378 = vpop.permute.xlu0 %3377
      %3379 = vrot.lane.b32.xlu0 %v3360, 120
      %v3380 = vpop.permute.xlu0 %3379
      %3381 = vrot.lane.b32.xlu0 %v3361, 120
      %v3382 = vpop.permute.xlu0 %3381
      %vm3383 = vcmp.lt.s32.totalorder %v3236, 120
      %v3384 = vsel %vm3383, %v3380, %v3382
      %v3385 = vsel %vm3383, %v3378, %v3380
      %v3386 = vsel %vm3383, %v3376, %v3378
      %v3387 = vsel %vm3383, %v3382, %v3376
      %3388 = vrot.lane.b32.xlu0 %v3236, 8
      %v3389 = vpop.permute.xlu0 %3388
      %3390 = vrot.lane.b32.xlu0 %v3237, 8
      %v3391 = vpop.permute.xlu0 %3390
      %3392 = vrot.lane.b32.xlu0 %v3238, 8
      %v3393 = vpop.permute.xlu0 %3392
      %3394 = vrot.lane.b32.xlu0 %v3239, 8
      %v3395 = vpop.permute.xlu0 %3394
      %v3396 = vsel %vm3370, %v3393, %v3395
      %v3397 = vsel %vm3370, %v3391, %v3393
      %v3398 = vsel %vm3370, %v3389, %v3391
      %v3399 = vsel %vm3370, %v3395, %v3389
      %v3400 = vxor.u32 %v3236, 8
      %v3401 = vxor.u32 %v3237, 8
      %v3402 = vxor.u32 %v3238, 8
      %v3403 = vxor.u32 %v3239, 8
      %vm3404 = vcmp.eq.s32.totalorder %v3399, %v3400
      %vm3405 = vcmp.eq.s32.totalorder %v3398, %v3401
      %vm3406 = vcmp.eq.s32.totalorder %v3397, %v3402
      %vm3407 = vcmp.eq.s32.totalorder %v3396, %v3403
      %v3408 = vsel %vm3404, %v3374, %v3386
      %v3409 = vsel %vm3405, %v3373, %v3385
      %v3410 = vsel %vm3406, %v3372, %v3384
      %v3411 = vsel %vm3407, %v3371, %v3387
      %3412 = vrot.lane.b32.xlu0 %v3408, 16
      %v3413 = vpop.permute.xlu0 %3412
      %3414 = vrot.lane.b32.xlu0 %v3409, 16
      %v3415 = vpop.permute.xlu0 %3414
      %3416 = vrot.lane.b32.xlu0 %v3410, 16
      %v3417 = vpop.permute.xlu0 %3416
      %3418 = vrot.lane.b32.xlu0 %v3411, 16
      %v3419 = vpop.permute.xlu0 %3418
      %vm3420 = vcmp.lt.s32.totalorder %v3236, 16
      %v3421 = vsel %vm3420, %v3417, %v3419
      %v3422 = vsel %vm3420, %v3415, %v3417
      %v3423 = vsel %vm3420, %v3413, %v3415
      %v3424 = vsel %vm3420, %v3419, %v3413
      %3425 = vrot.lane.b32.xlu0 %v3408, 112
      %v3426 = vpop.permute.xlu0 %3425
      %3427 = vrot.lane.b32.xlu0 %v3409, 112
      %v3428 = vpop.permute.xlu0 %3427
      %3429 = vrot.lane.b32.xlu0 %v3410, 112
      %v3430 = vpop.permute.xlu0 %3429
      %3431 = vrot.lane.b32.xlu0 %v3411, 112
      %v3432 = vpop.permute.xlu0 %3431
      %vm3433 = vcmp.lt.s32.totalorder %v3236, 112
      %v3434 = vsel %vm3433, %v3430, %v3432
      %v3435 = vsel %vm3433, %v3428, %v3430
      %v3436 = vsel %vm3433, %v3426, %v3428
      %v3437 = vsel %vm3433, %v3432, %v3426
      %3438 = vrot.lane.b32.xlu0 %v3236, 16
      %v3439 = vpop.permute.xlu0 %3438
      %3440 = vrot.lane.b32.xlu0 %v3237, 16
      %v3441 = vpop.permute.xlu0 %3440
      %3442 = vrot.lane.b32.xlu0 %v3238, 16
      %v3443 = vpop.permute.xlu0 %3442
      %3444 = vrot.lane.b32.xlu0 %v3239, 16
      %v3445 = vpop.permute.xlu0 %3444
      %v3446 = vsel %vm3420, %v3443, %v3445
      %v3447 = vsel %vm3420, %v3441, %v3443
      %v3448 = vsel %vm3420, %v3439, %v3441
      %v3449 = vsel %vm3420, %v3445, %v3439
      %v3450 = vxor.u32 %v3236, 16
      %v3451 = vxor.u32 %v3237, 16
      %v3452 = vxor.u32 %v3238, 16
      %v3453 = vxor.u32 %v3239, 16
      %vm3454 = vcmp.eq.s32.totalorder %v3449, %v3450
      %vm3455 = vcmp.eq.s32.totalorder %v3448, %v3451
      %vm3456 = vcmp.eq.s32.totalorder %v3447, %v3452
      %vm3457 = vcmp.eq.s32.totalorder %v3446, %v3453
      %v3458 = vsel %vm3454, %v3424, %v3436
      %v3459 = vsel %vm3455, %v3423, %v3435
      %v3460 = vsel %vm3456, %v3422, %v3434
      %v3461 = vsel %vm3457, %v3421, %v3437
      %3462 = vrot.lane.b32.xlu0 %v3458, 32
      %v3463 = vpop.permute.xlu0 %3462
      %3464 = vrot.lane.b32.xlu0 %v3459, 32
      %v3465 = vpop.permute.xlu0 %3464
      %3466 = vrot.lane.b32.xlu0 %v3460, 32
      %v3467 = vpop.permute.xlu0 %3466
      %3468 = vrot.lane.b32.xlu0 %v3461, 32
      %v3469 = vpop.permute.xlu0 %3468
      %vm3470 = vcmp.lt.s32.totalorder %v3236, 32
      %v3471 = vsel %vm3470, %v3467, %v3469
      %v3472 = vsel %vm3470, %v3465, %v3467
      %v3473 = vsel %vm3470, %v3463, %v3465
      %v3474 = vsel %vm3470, %v3469, %v3463
      %3475 = vrot.lane.b32.xlu0 %v3458, 96
      %v3476 = vpop.permute.xlu0 %3475
      %3477 = vrot.lane.b32.xlu0 %v3459, 96
      %v3478 = vpop.permute.xlu0 %3477
      %3479 = vrot.lane.b32.xlu0 %v3460, 96
      %v3480 = vpop.permute.xlu0 %3479
      %3481 = vrot.lane.b32.xlu0 %v3461, 96
      %v3482 = vpop.permute.xlu0 %3481
      %vm3483 = vcmp.lt.s32.totalorder %v3236, 96
      %v3484 = vsel %vm3483, %v3480, %v3482
      %v3485 = vsel %vm3483, %v3478, %v3480
      %v3486 = vsel %vm3483, %v3476, %v3478
      %v3487 = vsel %vm3483, %v3482, %v3476
      %3488 = vrot.lane.b32.xlu0 %v3236, 32
      %v3489 = vpop.permute.xlu0 %3488
      %3490 = vrot.lane.b32.xlu0 %v3237, 32
      %v3491 = vpop.permute.xlu0 %3490
      %3492 = vrot.lane.b32.xlu0 %v3238, 32
      %v3493 = vpop.permute.xlu0 %3492
      %3494 = vrot.lane.b32.xlu0 %v3239, 32
      %v3495 = vpop.permute.xlu0 %3494
      %v3496 = vsel %vm3470, %v3493, %v3495
      %v3497 = vsel %vm3470, %v3491, %v3493
      %v3498 = vsel %vm3470, %v3489, %v3491
      %v3499 = vsel %vm3470, %v3495, %v3489
      %v3500 = vxor.u32 %v3236, 32
      %v3501 = vxor.u32 %v3237, 32
      %v3502 = vxor.u32 %v3238, 32
      %v3503 = vxor.u32 %v3239, 32
      %vm3504 = vcmp.eq.s32.totalorder %v3499, %v3500
      %vm3505 = vcmp.eq.s32.totalorder %v3498, %v3501
      %vm3506 = vcmp.eq.s32.totalorder %v3497, %v3502
      %vm3507 = vcmp.eq.s32.totalorder %v3496, %v3503
      %v3508 = vsel %vm3504, %v3474, %v3486
      %v3509 = vsel %vm3505, %v3473, %v3485
      %v3510 = vsel %vm3506, %v3472, %v3484
      %v3511 = vsel %vm3507, %v3471, %v3487
      %3512 = vrot.lane.b32.xlu0 %v3508, 64
      %v3513 = vpop.permute.xlu0 %3512
      %3514 = vrot.lane.b32.xlu0 %v3509, 64
      %v3515 = vpop.permute.xlu0 %3514
      %3516 = vrot.lane.b32.xlu0 %v3510, 64
      %v3517 = vpop.permute.xlu0 %3516
      %3518 = vrot.lane.b32.xlu0 %v3511, 64
      %v3519 = vpop.permute.xlu0 %3518
      %vm3520 = vcmp.lt.s32.totalorder %v3236, 64
      %v3521 = vsel %vm3520, %v3517, %v3519
      %v3522 = vsel %vm3520, %v3515, %v3517
      %v3523 = vsel %vm3520, %v3513, %v3515
      %v3524 = vsel %vm3520, %v3519, %v3513
      %3525 = vrot.lane.b32.xlu0 %v3236, 64
      %v3526 = vpop.permute.xlu0 %3525
      %3527 = vrot.lane.b32.xlu0 %v3237, 64
      %v3528 = vpop.permute.xlu0 %3527
      %3529 = vrot.lane.b32.xlu0 %v3238, 64
      %v3530 = vpop.permute.xlu0 %3529
      %3531 = vrot.lane.b32.xlu0 %v3239, 64
      %v3532 = vpop.permute.xlu0 %3531
      %v3533 = vsel %vm3520, %v3530, %v3532
      %v3534 = vsel %vm3520, %v3528, %v3530
      %v3535 = vsel %vm3520, %v3526, %v3528
      %v3536 = vsel %vm3520, %v3532, %v3526
      %v3537 = vxor.u32 %v3236, 64
      %v3538 = vxor.u32 %v3237, 64
      %v3539 = vxor.u32 %v3238, 64
      %v3540 = vxor.u32 %v3239, 64
      %vm3541 = vcmp.eq.s32.totalorder %v3536, %v3537
      %vm3542 = vcmp.eq.s32.totalorder %v3535, %v3538
      %vm3543 = vcmp.eq.s32.totalorder %v3534, %v3539
      %vm3544 = vcmp.eq.s32.totalorder %v3533, %v3540
      %v3545 = vsel %vm3541, %v3524, %v3523
      %v3546 = vsel %vm3542, %v3523, %v3522
      %v3547 = vsel %vm3543, %v3522, %v3521
      %v3548 = vsel %vm3544, %v3521, %v3524
      %v3549 = vxor.u32 %v3236, 128
      %v3550 = vxor.u32 %v3237, 128
      %v3551 = vxor.u32 %v3238, 128
      %v3552 = vxor.u32 %v3239, 128
      %vm3553 = vcmp.eq.s32.totalorder %v3239, %v3549
      %vm3554 = vcmp.eq.s32.totalorder %v3236, %v3550
      %vm3555 = vcmp.eq.s32.totalorder %v3237, %v3551
      %vm3556 = vcmp.eq.s32.totalorder %v3238, %v3552
      %v3557 = vsel %vm3553, %v3548, %v3546
      %v3558 = vsel %vm3554, %v3545, %v3547
      %v3559 = vsel %vm3555, %v3546, %v3548
      %v3560 = vsel %vm3556, %v3547, %v3545
      %v3565 = vcombine.low %v3559, %v3560
      %v3566 = vcombine.low %v3557, %v3558
      %v3568 = vunpack.c.l.s4 1983009808
      %v3569 = vunpack.c.0.s8 %v3568
      %v3570 = vlaneseq
      %v3571 = vshrl.u32 %v3570, 7
      %v3572 = vsub.s32 %v3569, %v3571
      %v3573 = vrot.slane %v3565, %v3572
      %v3575 = vunpack.c.l.s4 1983009808
      %v3576 = vunpack.c.0.s8 %v3575
      %v3577 = vlaneseq
      %v3578 = vshrl.u32 %v3577, 7
      %v3579 = vsub.s32 %v3576, %v3578
      %v3580 = vrot.slane %v3566, %v3579
      %v3581 = vcombine.low %v3573, %v3580
      %3583 = vst [vmem:[#allocation12] sm:$0xff] %v3581
    $region69: #{tpu_custom_call.1} parent=1 // pred_fallthru
      _
    // Predicated region
    $region70: #{tpu_custom_call.1} parent=1 // pred_check
      _
    $region71: #{tpu_custom_call.1} parent=1 // pred_check_branch
      %3585 = sbr.rel (0) target = $region73
    $region72: #{tpu_custom_call.1} parent=1 // pred_region
      %s3587 = ssub.s32 256, 256
      %3588 = vsyncadd [#allocation6], %s3587
      %s3590 = sshll.u32 [#allocation9], 4
      %s3591 = int_to_ptr.vmem [resolvable:$true] %s3590
      %3593 = dma.vmem_to_hbm [thread:$0]  %s3591, 256, %s4, [#allocation6]
    $region73: #{tpu_custom_call.1} parent=1 // pred_fallthru
      _
    // Predicated region
    $region74: #{tpu_custom_call.1} parent=1 // pred_check
      _
    $region75: #{tpu_custom_call.1} parent=1 // pred_check_branch
      %3595 = sbr.rel (0) target = $region77
    $region76: #{tpu_custom_call.1} parent=1 // pred_region
      %s3597 = ssub.s32 256, 256
      %3598 = vsyncadd [#allocation11], %s3597
      %s3600 = sshll.u32 [#allocation10], 4
      %s3601 = int_to_ptr.vmem [resolvable:$true] %s3600
      %3603 = dma.vmem_to_hbm [thread:$0]  %s3601, 256, %s5, [#allocation11]
    $region77: #{tpu_custom_call.1} parent=1 // pred_fallthru
      _
    // Predicated region
    $region78: #{tpu_custom_call.1} parent=1 // pred_check
      _
    $region79: #{tpu_custom_call.1} parent=1 // pred_check_branch
      %3605 = sbr.rel (0) target = $region81
    $region80: #{tpu_custom_call.1} parent=1 // pred_region
      %s3607 = ssub.s32 128, 128
      %3608 = vsyncadd [#allocation11], %s3607
      %s3610 = sshll.u32 [#allocation12], 4
      %s3611 = int_to_ptr.vmem [resolvable:$true] %s3610
      %3613 = dma.vmem_to_hbm [thread:$0]  %s3611, 128, %s6, [#allocation11]
    $region81: #{tpu_custom_call.1} parent=1 // pred_fallthru
      _
    // Predicated region
    $region82: #{tpu_custom_call.1} parent=1 // pred_check
      _
    $region83: #{tpu_custom_call.1} parent=1 // pred_check_branch
      %3615 = sbr.rel (0) target = $region85
    $region84: #{tpu_custom_call.1} parent=1 // pred_region
      %3616 = dma.done [#allocation6], 256
    $region85: #{tpu_custom_call.1} parent=1 // pred_fallthru
      _
    // Predicated region
    $region86: #{tpu_custom_call.1} parent=1 // pred_check
      _
    $region87: #{tpu_custom_call.1} parent=1 // pred_check_branch
      %3618 = sbr.rel (0) target = $region89
    $region88: #{tpu_custom_call.1} parent=1 // pred_region
      %3619 = dma.done [#allocation11], 256
    $region89: #{tpu_custom_call.1} parent=1 // pred_fallthru
      _
    // Predicated region
    $region90: #{tpu_custom_call.1} parent=1 // pred_check
      _
    $region91: #{tpu_custom_call.1} parent=1 // pred_check_branch
      %3621 = sbr.rel (0) target = $region93
    $region92: #{tpu_custom_call.1} parent=1 // pred_region
      %3622 = dma.done [#allocation11], 128
    $region93: #{tpu_custom_call.1} parent=1 // pred_fallthru
      _
    %3623 = vsyncpa [#allocation5], 1
    %3624 = vsyncpa [#allocation8], 1
    %3625 = vsyncpa [#allocation6], 1
    %3626 = vsyncpa [#allocation11], 1

</llo_original>
